<compile_context>
chip_gen: v6e
topology: v6e:2x2x1
jax: 0.10.0
libtpu: 0.0.40
codegen_flags: <defaults>
</compile_context>

<pallas_src>
import functools

import jax
import jax.numpy as jnp
from jax.experimental import pallas as pl
from jax.experimental.pallas import tpu as pltpu


# ----------------------------------------------------------------------------
# Config (small, consistent with the GPT2Config fields used by the module)
# ----------------------------------------------------------------------------
VOCAB_SIZE = 128
CONTEXT_LENGTH = 16
EMB_DIM = 32
N_HEADS = 4
N_LAYERS = 2
HEAD_DIM = EMB_DIM // N_HEADS
MLP_DIM = 4 * EMB_DIM
LN_EPS = 1e-5


# ----------------------------------------------------------------------------
# In-kernel helpers (all f32 elementwise)
# ----------------------------------------------------------------------------
def _layer_norm(h, g, b, eps):
    mu = jnp.mean(h, axis=-1, keepdims=True)
    var = jnp.mean((h - mu) ** 2, axis=-1, keepdims=True)
    return (h - mu) * jax.lax.rsqrt(var + eps) * g + b


def _gelu(h):
    # TODO(synk): PyTorch nn.GELU() default is exact erf; tanh approximation used here.
    c = jnp.float32(0.7978845608028654)  # sqrt(2/pi)
    return 0.5 * h * (1.0 + jnp.tanh(c * (h + 0.044715 * h * h * h)))


# batched matmul: (G, M, K) x (G, K, N) -> (G, M, N), f32 accumulation
_BMM_DIMS = (((2,), (1,)), ((0,), (0,)))


def _bmm(a, b):
    return jax.lax.dot_general(a, b, _BMM_DIMS, preferred_element_type=jnp.float32)


# ----------------------------------------------------------------------------
# Fused whole-model kernel (one sequence of S tokens per grid program)
# ----------------------------------------------------------------------------
def _gpt_kernel(
    ids_ref, tok_emb_ref, pos_emb_ref,
    ln1_g_ref, ln1_b_ref, w_qkv_ref, b_qkv_ref, wo_ref, bo_ref,
    ln2_g_ref, ln2_b_ref, w_fc1_ref, b_fc1_ref, w_fc2_ref, b_fc2_ref,
    lnf_g_ref, lnf_b_ref, w_head_ref,
    logits_ref,
    *, n_layers, n_heads, head_dim, seq_len, vocab, eps,
):
    S = seq_len
    H = n_heads
    D = n_heads * head_dim

    # ----- embedding: one-hot gather on the MXU + positional add (f32) -----
    ids = ids_ref[...]                                           # (S, 1) int32
    col = jax.lax.broadcasted_iota(jnp.int32, (S, vocab), 1)
    onehot = (col == ids).astype(jnp.float32)                    # (S, V)
    x = jnp.dot(onehot, tok_emb_ref[...], preferred_element_type=jnp.float32)
    x = x + pos_emb_ref[0:S, :]                                  # (S, D) f32
    # emb_dropout: identity (eval)

    # ----- causal additive mask built in-kernel (per-sequence -> no batch term)
    row = jax.lax.broadcasted_iota(jnp.int32, (S, S), 0)
    colm = jax.lax.broadcasted_iota(jnp.int32, (S, S), 1)
    mask = jnp.where(colm <= row, 0.0, -1e30).astype(jnp.float32)  # (S, S)

    for l in range(n_layers):              # unrolled; weights stay VMEM-resident
        # ---------------- attention sub-block ----------------
        h = _layer_norm(x, ln1_g_ref[l], ln1_b_ref[l], eps)        # (S, D) f32
        hb = jnp.broadcast_to(h.astype(jnp.bfloat16)[None], (3 * H, S, D))
        # fused, head-batched QKV projection (1/sqrt(hd) pre-folded into Q weights)
        qkv = _bmm(hb, w_qkv_ref[l]) + b_qkv_ref[l]                # (3H, S, hd) f32
        q = qkv[0:H]
        k = qkv[H:2 * H]
        v = qkv[2 * H:3 * H]
        # scores per head (batched over H), softmax kept fully in f32
        s = jax.lax.dot_general(q, k, (((2,), (2,)), ((0,), (0,))),
                                preferred_element_type=jnp.float32)  # (H, S, S)
        s = s + mask
        m = jnp.max(s, axis=-1, keepdims=True)
        p = jnp.exp(s - m)
        p = p * pl.reciprocal(jnp.sum(p, axis=-1, keepdims=True), approx=True)
        o = _bmm(p, v)                                             # (H, S, hd) f32
        # per-head out-projection summed over heads, + residual
        proj = _bmm(o.astype(jnp.bfloat16), wo_ref[l])             # (H, S, D) f32
        x = x + jnp.sum(proj, axis=0) + bo_ref[l]
        # attn/resid dropout: identity (eval)

        # ---------------- MLP sub-block ----------------
        h = _layer_norm(x, ln2_g_ref[l], ln2_b_ref[l], eps)
        h = jnp.dot(h.astype(jnp.bfloat16), w_fc1_ref[l],
                    preferred_element_type=jnp.float32) + b_fc1_ref[l]
        h = _gelu(h)
        x = x + jnp.dot(h.astype(jnp.bfloat16), w_fc2_ref[l],
                        preferred_element_type=jnp.float32) + b_fc2_ref[l]

    # ---------------- final norm + bias-free output head ----------------
    x = _layer_norm(x, lnf_g_ref[...], lnf_b_ref[...], eps)
    logits_ref[...] = jnp.dot(
        x.astype(jnp.bfloat16), w_head_ref[...],
        preferred_element_type=jnp.float32,
    ).astype(logits_ref.dtype)                                     # (S, V) lane-dense


# ----------------------------------------------------------------------------
# Parameter init (deterministic, synthetic; layouts match the kernel)
# ----------------------------------------------------------------------------
def init_params(key):
    def nrm(k, shape, scale=0.02):
        return scale * jax.random.normal(k, shape, dtype=jnp.float32)

    ks = jax.random.split(key, 8)

    # Fused QKV weights, relaid out per head: (L, 3*H, D, head_dim).
    # Attention scale 1/sqrt(head_dim) is folded into the Q slices (and would
    # be folded into the Q bias too if it were non-zero).
    inv_scale = 1.0 / float(HEAD_DIM) ** 0.5
    w_qkv = nrm(ks[2], (N_LAYERS, 3 * N_HEADS, EMB_DIM, HEAD_DIM))
    w_qkv = w_qkv.at[:, :N_HEADS].multiply(inv_scale)

    return {
        "tok_emb": nrm(ks[0], (VOCAB_SIZE, EMB_DIM)),                 # f32
        "pos_emb": nrm(ks[1], (CONTEXT_LENGTH, EMB_DIM)),             # f32
        "ln1_g": jnp.ones((N_LAYERS, 1, EMB_DIM), jnp.float32),
        "ln1_b": jnp.zeros((N_LAYERS, 1, EMB_DIM), jnp.float32),
        "w_qkv": w_qkv.astype(jnp.bfloat16),
        "b_qkv": jnp.zeros((N_LAYERS, 3 * N_HEADS, 1, HEAD_DIM), jnp.float32),
        "wo": nrm(ks[3], (N_LAYERS, N_HEADS, HEAD_DIM, EMB_DIM)).astype(jnp.bfloat16),
        "bo": jnp.zeros((N_LAYERS, 1, EMB_DIM), jnp.float32),
        "ln2_g": jnp.ones((N_LAYERS, 1, EMB_DIM), jnp.float32),
        "ln2_b": jnp.zeros((N_LAYERS, 1, EMB_DIM), jnp.float32),
        "w_fc1": nrm(ks[4], (N_LAYERS, EMB_DIM, MLP_DIM)).astype(jnp.bfloat16),
        "b_fc1": jnp.zeros((N_LAYERS, 1, MLP_DIM), jnp.float32),
        "w_fc2": nrm(ks[5], (N_LAYERS, MLP_DIM, EMB_DIM)).astype(jnp.bfloat16),
        "b_fc2": jnp.zeros((N_LAYERS, 1, EMB_DIM), jnp.float32),
        "ln_f_g": jnp.ones((1, EMB_DIM), jnp.float32),
        "ln_f_b": jnp.zeros((1, EMB_DIM), jnp.float32),
        "out_head": nrm(ks[6], (EMB_DIM, VOCAB_SIZE)).astype(jnp.bfloat16),  # bias-free
    }


# ----------------------------------------------------------------------------
# Forward pass: one pallas_call, grid=(B,) with one sequence per program
# ----------------------------------------------------------------------------
def gpt_forward(params, input_ids):
    B, S = input_ids.shape
    M = B * S
    ids2d = input_ids.reshape(M, 1).astype(jnp.int32)

    args = (
        ids2d, params["tok_emb"], params["pos_emb"],
        params["ln1_g"], params["ln1_b"], params["w_qkv"], params["b_qkv"],
        params["wo"], params["bo"],
        params["ln2_g"], params["ln2_b"], params["w_fc1"], params["b_fc1"],
        params["w_fc2"], params["b_fc2"],
        params["ln_f_g"], params["ln_f_b"], params["out_head"],
    )

    # Weights/tables: whole-array, VMEM-resident across all grid steps.
    vmem_full = pl.BlockSpec(memory_space=pltpu.MemorySpace.VMEM)
    in_specs = [pl.BlockSpec((S, 1), lambda b: (b, 0))] + [vmem_full] * (len(args) - 1)

    logits = pl.pallas_call(
        functools.partial(
            _gpt_kernel,
            n_layers=N_LAYERS, n_heads=N_HEADS, head_dim=HEAD_DIM,
            seq_len=S, vocab=VOCAB_SIZE, eps=LN_EPS,
        ),
        grid=(B,),
        out_shape=jax.ShapeDtypeStruct((M, VOCAB_SIZE), jnp.float32),
        in_specs=in_specs,
        out_specs=pl.BlockSpec((S, VOCAB_SIZE), lambda b: (b, 0)),
        compiler_params=pltpu.CompilerParams(dimension_semantics=("parallel",)),
    )(*args)
    return logits.reshape(B, S, VOCAB_SIZE)


if __name__ == "__main__":
    key = jax.random.PRNGKey(0)
    k_param, k_ids = jax.random.split(key)
    params = init_params(k_param)

    B, S = 2, 8
    input_ids = jax.random.randint(k_ids, (B, S), 0, VOCAB_SIZE, dtype=jnp.int32)

    forward = jax.jit(gpt_forward)
    logits = jax.block_until_ready(forward(params, input_ids))
    assert logits.shape == (B, S, VOCAB_SIZE)
    assert bool(jnp.all(jnp.isfinite(logits)))
    print("KERNEL_OK")
</pallas_src>

<mosaic_0001>
module attributes {stable_mosaic.version = 11 : i64} {
  func.func @_gpt_kernel(%arg0: i32, %arg1: memref<8x1xi32, #tpu.memory_space<vmem>>, %arg2: memref<128x32xf32, #tpu.memory_space<vmem>>, %arg3: memref<16x32xf32, #tpu.memory_space<vmem>>, %arg4: memref<2x1x32xf32, #tpu.memory_space<vmem>>, %arg5: memref<2x1x32xf32, #tpu.memory_space<vmem>>, %arg6: memref<2x12x32x8xbf16, #tpu.memory_space<vmem>>, %arg7: memref<2x12x1x8xf32, #tpu.memory_space<vmem>>, %arg8: memref<2x4x8x32xbf16, #tpu.memory_space<vmem>>, %arg9: memref<2x1x32xf32, #tpu.memory_space<vmem>>, %arg10: memref<2x1x32xf32, #tpu.memory_space<vmem>>, %arg11: memref<2x1x32xf32, #tpu.memory_space<vmem>>, %arg12: memref<2x32x128xbf16, #tpu.memory_space<vmem>>, %arg13: memref<2x1x128xf32, #tpu.memory_space<vmem>>, %arg14: memref<2x128x32xbf16, #tpu.memory_space<vmem>>, %arg15: memref<2x1x32xf32, #tpu.memory_space<vmem>>, %arg16: memref<1x32xf32, #tpu.memory_space<vmem>>, %arg17: memref<1x32xf32, #tpu.memory_space<vmem>>, %arg18: memref<32x128xbf16, #tpu.memory_space<vmem>>, %arg19: memref<8x128xf32, #tpu.memory_space<vmem>>) attributes {dimension_semantics = [#tpu.dimension_semantics<parallel>], iteration_bounds = array<i64: 2>, scalar_prefetch = 0 : i64, scratch_operands = 0 : i64, tpu.core_type = #tpu.core_type<tc>, window_params = [{transform_indices = @transform_0, window_bounds = array<i64: 8, 1>}, {pipeline_mode = #tpu.pipeline_mode<synchronous>, transform_indices = @transform_1, window_bounds = array<i64: 128, 32>}, {pipeline_mode = #tpu.pipeline_mode<synchronous>, transform_indices = @transform_2, window_bounds = array<i64: 16, 32>}, {pipeline_mode = #tpu.pipeline_mode<synchronous>, transform_indices = @transform_3, window_bounds = array<i64: 2, 1, 32>}, {pipeline_mode = #tpu.pipeline_mode<synchronous>, transform_indices = @transform_4, window_bounds = array<i64: 2, 1, 32>}, {pipeline_mode = #tpu.pipeline_mode<synchronous>, transform_indices = @transform_5, window_bounds = array<i64: 2, 12, 32, 8>}, {pipeline_mode = #tpu.pipeline_mode<synchronous>, transform_indices = @transform_6, window_bounds = array<i64: 2, 12, 1, 8>}, {pipeline_mode = #tpu.pipeline_mode<synchronous>, transform_indices = @transform_7, window_bounds = array<i64: 2, 4, 8, 32>}, {pipeline_mode = #tpu.pipeline_mode<synchronous>, transform_indices = @transform_8, window_bounds = array<i64: 2, 1, 32>}, {pipeline_mode = #tpu.pipeline_mode<synchronous>, transform_indices = @transform_9, window_bounds = array<i64: 2, 1, 32>}, {pipeline_mode = #tpu.pipeline_mode<synchronous>, transform_indices = @transform_10, window_bounds = array<i64: 2, 1, 32>}, {pipeline_mode = #tpu.pipeline_mode<synchronous>, transform_indices = @transform_11, window_bounds = array<i64: 2, 32, 128>}, {pipeline_mode = #tpu.pipeline_mode<synchronous>, transform_indices = @transform_12, window_bounds = array<i64: 2, 1, 128>}, {pipeline_mode = #tpu.pipeline_mode<synchronous>, transform_indices = @transform_13, window_bounds = array<i64: 2, 128, 32>}, {pipeline_mode = #tpu.pipeline_mode<synchronous>, transform_indices = @transform_14, window_bounds = array<i64: 2, 1, 32>}, {pipeline_mode = #tpu.pipeline_mode<synchronous>, transform_indices = @transform_15, window_bounds = array<i64: 1, 32>}, {pipeline_mode = #tpu.pipeline_mode<synchronous>, transform_indices = @transform_16, window_bounds = array<i64: 1, 32>}, {pipeline_mode = #tpu.pipeline_mode<synchronous>, transform_indices = @transform_17, window_bounds = array<i64: 32, 128>}, {transform_indices = @transform_18, window_bounds = array<i64: 8, 128>}]} {
    %c0 = arith.constant 0 : index
    %c0_0 = arith.constant 0 : index
    %0 = vector.load %arg1[%c0, %c0_0] : memref<8x1xi32, #tpu.memory_space<vmem>>, vector<8x1xi32>
    %1 = tpu.iota {dimensions = array<i32: 1>} : vector<8x128xi32>
    %2 = vector.broadcast %0 : vector<8x1xi32> to vector<8x128xi32>
    %3 = arith.cmpi eq, %1, %2 : vector<8x128xi32>
    %4 = arith.extui %3 : vector<8x128xi1> to vector<8x128xi32>
    %5 = arith.sitofp %4 : vector<8x128xi32> to vector<8x128xf32>
    %c0_1 = arith.constant 0 : index
    %c0_2 = arith.constant 0 : index
    %6 = vector.load %arg2[%c0_1, %c0_2] : memref<128x32xf32, #tpu.memory_space<vmem>>, vector<128x32xf32>
    %cst = arith.constant dense<0.000000e+00> : vector<8x32xf32>
    %7 = tpu.matmul %5, %6, %cst {dimension_numbers = #tpu.dot_dimension_numbers<[1], [0], [0], [1], [0, 0, 1, 1], [], []>} : vector<8x128xf32>, vector<128x32xf32>, vector<8x32xf32> -> vector<8x32xf32>
    %c0_3 = arith.constant 0 : index
    %c0_4 = arith.constant 0 : index
    %8 = vector.load %arg3[%c0_3, %c0_4] : memref<16x32xf32, #tpu.memory_space<vmem>>, vector<8x32xf32>
    %9 = arith.addf %7, %8 : vector<8x32xf32>
    %10 = tpu.iota {dimensions = array<i32: 0>} : vector<8x8xi32>
    %11 = tpu.iota {dimensions = array<i32: 1>} : vector<8x8xi32>
    %12 = arith.cmpi sle, %11, %10 : vector<8x8xi32>
    %cst_5 = arith.constant 0.000000e+00 : f32
    %cst_6 = arith.constant -1.000000e+30 : f32
    %13 = vector.broadcast %cst_5 : f32 to vector<8x8xf32>
    %14 = vector.broadcast %cst_6 : f32 to vector<8x8xf32>
    %15 = arith.select %12, %13, %14 : vector<8x8xi1>, vector<8x8xf32>
    %c0_7 = arith.constant 0 : index
    %c0_8 = arith.constant 0 : index
    %c0_9 = arith.constant 0 : index
    %16 = vector.load %arg4[%c0_7, %c0_8, %c0_9] : memref<2x1x32xf32, #tpu.memory_space<vmem>>, vector<1x1x32xf32>
    %17 = vector.shape_cast %16 : vector<1x1x32xf32> to vector<1x32xf32>
    %c0_10 = arith.constant 0 : index
    %c0_11 = arith.constant 0 : index
    %c0_12 = arith.constant 0 : index
    %18 = vector.load %arg5[%c0_10, %c0_11, %c0_12] : memref<2x1x32xf32, #tpu.memory_space<vmem>>, vector<1x1x32xf32>
    %19 = vector.shape_cast %18 : vector<1x1x32xf32> to vector<1x32xf32>
    %cst_13 = arith.constant dense<0.000000e+00> : vector<8xf32>
    %20 = vector.multi_reduction <add>, %9, %cst_13 [1] : vector<8x32xf32> to vector<8xf32>
    %21 = vector.shape_cast %20 : vector<8xf32> to vector<8x1xf32>
    %cst_14 = arith.constant 3.200000e+01 : f32
    %22 = vector.broadcast %cst_14 : f32 to vector<8x1xf32>
    %23 = arith.divf %21, %22 : vector<8x1xf32>
    %24 = vector.broadcast %23 : vector<8x1xf32> to vector<8x32xf32>
    %25 = arith.subf %9, %24 : vector<8x32xf32>
    %26 = arith.mulf %25, %25 : vector<8x32xf32>
    %cst_15 = arith.constant dense<0.000000e+00> : vector<8xf32>
    %27 = vector.multi_reduction <add>, %26, %cst_15 [1] : vector<8x32xf32> to vector<8xf32>
    %28 = vector.shape_cast %27 : vector<8xf32> to vector<8x1xf32>
    %cst_16 = arith.constant 3.200000e+01 : f32
    %29 = vector.broadcast %cst_16 : f32 to vector<8x1xf32>
    %30 = arith.divf %28, %29 : vector<8x1xf32>
    %31 = vector.broadcast %23 : vector<8x1xf32> to vector<8x32xf32>
    %32 = arith.subf %9, %31 : vector<8x32xf32>
    %cst_17 = arith.constant 9.99999974E-6 : f32
    %33 = vector.broadcast %cst_17 : f32 to vector<8x1xf32>
    %34 = arith.addf %30, %33 : vector<8x1xf32>
    %35 = math.rsqrt %34 : vector<8x1xf32>
    %36 = vector.broadcast %35 : vector<8x1xf32> to vector<8x32xf32>
    %37 = arith.mulf %32, %36 : vector<8x32xf32>
    %38 = vector.broadcast %17 : vector<1x32xf32> to vector<8x32xf32>
    %39 = arith.mulf %37, %38 : vector<8x32xf32>
    %40 = vector.broadcast %19 : vector<1x32xf32> to vector<8x32xf32>
    %41 = arith.addf %39, %40 : vector<8x32xf32>
    %42 = arith.truncf %41 : vector<8x32xf32> to vector<8x32xbf16>
    %43 = vector.shape_cast %42 : vector<8x32xbf16> to vector<1x8x32xbf16>
    %44 = vector.shape_cast %43 : vector<1x8x32xbf16> to vector<1x8x32xbf16>
    %45 = vector.broadcast %44 : vector<1x8x32xbf16> to vector<12x8x32xbf16>
    %c0_18 = arith.constant 0 : index
    %c0_19 = arith.constant 0 : index
    %c0_20 = arith.constant 0 : index
    %c0_21 = arith.constant 0 : index
    %46 = vector.load %arg6[%c0_18, %c0_19, %c0_20, %c0_21] : memref<2x12x32x8xbf16, #tpu.memory_space<vmem>>, vector<1x12x32x8xbf16>
    %47 = vector.shape_cast %46 : vector<1x12x32x8xbf16> to vector<12x32x8xbf16>
    %cst_22 = arith.constant dense<0.000000e+00> : vector<12x8x8xf32>
    %48 = tpu.matmul %45, %47, %cst_22 {dimension_numbers = #tpu.dot_dimension_numbers<[2], [1], [1], [2], [0, 0, 0, 1, 1, 2], [0], [0]>} : vector<12x8x32xbf16>, vector<12x32x8xbf16>, vector<12x8x8xf32> -> vector<12x8x8xf32>
    %c0_23 = arith.constant 0 : index
    %c0_24 = arith.constant 0 : index
    %c0_25 = arith.constant 0 : index
    %c0_26 = arith.constant 0 : index
    %49 = vector.load %arg7[%c0_23, %c0_24, %c0_25, %c0_26] : memref<2x12x1x8xf32, #tpu.memory_space<vmem>>, vector<1x12x1x8xf32>
    %50 = vector.shape_cast %49 : vector<1x12x1x8xf32> to vector<12x1x8xf32>
    %51 = vector.broadcast %50 : vector<12x1x8xf32> to vector<12x8x8xf32>
    %52 = arith.addf %48, %51 : vector<12x8x8xf32>
    %53 = vector.extract_strided_slice %52 {offsets = [0, 0, 0], sizes = [4, 8, 8], strides = [1, 1, 1]} : vector<12x8x8xf32> to vector<4x8x8xf32>
    %54 = vector.extract_strided_slice %52 {offsets = [4, 0, 0], sizes = [4, 8, 8], strides = [1, 1, 1]} : vector<12x8x8xf32> to vector<4x8x8xf32>
    %55 = vector.extract_strided_slice %52 {offsets = [8, 0, 0], sizes = [4, 8, 8], strides = [1, 1, 1]} : vector<12x8x8xf32> to vector<4x8x8xf32>
    %cst_27 = arith.constant dense<0.000000e+00> : vector<4x8x8xf32>
    %56 = tpu.matmul %53, %54, %cst_27 {dimension_numbers = #tpu.dot_dimension_numbers<[2], [2], [1], [1], [0, 0, 0, 1, 1, 1], [0], [0]>} : vector<4x8x8xf32>, vector<4x8x8xf32>, vector<4x8x8xf32> -> vector<4x8x8xf32>
    %57 = vector.shape_cast %15 : vector<8x8xf32> to vector<1x8x8xf32>
    %58 = vector.broadcast %57 : vector<1x8x8xf32> to vector<4x8x8xf32>
    %59 = arith.addf %56, %58 : vector<4x8x8xf32>
    %cst_28 = arith.constant dense<0xFF800000> : vector<4x8xf32>
    %60 = vector.multi_reduction <maximumf>, %59, %cst_28 [2] : vector<4x8x8xf32> to vector<4x8xf32>
    %61 = vector.shape_cast %60 : vector<4x8xf32> to vector<4x8x1xf32>
    %62 = vector.broadcast %61 : vector<4x8x1xf32> to vector<4x8x8xf32>
    %63 = arith.subf %59, %62 : vector<4x8x8xf32>
    %64 = math.exp %63 : vector<4x8x8xf32>
    %cst_29 = arith.constant dense<0.000000e+00> : vector<4x8xf32>
    %65 = vector.multi_reduction <add>, %64, %cst_29 [2] : vector<4x8x8xf32> to vector<4x8xf32>
    %66 = vector.shape_cast %65 : vector<4x8xf32> to vector<4x8x1xf32>
    %67 = tpu.reciprocal %66 {approx = true} : vector<4x8x1xf32> -> vector<4x8x1xf32>
    %68 = vector.broadcast %67 : vector<4x8x1xf32> to vector<4x8x8xf32>
    %69 = arith.mulf %64, %68 : vector<4x8x8xf32>
    %cst_30 = arith.constant dense<0.000000e+00> : vector<4x8x8xf32>
    %70 = tpu.matmul %69, %55, %cst_30 {dimension_numbers = #tpu.dot_dimension_numbers<[2], [1], [1], [2], [0, 0, 0, 1, 1, 2], [0], [0]>} : vector<4x8x8xf32>, vector<4x8x8xf32>, vector<4x8x8xf32> -> vector<4x8x8xf32>
    %71 = arith.truncf %70 : vector<4x8x8xf32> to vector<4x8x8xbf16>
    %c0_31 = arith.constant 0 : index
    %c0_32 = arith.constant 0 : index
    %c0_33 = arith.constant 0 : index
    %c0_34 = arith.constant 0 : index
    %72 = vector.load %arg8[%c0_31, %c0_32, %c0_33, %c0_34] : memref<2x4x8x32xbf16, #tpu.memory_space<vmem>>, vector<1x4x8x32xbf16>
    %73 = vector.shape_cast %72 : vector<1x4x8x32xbf16> to vector<4x8x32xbf16>
    %cst_35 = arith.constant dense<0.000000e+00> : vector<4x8x32xf32>
    %74 = tpu.matmul %71, %73, %cst_35 {dimension_numbers = #tpu.dot_dimension_numbers<[2], [1], [1], [2], [0, 0, 0, 1, 1, 2], [0], [0]>} : vector<4x8x8xbf16>, vector<4x8x32xbf16>, vector<4x8x32xf32> -> vector<4x8x32xf32>
    %cst_36 = arith.constant dense<0.000000e+00> : vector<8x32xf32>
    %75 = vector.multi_reduction <add>, %74, %cst_36 [0] : vector<4x8x32xf32> to vector<8x32xf32>
    %76 = arith.addf %9, %75 : vector<8x32xf32>
    %c0_37 = arith.constant 0 : index
    %c0_38 = arith.constant 0 : index
    %c0_39 = arith.constant 0 : index
    %77 = vector.load %arg9[%c0_37, %c0_38, %c0_39] : memref<2x1x32xf32, #tpu.memory_space<vmem>>, vector<1x1x32xf32>
    %78 = vector.shape_cast %77 : vector<1x1x32xf32> to vector<1x32xf32>
    %79 = vector.broadcast %78 : vector<1x32xf32> to vector<8x32xf32>
    %80 = arith.addf %76, %79 : vector<8x32xf32>
    %c0_40 = arith.constant 0 : index
    %c0_41 = arith.constant 0 : index
    %c0_42 = arith.constant 0 : index
    %81 = vector.load %arg10[%c0_40, %c0_41, %c0_42] : memref<2x1x32xf32, #tpu.memory_space<vmem>>, vector<1x1x32xf32>
    %82 = vector.shape_cast %81 : vector<1x1x32xf32> to vector<1x32xf32>
    %c0_43 = arith.constant 0 : index
    %c0_44 = arith.constant 0 : index
    %c0_45 = arith.constant 0 : index
    %83 = vector.load %arg11[%c0_43, %c0_44, %c0_45] : memref<2x1x32xf32, #tpu.memory_space<vmem>>, vector<1x1x32xf32>
    %84 = vector.shape_cast %83 : vector<1x1x32xf32> to vector<1x32xf32>
    %cst_46 = arith.constant dense<0.000000e+00> : vector<8xf32>
    %85 = vector.multi_reduction <add>, %80, %cst_46 [1] : vector<8x32xf32> to vector<8xf32>
    %86 = vector.shape_cast %85 : vector<8xf32> to vector<8x1xf32>
    %cst_47 = arith.constant 3.200000e+01 : f32
    %87 = vector.broadcast %cst_47 : f32 to vector<8x1xf32>
    %88 = arith.divf %86, %87 : vector<8x1xf32>
    %89 = vector.broadcast %88 : vector<8x1xf32> to vector<8x32xf32>
    %90 = arith.subf %80, %89 : vector<8x32xf32>
    %91 = arith.mulf %90, %90 : vector<8x32xf32>
    %cst_48 = arith.constant dense<0.000000e+00> : vector<8xf32>
    %92 = vector.multi_reduction <add>, %91, %cst_48 [1] : vector<8x32xf32> to vector<8xf32>
    %93 = vector.shape_cast %92 : vector<8xf32> to vector<8x1xf32>
    %cst_49 = arith.constant 3.200000e+01 : f32
    %94 = vector.broadcast %cst_49 : f32 to vector<8x1xf32>
    %95 = arith.divf %93, %94 : vector<8x1xf32>
    %96 = vector.broadcast %88 : vector<8x1xf32> to vector<8x32xf32>
    %97 = arith.subf %80, %96 : vector<8x32xf32>
    %cst_50 = arith.constant 9.99999974E-6 : f32
    %98 = vector.broadcast %cst_50 : f32 to vector<8x1xf32>
    %99 = arith.addf %95, %98 : vector<8x1xf32>
    %100 = math.rsqrt %99 : vector<8x1xf32>
    %101 = vector.broadcast %100 : vector<8x1xf32> to vector<8x32xf32>
    %102 = arith.mulf %97, %101 : vector<8x32xf32>
    %103 = vector.broadcast %82 : vector<1x32xf32> to vector<8x32xf32>
    %104 = arith.mulf %102, %103 : vector<8x32xf32>
    %105 = vector.broadcast %84 : vector<1x32xf32> to vector<8x32xf32>
    %106 = arith.addf %104, %105 : vector<8x32xf32>
    %107 = arith.truncf %106 : vector<8x32xf32> to vector<8x32xbf16>
    %c0_51 = arith.constant 0 : index
    %c0_52 = arith.constant 0 : index
    %c0_53 = arith.constant 0 : index
    %108 = vector.load %arg12[%c0_51, %c0_52, %c0_53] : memref<2x32x128xbf16, #tpu.memory_space<vmem>>, vector<1x32x128xbf16>
    %109 = vector.shape_cast %108 : vector<1x32x128xbf16> to vector<32x128xbf16>
    %cst_54 = arith.constant dense<0.000000e+00> : vector<8x128xf32>
    %110 = tpu.matmul %107, %109, %cst_54 {dimension_numbers = #tpu.dot_dimension_numbers<[1], [0], [0], [1], [0, 0, 1, 1], [], []>} : vector<8x32xbf16>, vector<32x128xbf16>, vector<8x128xf32> -> vector<8x128xf32>
    %c0_55 = arith.constant 0 : index
    %c0_56 = arith.constant 0 : index
    %c0_57 = arith.constant 0 : index
    %111 = vector.load %arg13[%c0_55, %c0_56, %c0_57] : memref<2x1x128xf32, #tpu.memory_space<vmem>>, vector<1x1x128xf32>
    %112 = vector.shape_cast %111 : vector<1x1x128xf32> to vector<1x128xf32>
    %113 = vector.broadcast %112 : vector<1x128xf32> to vector<8x128xf32>
    %114 = arith.addf %110, %113 : vector<8x128xf32>
    %cst_58 = arith.constant 5.000000e-01 : f32
    %115 = vector.broadcast %cst_58 : f32 to vector<8x128xf32>
    %116 = arith.mulf %115, %114 : vector<8x128xf32>
    %cst_59 = arith.constant 4.471500e-02 : f32
    %117 = vector.broadcast %cst_59 : f32 to vector<8x128xf32>
    %118 = arith.mulf %117, %114 : vector<8x128xf32>
    %119 = arith.mulf %118, %114 : vector<8x128xf32>
    %120 = arith.mulf %119, %114 : vector<8x128xf32>
    %121 = arith.addf %114, %120 : vector<8x128xf32>
    %cst_60 = arith.constant 0.797884583 : f32
    %122 = vector.broadcast %cst_60 : f32 to vector<8x128xf32>
    %123 = arith.mulf %122, %121 : vector<8x128xf32>
    %124 = math.tanh %123 : vector<8x128xf32>
    %cst_61 = arith.constant 1.000000e+00 : f32
    %125 = vector.broadcast %cst_61 : f32 to vector<8x128xf32>
    %126 = arith.addf %125, %124 : vector<8x128xf32>
    %127 = arith.mulf %116, %126 : vector<8x128xf32>
    %128 = arith.truncf %127 : vector<8x128xf32> to vector<8x128xbf16>
    %c0_62 = arith.constant 0 : index
    %c0_63 = arith.constant 0 : index
    %c0_64 = arith.constant 0 : index
    %129 = vector.load %arg14[%c0_62, %c0_63, %c0_64] : memref<2x128x32xbf16, #tpu.memory_space<vmem>>, vector<1x128x32xbf16>
    %130 = vector.shape_cast %129 : vector<1x128x32xbf16> to vector<128x32xbf16>
    %cst_65 = arith.constant dense<0.000000e+00> : vector<8x32xf32>
    %131 = tpu.matmul %128, %130, %cst_65 {dimension_numbers = #tpu.dot_dimension_numbers<[1], [0], [0], [1], [0, 0, 1, 1], [], []>} : vector<8x128xbf16>, vector<128x32xbf16>, vector<8x32xf32> -> vector<8x32xf32>
    %132 = arith.addf %80, %131 : vector<8x32xf32>
    %c0_66 = arith.constant 0 : index
    %c0_67 = arith.constant 0 : index
    %c0_68 = arith.constant 0 : index
    %133 = vector.load %arg15[%c0_66, %c0_67, %c0_68] : memref<2x1x32xf32, #tpu.memory_space<vmem>>, vector<1x1x32xf32>
    %134 = vector.shape_cast %133 : vector<1x1x32xf32> to vector<1x32xf32>
    %135 = vector.broadcast %134 : vector<1x32xf32> to vector<8x32xf32>
    %136 = arith.addf %132, %135 : vector<8x32xf32>
    %c1 = arith.constant 1 : index
    %c0_69 = arith.constant 0 : index
    %c0_70 = arith.constant 0 : index
    %137 = vector.load %arg4[%c1, %c0_69, %c0_70] : memref<2x1x32xf32, #tpu.memory_space<vmem>>, vector<1x1x32xf32>
    %138 = vector.shape_cast %137 : vector<1x1x32xf32> to vector<1x32xf32>
    %c1_71 = arith.constant 1 : index
    %c0_72 = arith.constant 0 : index
    %c0_73 = arith.constant 0 : index
    %139 = vector.load %arg5[%c1_71, %c0_72, %c0_73] : memref<2x1x32xf32, #tpu.memory_space<vmem>>, vector<1x1x32xf32>
    %140 = vector.shape_cast %139 : vector<1x1x32xf32> to vector<1x32xf32>
    %cst_74 = arith.constant dense<0.000000e+00> : vector<8xf32>
    %141 = vector.multi_reduction <add>, %136, %cst_74 [1] : vector<8x32xf32> to vector<8xf32>
    %142 = vector.shape_cast %141 : vector<8xf32> to vector<8x1xf32>
    %cst_75 = arith.constant 3.200000e+01 : f32
    %143 = vector.broadcast %cst_75 : f32 to vector<8x1xf32>
    %144 = arith.divf %142, %143 : vector<8x1xf32>
    %145 = vector.broadcast %144 : vector<8x1xf32> to vector<8x32xf32>
    %146 = arith.subf %136, %145 : vector<8x32xf32>
    %147 = arith.mulf %146, %146 : vector<8x32xf32>
    %cst_76 = arith.constant dense<0.000000e+00> : vector<8xf32>
    %148 = vector.multi_reduction <add>, %147, %cst_76 [1] : vector<8x32xf32> to vector<8xf32>
    %149 = vector.shape_cast %148 : vector<8xf32> to vector<8x1xf32>
    %cst_77 = arith.constant 3.200000e+01 : f32
    %150 = vector.broadcast %cst_77 : f32 to vector<8x1xf32>
    %151 = arith.divf %149, %150 : vector<8x1xf32>
    %152 = vector.broadcast %144 : vector<8x1xf32> to vector<8x32xf32>
    %153 = arith.subf %136, %152 : vector<8x32xf32>
    %cst_78 = arith.constant 9.99999974E-6 : f32
    %154 = vector.broadcast %cst_78 : f32 to vector<8x1xf32>
    %155 = arith.addf %151, %154 : vector<8x1xf32>
    %156 = math.rsqrt %155 : vector<8x1xf32>
    %157 = vector.broadcast %156 : vector<8x1xf32> to vector<8x32xf32>
    %158 = arith.mulf %153, %157 : vector<8x32xf32>
    %159 = vector.broadcast %138 : vector<1x32xf32> to vector<8x32xf32>
    %160 = arith.mulf %158, %159 : vector<8x32xf32>
    %161 = vector.broadcast %140 : vector<1x32xf32> to vector<8x32xf32>
    %162 = arith.addf %160, %161 : vector<8x32xf32>
    %163 = arith.truncf %162 : vector<8x32xf32> to vector<8x32xbf16>
    %164 = vector.shape_cast %163 : vector<8x32xbf16> to vector<1x8x32xbf16>
    %165 = vector.shape_cast %164 : vector<1x8x32xbf16> to vector<1x8x32xbf16>
    %166 = vector.broadcast %165 : vector<1x8x32xbf16> to vector<12x8x32xbf16>
    %c1_79 = arith.constant 1 : index
    %c0_80 = arith.constant 0 : index
    %c0_81 = arith.constant 0 : index
    %c0_82 = arith.constant 0 : index
    %167 = vector.load %arg6[%c1_79, %c0_80, %c0_81, %c0_82] : memref<2x12x32x8xbf16, #tpu.memory_space<vmem>>, vector<1x12x32x8xbf16>
    %168 = vector.shape_cast %167 : vector<1x12x32x8xbf16> to vector<12x32x8xbf16>
    %cst_83 = arith.constant dense<0.000000e+00> : vector<12x8x8xf32>
    %169 = tpu.matmul %166, %168, %cst_83 {dimension_numbers = #tpu.dot_dimension_numbers<[2], [1], [1], [2], [0, 0, 0, 1, 1, 2], [0], [0]>} : vector<12x8x32xbf16>, vector<12x32x8xbf16>, vector<12x8x8xf32> -> vector<12x8x8xf32>
    %c1_84 = arith.constant 1 : index
    %c0_85 = arith.constant 0 : index
    %c0_86 = arith.constant 0 : index
    %c0_87 = arith.constant 0 : index
    %170 = vector.load %arg7[%c1_84, %c0_85, %c0_86, %c0_87] : memref<2x12x1x8xf32, #tpu.memory_space<vmem>>, vector<1x12x1x8xf32>
    %171 = vector.shape_cast %170 : vector<1x12x1x8xf32> to vector<12x1x8xf32>
    %172 = vector.broadcast %171 : vector<12x1x8xf32> to vector<12x8x8xf32>
    %173 = arith.addf %169, %172 : vector<12x8x8xf32>
    %174 = vector.extract_strided_slice %173 {offsets = [0, 0, 0], sizes = [4, 8, 8], strides = [1, 1, 1]} : vector<12x8x8xf32> to vector<4x8x8xf32>
    %175 = vector.extract_strided_slice %173 {offsets = [4, 0, 0], sizes = [4, 8, 8], strides = [1, 1, 1]} : vector<12x8x8xf32> to vector<4x8x8xf32>
    %176 = vector.extract_strided_slice %173 {offsets = [8, 0, 0], sizes = [4, 8, 8], strides = [1, 1, 1]} : vector<12x8x8xf32> to vector<4x8x8xf32>
    %cst_88 = arith.constant dense<0.000000e+00> : vector<4x8x8xf32>
    %177 = tpu.matmul %174, %175, %cst_88 {dimension_numbers = #tpu.dot_dimension_numbers<[2], [2], [1], [1], [0, 0, 0, 1, 1, 1], [0], [0]>} : vector<4x8x8xf32>, vector<4x8x8xf32>, vector<4x8x8xf32> -> vector<4x8x8xf32>
    %178 = vector.shape_cast %15 : vector<8x8xf32> to vector<1x8x8xf32>
    %179 = vector.broadcast %178 : vector<1x8x8xf32> to vector<4x8x8xf32>
    %180 = arith.addf %177, %179 : vector<4x8x8xf32>
    %cst_89 = arith.constant dense<0xFF800000> : vector<4x8xf32>
    %181 = vector.multi_reduction <maximumf>, %180, %cst_89 [2] : vector<4x8x8xf32> to vector<4x8xf32>
    %182 = vector.shape_cast %181 : vector<4x8xf32> to vector<4x8x1xf32>
    %183 = vector.broadcast %182 : vector<4x8x1xf32> to vector<4x8x8xf32>
    %184 = arith.subf %180, %183 : vector<4x8x8xf32>
    %185 = math.exp %184 : vector<4x8x8xf32>
    %cst_90 = arith.constant dense<0.000000e+00> : vector<4x8xf32>
    %186 = vector.multi_reduction <add>, %185, %cst_90 [2] : vector<4x8x8xf32> to vector<4x8xf32>
    %187 = vector.shape_cast %186 : vector<4x8xf32> to vector<4x8x1xf32>
    %188 = tpu.reciprocal %187 {approx = true} : vector<4x8x1xf32> -> vector<4x8x1xf32>
    %189 = vector.broadcast %188 : vector<4x8x1xf32> to vector<4x8x8xf32>
    %190 = arith.mulf %185, %189 : vector<4x8x8xf32>
    %cst_91 = arith.constant dense<0.000000e+00> : vector<4x8x8xf32>
    %191 = tpu.matmul %190, %176, %cst_91 {dimension_numbers = #tpu.dot_dimension_numbers<[2], [1], [1], [2], [0, 0, 0, 1, 1, 2], [0], [0]>} : vector<4x8x8xf32>, vector<4x8x8xf32>, vector<4x8x8xf32> -> vector<4x8x8xf32>
    %192 = arith.truncf %191 : vector<4x8x8xf32> to vector<4x8x8xbf16>
    %c1_92 = arith.constant 1 : index
    %c0_93 = arith.constant 0 : index
    %c0_94 = arith.constant 0 : index
    %c0_95 = arith.constant 0 : index
    %193 = vector.load %arg8[%c1_92, %c0_93, %c0_94, %c0_95] : memref<2x4x8x32xbf16, #tpu.memory_space<vmem>>, vector<1x4x8x32xbf16>
    %194 = vector.shape_cast %193 : vector<1x4x8x32xbf16> to vector<4x8x32xbf16>
    %cst_96 = arith.constant dense<0.000000e+00> : vector<4x8x32xf32>
    %195 = tpu.matmul %192, %194, %cst_96 {dimension_numbers = #tpu.dot_dimension_numbers<[2], [1], [1], [2], [0, 0, 0, 1, 1, 2], [0], [0]>} : vector<4x8x8xbf16>, vector<4x8x32xbf16>, vector<4x8x32xf32> -> vector<4x8x32xf32>
    %cst_97 = arith.constant dense<0.000000e+00> : vector<8x32xf32>
    %196 = vector.multi_reduction <add>, %195, %cst_97 [0] : vector<4x8x32xf32> to vector<8x32xf32>
    %197 = arith.addf %136, %196 : vector<8x32xf32>
    %c1_98 = arith.constant 1 : index
    %c0_99 = arith.constant 0 : index
    %c0_100 = arith.constant 0 : index
    %198 = vector.load %arg9[%c1_98, %c0_99, %c0_100] : memref<2x1x32xf32, #tpu.memory_space<vmem>>, vector<1x1x32xf32>
    %199 = vector.shape_cast %198 : vector<1x1x32xf32> to vector<1x32xf32>
    %200 = vector.broadcast %199 : vector<1x32xf32> to vector<8x32xf32>
    %201 = arith.addf %197, %200 : vector<8x32xf32>
    %c1_101 = arith.constant 1 : index
    %c0_102 = arith.constant 0 : index
    %c0_103 = arith.constant 0 : index
    %202 = vector.load %arg10[%c1_101, %c0_102, %c0_103] : memref<2x1x32xf32, #tpu.memory_space<vmem>>, vector<1x1x32xf32>
    %203 = vector.shape_cast %202 : vector<1x1x32xf32> to vector<1x32xf32>
    %c1_104 = arith.constant 1 : index
    %c0_105 = arith.constant 0 : index
    %c0_106 = arith.constant 0 : index
    %204 = vector.load %arg11[%c1_104, %c0_105, %c0_106] : memref<2x1x32xf32, #tpu.memory_space<vmem>>, vector<1x1x32xf32>
    %205 = vector.shape_cast %204 : vector<1x1x32xf32> to vector<1x32xf32>
    %cst_107 = arith.constant dense<0.000000e+00> : vector<8xf32>
    %206 = vector.multi_reduction <add>, %201, %cst_107 [1] : vector<8x32xf32> to vector<8xf32>
    %207 = vector.shape_cast %206 : vector<8xf32> to vector<8x1xf32>
    %cst_108 = arith.constant 3.200000e+01 : f32
    %208 = vector.broadcast %cst_108 : f32 to vector<8x1xf32>
    %209 = arith.divf %207, %208 : vector<8x1xf32>
    %210 = vector.broadcast %209 : vector<8x1xf32> to vector<8x32xf32>
    %211 = arith.subf %201, %210 : vector<8x32xf32>
    %212 = arith.mulf %211, %211 : vector<8x32xf32>
    %cst_109 = arith.constant dense<0.000000e+00> : vector<8xf32>
    %213 = vector.multi_reduction <add>, %212, %cst_109 [1] : vector<8x32xf32> to vector<8xf32>
    %214 = vector.shape_cast %213 : vector<8xf32> to vector<8x1xf32>
    %cst_110 = arith.constant 3.200000e+01 : f32
    %215 = vector.broadcast %cst_110 : f32 to vector<8x1xf32>
    %216 = arith.divf %214, %215 : vector<8x1xf32>
    %217 = vector.broadcast %209 : vector<8x1xf32> to vector<8x32xf32>
    %218 = arith.subf %201, %217 : vector<8x32xf32>
    %cst_111 = arith.constant 9.99999974E-6 : f32
    %219 = vector.broadcast %cst_111 : f32 to vector<8x1xf32>
    %220 = arith.addf %216, %219 : vector<8x1xf32>
    %221 = math.rsqrt %220 : vector<8x1xf32>
    %222 = vector.broadcast %221 : vector<8x1xf32> to vector<8x32xf32>
    %223 = arith.mulf %218, %222 : vector<8x32xf32>
    %224 = vector.broadcast %203 : vector<1x32xf32> to vector<8x32xf32>
    %225 = arith.mulf %223, %224 : vector<8x32xf32>
    %226 = vector.broadcast %205 : vector<1x32xf32> to vector<8x32xf32>
    %227 = arith.addf %225, %226 : vector<8x32xf32>
    %228 = arith.truncf %227 : vector<8x32xf32> to vector<8x32xbf16>
    %c1_112 = arith.constant 1 : index
    %c0_113 = arith.constant 0 : index
    %c0_114 = arith.constant 0 : index
    %229 = vector.load %arg12[%c1_112, %c0_113, %c0_114] : memref<2x32x128xbf16, #tpu.memory_space<vmem>>, vector<1x32x128xbf16>
    %230 = vector.shape_cast %229 : vector<1x32x128xbf16> to vector<32x128xbf16>
    %cst_115 = arith.constant dense<0.000000e+00> : vector<8x128xf32>
    %231 = tpu.matmul %228, %230, %cst_115 {dimension_numbers = #tpu.dot_dimension_numbers<[1], [0], [0], [1], [0, 0, 1, 1], [], []>} : vector<8x32xbf16>, vector<32x128xbf16>, vector<8x128xf32> -> vector<8x128xf32>
    %c1_116 = arith.constant 1 : index
    %c0_117 = arith.constant 0 : index
    %c0_118 = arith.constant 0 : index
    %232 = vector.load %arg13[%c1_116, %c0_117, %c0_118] : memref<2x1x128xf32, #tpu.memory_space<vmem>>, vector<1x1x128xf32>
    %233 = vector.shape_cast %232 : vector<1x1x128xf32> to vector<1x128xf32>
    %234 = vector.broadcast %233 : vector<1x128xf32> to vector<8x128xf32>
    %235 = arith.addf %231, %234 : vector<8x128xf32>
    %cst_119 = arith.constant 5.000000e-01 : f32
    %236 = vector.broadcast %cst_119 : f32 to vector<8x128xf32>
    %237 = arith.mulf %236, %235 : vector<8x128xf32>
    %cst_120 = arith.constant 4.471500e-02 : f32
    %238 = vector.broadcast %cst_120 : f32 to vector<8x128xf32>
    %239 = arith.mulf %238, %235 : vector<8x128xf32>
    %240 = arith.mulf %239, %235 : vector<8x128xf32>
    %241 = arith.mulf %240, %235 : vector<8x128xf32>
    %242 = arith.addf %235, %241 : vector<8x128xf32>
    %cst_121 = arith.constant 0.797884583 : f32
    %243 = vector.broadcast %cst_121 : f32 to vector<8x128xf32>
    %244 = arith.mulf %243, %242 : vector<8x128xf32>
    %245 = math.tanh %244 : vector<8x128xf32>
    %cst_122 = arith.constant 1.000000e+00 : f32
    %246 = vector.broadcast %cst_122 : f32 to vector<8x128xf32>
    %247 = arith.addf %246, %245 : vector<8x128xf32>
    %248 = arith.mulf %237, %247 : vector<8x128xf32>
    %249 = arith.truncf %248 : vector<8x128xf32> to vector<8x128xbf16>
    %c1_123 = arith.constant 1 : index
    %c0_124 = arith.constant 0 : index
    %c0_125 = arith.constant 0 : index
    %250 = vector.load %arg14[%c1_123, %c0_124, %c0_125] : memref<2x128x32xbf16, #tpu.memory_space<vmem>>, vector<1x128x32xbf16>
    %251 = vector.shape_cast %250 : vector<1x128x32xbf16> to vector<128x32xbf16>
    %cst_126 = arith.constant dense<0.000000e+00> : vector<8x32xf32>
    %252 = tpu.matmul %249, %251, %cst_126 {dimension_numbers = #tpu.dot_dimension_numbers<[1], [0], [0], [1], [0, 0, 1, 1], [], []>} : vector<8x128xbf16>, vector<128x32xbf16>, vector<8x32xf32> -> vector<8x32xf32>
    %253 = arith.addf %201, %252 : vector<8x32xf32>
    %c1_127 = arith.constant 1 : index
    %c0_128 = arith.constant 0 : index
    %c0_129 = arith.constant 0 : index
    %254 = vector.load %arg15[%c1_127, %c0_128, %c0_129] : memref<2x1x32xf32, #tpu.memory_space<vmem>>, vector<1x1x32xf32>
    %255 = vector.shape_cast %254 : vector<1x1x32xf32> to vector<1x32xf32>
    %256 = vector.broadcast %255 : vector<1x32xf32> to vector<8x32xf32>
    %257 = arith.addf %253, %256 : vector<8x32xf32>
    %c0_130 = arith.constant 0 : index
    %c0_131 = arith.constant 0 : index
    %258 = vector.load %arg16[%c0_130, %c0_131] : memref<1x32xf32, #tpu.memory_space<vmem>>, vector<1x32xf32>
    %c0_132 = arith.constant 0 : index
    %c0_133 = arith.constant 0 : index
    %259 = vector.load %arg17[%c0_132, %c0_133] : memref<1x32xf32, #tpu.memory_space<vmem>>, vector<1x32xf32>
    %cst_134 = arith.constant dense<0.000000e+00> : vector<8xf32>
    %260 = vector.multi_reduction <add>, %257, %cst_134 [1] : vector<8x32xf32> to vector<8xf32>
    %261 = vector.shape_cast %260 : vector<8xf32> to vector<8x1xf32>
    %cst_135 = arith.constant 3.200000e+01 : f32
    %262 = vector.broadcast %cst_135 : f32 to vector<8x1xf32>
    %263 = arith.divf %261, %262 : vector<8x1xf32>
    %264 = vector.broadcast %263 : vector<8x1xf32> to vector<8x32xf32>
    %265 = arith.subf %257, %264 : vector<8x32xf32>
    %266 = arith.mulf %265, %265 : vector<8x32xf32>
    %cst_136 = arith.constant dense<0.000000e+00> : vector<8xf32>
    %267 = vector.multi_reduction <add>, %266, %cst_136 [1] : vector<8x32xf32> to vector<8xf32>
    %268 = vector.shape_cast %267 : vector<8xf32> to vector<8x1xf32>
    %cst_137 = arith.constant 3.200000e+01 : f32
    %269 = vector.broadcast %cst_137 : f32 to vector<8x1xf32>
    %270 = arith.divf %268, %269 : vector<8x1xf32>
    %271 = vector.broadcast %263 : vector<8x1xf32> to vector<8x32xf32>
    %272 = arith.subf %257, %271 : vector<8x32xf32>
    %cst_138 = arith.constant 9.99999974E-6 : f32
    %273 = vector.broadcast %cst_138 : f32 to vector<8x1xf32>
    %274 = arith.addf %270, %273 : vector<8x1xf32>
    %275 = math.rsqrt %274 : vector<8x1xf32>
    %276 = vector.broadcast %275 : vector<8x1xf32> to vector<8x32xf32>
    %277 = arith.mulf %272, %276 : vector<8x32xf32>
    %278 = vector.broadcast %258 : vector<1x32xf32> to vector<8x32xf32>
    %279 = arith.mulf %277, %278 : vector<8x32xf32>
    %280 = vector.broadcast %259 : vector<1x32xf32> to vector<8x32xf32>
    %281 = arith.addf %279, %280 : vector<8x32xf32>
    %282 = arith.truncf %281 : vector<8x32xf32> to vector<8x32xbf16>
    %c0_139 = arith.constant 0 : index
    %c0_140 = arith.constant 0 : index
    %283 = vector.load %arg18[%c0_139, %c0_140] : memref<32x128xbf16, #tpu.memory_space<vmem>>, vector<32x128xbf16>
    %cst_141 = arith.constant dense<0.000000e+00> : vector<8x128xf32>
    %284 = tpu.matmul %282, %283, %cst_141 {dimension_numbers = #tpu.dot_dimension_numbers<[1], [0], [0], [1], [0, 0, 1, 1], [], []>} : vector<8x32xbf16>, vector<32x128xbf16>, vector<8x128xf32> -> vector<8x128xf32>
    %c0_142 = arith.constant 0 : index
    %c0_143 = arith.constant 0 : index
    %285 = vector.load %arg19[%c0_142, %c0_143] : memref<8x128xf32, #tpu.memory_space<vmem>>, vector<8x128xf32>
    tpu.vector_store %arg19[%c0_142, %c0_143], %284 {strides = array<i32>} : memref<8x128xf32, #tpu.memory_space<vmem>>, vector<8x128xf32>,
    return
  }
  func.func @transform_0(%arg0: i32) -> (i32, i32) {
    %c0_i32 = arith.constant 0 : i32
    %c0_i32_0 = arith.constant 0 : i32
    return %arg0, %c0_i32 : i32, i32
  }
  func.func @transform_1(%arg0: i32) -> (i32, i32) {
    %c0_i32 = arith.constant 0 : i32
    %c0_i32_0 = arith.constant 0 : i32
    %c0_i32_1 = arith.constant 0 : i32
    return %c0_i32, %c0_i32_0 : i32, i32
  }
  func.func @transform_2(%arg0: i32) -> (i32, i32) {
    %c0_i32 = arith.constant 0 : i32
    %c0_i32_0 = arith.constant 0 : i32
    %c0_i32_1 = arith.constant 0 : i32
    return %c0_i32, %c0_i32_0 : i32, i32
  }
  func.func @transform_3(%arg0: i32) -> (i32, i32, i32) {
    %c0_i32 = arith.constant 0 : i32
    %c0_i32_0 = arith.constant 0 : i32
    %c0_i32_1 = arith.constant 0 : i32
    %c0_i32_2 = arith.constant 0 : i32
    return %c0_i32, %c0_i32_0, %c0_i32_1 : i32, i32, i32
  }
  func.func @transform_4(%arg0: i32) -> (i32, i32, i32) {
    %c0_i32 = arith.constant 0 : i32
    %c0_i32_0 = arith.constant 0 : i32
    %c0_i32_1 = arith.constant 0 : i32
    %c0_i32_2 = arith.constant 0 : i32
    return %c0_i32, %c0_i32_0, %c0_i32_1 : i32, i32, i32
  }
  func.func @transform_5(%arg0: i32) -> (i32, i32, i32, i32) {
    %c0_i32 = arith.constant 0 : i32
    %c0_i32_0 = arith.constant 0 : i32
    %c0_i32_1 = arith.constant 0 : i32
    %c0_i32_2 = arith.constant 0 : i32
    %c0_i32_3 = arith.constant 0 : i32
    return %c0_i32, %c0_i32_0, %c0_i32_1, %c0_i32_2 : i32, i32, i32, i32
  }
  func.func @transform_6(%arg0: i32) -> (i32, i32, i32, i32) {
    %c0_i32 = arith.constant 0 : i32
    %c0_i32_0 = arith.constant 0 : i32
    %c0_i32_1 = arith.constant 0 : i32
    %c0_i32_2 = arith.constant 0 : i32
    %c0_i32_3 = arith.constant 0 : i32
    return %c0_i32, %c0_i32_0, %c0_i32_1, %c0_i32_2 : i32, i32, i32, i32
  }
  func.func @transform_7(%arg0: i32) -> (i32, i32, i32, i32) {
    %c0_i32 = arith.constant 0 : i32
    %c0_i32_0 = arith.constant 0 : i32
    %c0_i32_1 = arith.constant 0 : i32
    %c0_i32_2 = arith.constant 0 : i32
    %c0_i32_3 = arith.constant 0 : i32
    return %c0_i32, %c0_i32_0, %c0_i32_1, %c0_i32_2 : i32, i32, i32, i32
  }
  func.func @transform_8(%arg0: i32) -> (i32, i32, i32) {
    %c0_i32 = arith.constant 0 : i32
    %c0_i32_0 = arith.constant 0 : i32
    %c0_i32_1 = arith.constant 0 : i32
    %c0_i32_2 = arith.constant 0 : i32
    return %c0_i32, %c0_i32_0, %c0_i32_1 : i32, i32, i32
  }
  func.func @transform_9(%arg0: i32) -> (i32, i32, i32) {
    %c0_i32 = arith.constant 0 : i32
    %c0_i32_0 = arith.constant 0 : i32
    %c0_i32_1 = arith.constant 0 : i32
    %c0_i32_2 = arith.constant 0 : i32
    return %c0_i32, %c0_i32_0, %c0_i32_1 : i32, i32, i32
  }
  func.func @transform_10(%arg0: i32) -> (i32, i32, i32) {
    %c0_i32 = arith.constant 0 : i32
    %c0_i32_0 = arith.constant 0 : i32
    %c0_i32_1 = arith.constant 0 : i32
    %c0_i32_2 = arith.constant 0 : i32
    return %c0_i32, %c0_i32_0, %c0_i32_1 : i32, i32, i32
  }
  func.func @transform_11(%arg0: i32) -> (i32, i32, i32) {
    %c0_i32 = arith.constant 0 : i32
    %c0_i32_0 = arith.constant 0 : i32
    %c0_i32_1 = arith.constant 0 : i32
    %c0_i32_2 = arith.constant 0 : i32
    return %c0_i32, %c0_i32_0, %c0_i32_1 : i32, i32, i32
  }
  func.func @transform_12(%arg0: i32) -> (i32, i32, i32) {
    %c0_i32 = arith.constant 0 : i32
    %c0_i32_0 = arith.constant 0 : i32
    %c0_i32_1 = arith.constant 0 : i32
    %c0_i32_2 = arith.constant 0 : i32
    return %c0_i32, %c0_i32_0, %c0_i32_1 : i32, i32, i32
  }
  func.func @transform_13(%arg0: i32) -> (i32, i32, i32) {
    %c0_i32 = arith.constant 0 : i32
    %c0_i32_0 = arith.constant 0 : i32
    %c0_i32_1 = arith.constant 0 : i32
    %c0_i32_2 = arith.constant 0 : i32
    return %c0_i32, %c0_i32_0, %c0_i32_1 : i32, i32, i32
  }
  func.func @transform_14(%arg0: i32) -> (i32, i32, i32) {
    %c0_i32 = arith.constant 0 : i32
    %c0_i32_0 = arith.constant 0 : i32
    %c0_i32_1 = arith.constant 0 : i32
    %c0_i32_2 = arith.constant 0 : i32
    return %c0_i32, %c0_i32_0, %c0_i32_1 : i32, i32, i32
  }
  func.func @transform_15(%arg0: i32) -> (i32, i32) {
    %c0_i32 = arith.constant 0 : i32
    %c0_i32_0 = arith.constant 0 : i32
    %c0_i32_1 = arith.constant 0 : i32
    return %c0_i32, %c0_i32_0 : i32, i32
  }
  func.func @transform_16(%arg0: i32) -> (i32, i32) {
    %c0_i32 = arith.constant 0 : i32
    %c0_i32_0 = arith.constant 0 : i32
    %c0_i32_1 = arith.constant 0 : i32
    return %c0_i32, %c0_i32_0 : i32, i32
  }
  func.func @transform_17(%arg0: i32) -> (i32, i32) {
    %c0_i32 = arith.constant 0 : i32
    %c0_i32_0 = arith.constant 0 : i32
    %c0_i32_1 = arith.constant 0 : i32
    return %c0_i32, %c0_i32_0 : i32, i32
  }
  func.func @transform_18(%arg0: i32) -> (i32, i32) {
    %c0_i32 = arith.constant 0 : i32
    %c0_i32_0 = arith.constant 0 : i32
    return %arg0, %c0_i32 : i32, i32
  }
}

</mosaic_0001>

<llo_original>
// kernel: gpt_forward.1
$region0: #{gpt_forward.1}
  #allocation0 [shape = 'u32[]', space=smem, size = 0x4, offset = 0x4, fixed_abs, tag = 'smem constant byte address 0x4 - core index']
  #allocation1 [shape = 'u32[144,128]{1,0:T(1,128)}', space=vmem, size = 0x12000, scoped, tag = 'internal scratch']
  %s0 = inlined_call_operand.vmem [shape: s32[16,1], index: 0, kind: input, shape index: {}]
  %s1 = inlined_call_operand.vmem [shape: f32[128,32], index: 1, kind: input, shape index: {}]
  %s2 = inlined_call_operand.vmem [shape: f32[16,32], index: 2, kind: input, shape index: {}]
  %s3 = inlined_call_operand.vmem [shape: f32[2,1,32], index: 3, kind: input, shape index: {}]
  %s4 = inlined_call_operand.vmem [shape: f32[2,1,32], index: 4, kind: input, shape index: {}]
  %s5 = inlined_call_operand.vmem [shape: bf16[2,12,32,8], index: 5, kind: input, shape index: {}]
  %s6 = inlined_call_operand.vmem [shape: f32[2,12,1,8], index: 6, kind: input, shape index: {}]
  %s7 = inlined_call_operand.vmem [shape: bf16[2,4,8,32], index: 7, kind: input, shape index: {}]
  %s8 = inlined_call_operand.vmem [shape: f32[2,1,32], index: 8, kind: input, shape index: {}]
  %s9 = inlined_call_operand.vmem [shape: f32[2,1,32], index: 9, kind: input, shape index: {}]
  %s10 = inlined_call_operand.vmem [shape: f32[2,1,32], index: 10, kind: input, shape index: {}]
  %s11 = inlined_call_operand.vmem [shape: bf16[2,32,128], index: 11, kind: input, shape index: {}]
  %s12 = inlined_call_operand.vmem [shape: f32[2,1,128], index: 12, kind: input, shape index: {}]
  %s13 = inlined_call_operand.vmem [shape: bf16[2,128,32], index: 13, kind: input, shape index: {}]
  %s14 = inlined_call_operand.vmem [shape: f32[2,1,32], index: 14, kind: input, shape index: {}]
  %s15 = inlined_call_operand.vmem [shape: f32[1,32], index: 15, kind: input, shape index: {}]
  %s16 = inlined_call_operand.vmem [shape: f32[1,32], index: 16, kind: input, shape index: {}]
  %s17 = inlined_call_operand.vmem [shape: bf16[32,128], index: 17, kind: input, shape index: {}]
  %s18 = inlined_call_operand.hbm [shape: f32[16,128], index: 18, kind: output, shape index: {}]
  %s19 = sld [smem:[#allocation0]]
  $region105: #{gpt_forward.1} parent=0
    _
  %s21 = ssub.s32 1, %s19
  %s22 = scalar_select 0, %s21, %s19
  $region1: #{gpt_forward.1} parent=0
    #allocation2 [shape = 'u8[8192]{0}', space=vmem, size = 0x2000, scoped, tag = 'output window, operand 0']
    #allocation3 [shape = 's32[2]{0}', space=sflag, size = 0x8, scoped, tag = 'scoped memory for gpt_forward.1']
    %23 = vsyncpa [#allocation3], 0
    %s24 = scalar_lea.sflag [#allocation3], 1
    %25 = vsyncpa %s24, 0
    loop: start=0, step=1, limit=4
    $region2: #{gpt_forward.1} parent=1 // loop_pre_header
      _
    $region3: #{gpt_forward.1} parent=1 // loop_header
      %s27 = sphi 0, %s31
      %p28 = scmp.ge.s32.totalorder %s27, 4
      %s37 = sphi 0, %s39
      %s40 = sphi 0, %s37
      %s41 = sphi 0, %s40
      %s57 = sphi 0, %s41
      %s61 = sphi 0, %s61
      %s63 = sphi 0, %s61
      %s64 = sphi 0, %s63
      %s78 = sphi 0, %s64
      %s82 = sphi 0, %s82
      %s84 = sphi 0, %s82
      %s85 = sphi 0, %s84
      %s99 = sphi 0, %s85
      %s103 = sphi 0, %s103
      %s105 = sphi 0, %s103
      %s106 = sphi 0, %s105
      %s120 = sphi 0, %s106
      %s124 = sphi 0, %s124
      %s126 = sphi 0, %s124
      %s127 = sphi 0, %s126
      %s141 = sphi 0, %s127
      %s145 = sphi 0, %s145
      %s147 = sphi 0, %s145
      %s148 = sphi 0, %s147
      %s162 = sphi 0, %s148
      %s166 = sphi 0, %s166
      %s168 = sphi 0, %s166
      %s169 = sphi 0, %s168
      %s183 = sphi 0, %s169
      %s187 = sphi 0, %s187
      %s189 = sphi 0, %s187
      %s190 = sphi 0, %s189
      %s204 = sphi 0, %s190
      %s208 = sphi 0, %s208
      %s210 = sphi 0, %s208
      %s211 = sphi 0, %s210
      %s225 = sphi 0, %s211
      %s229 = sphi 0, %s229
      %s231 = sphi 0, %s229
      %s232 = sphi 0, %s231
      %s246 = sphi 0, %s232
      %s250 = sphi 0, %s250
      %s252 = sphi 0, %s250
      %s253 = sphi 0, %s252
      %s267 = sphi 0, %s253
      %s271 = sphi 0, %s271
      %s273 = sphi 0, %s271
      %s274 = sphi 0, %s273
      %s288 = sphi 0, %s274
      %s292 = sphi 0, %s292
      %s294 = sphi 0, %s292
      %s295 = sphi 0, %s294
      %s309 = sphi 0, %s295
      %s313 = sphi 0, %s313
      %s315 = sphi 0, %s313
      %s316 = sphi 0, %s315
      %s330 = sphi 0, %s316
      %s334 = sphi 0, %s334
      %s336 = sphi 0, %s334
      %s337 = sphi 0, %s336
      %s351 = sphi 0, %s337
      %s355 = sphi 0, %s355
      %s357 = sphi 0, %s355
      %s358 = sphi 0, %s357
      %s372 = sphi 0, %s358
      %s376 = sphi 0, %s376
      %s378 = sphi 0, %s376
      %s379 = sphi 0, %s378
      %s393 = sphi 0, %s379
      %s397 = sphi 0, %s397
      %s399 = sphi 0, %s397
      %s400 = sphi 0, %s399
      %s414 = sphi 0, %s400
      %s420 = sphi 0, %s422
      %s423 = sphi 0, %s420
      %s424 = sphi 0, %s423
      %s440 = sphi 0, %s424
    $region4: #{gpt_forward.1} parent=1 // loop_header_branch
      %30 = sbr.rel (%p28) target = $region8
    $region5: #{gpt_forward.1} parent=1 // loop_body
      %s32 = ssub.s32 %s27, 1
      %s33 = ssub.s32 %s27, 2
      %s34 = sadd.s32 %s27, 1
      %s35 = ssub.s32 %s27, %s34
      %p36 = scmp.eq.s32.totalorder %s35, 0
      %s38 = sadd.s32 %s37, 1
      %s39 = scalar_select %p36, %s37, %s38
      %p42 = pneg %p36
      %p43 = scmp.eq.s32.totalorder %s27, 1
      %p44 = por %p42, %p43
      %p45 = scmp.ne.s32.totalorder %s37, %s40
      %p46 = scmp.eq.s32.totalorder %s27, 0
      %p47 = por %p45, %p46
      %p48 = scmp.ne.s32.totalorder %s37, %s40
      %p49 = scmp.eq.s32.totalorder %s32, 1
      %p50 = por %p48, %p49
      %p51 = scmp.ne.s32.totalorder %s40, %s41
      %p52 = scmp.eq.s32.totalorder %s32, 0
      %p53 = por %p51, %p52
      %p54 = scmp.ne.s32.totalorder %s40, %s41
      %p55 = scmp.eq.s32.totalorder %s33, 1
      %p56 = por %p54, %p55
      %p58 = scmp.ne.s32.totalorder %s41, %s57
      %p59 = scmp.eq.s32.totalorder %s33, 0
      %p60 = por %p58, %p59
      %s62 = sadd.s32 %s61, 1
      %p65 = scmp.eq.s32.totalorder %s27, 1
      %p66 = scmp.ne.s32.totalorder %s61, %s63
      %p67 = scmp.eq.s32.totalorder %s27, 0
      %p68 = por %p66, %p67
      %p69 = scmp.ne.s32.totalorder %s61, %s63
      %p70 = scmp.eq.s32.totalorder %s32, 1
      %p71 = por %p69, %p70
      %p72 = scmp.ne.s32.totalorder %s63, %s64
      %p73 = scmp.eq.s32.totalorder %s32, 0
      %p74 = por %p72, %p73
      %p75 = scmp.ne.s32.totalorder %s63, %s64
      %p76 = scmp.eq.s32.totalorder %s33, 1
      %p77 = por %p75, %p76
      %p79 = scmp.ne.s32.totalorder %s64, %s78
      %p80 = scmp.eq.s32.totalorder %s33, 0
      %p81 = por %p79, %p80
      %s83 = sadd.s32 %s82, 1
      %p86 = scmp.eq.s32.totalorder %s27, 1
      %p87 = scmp.ne.s32.totalorder %s82, %s84
      %p88 = scmp.eq.s32.totalorder %s27, 0
      %p89 = por %p87, %p88
      %p90 = scmp.ne.s32.totalorder %s82, %s84
      %p91 = scmp.eq.s32.totalorder %s32, 1
      %p92 = por %p90, %p91
      %p93 = scmp.ne.s32.totalorder %s84, %s85
      %p94 = scmp.eq.s32.totalorder %s32, 0
      %p95 = por %p93, %p94
      %p96 = scmp.ne.s32.totalorder %s84, %s85
      %p97 = scmp.eq.s32.totalorder %s33, 1
      %p98 = por %p96, %p97
      %p100 = scmp.ne.s32.totalorder %s85, %s99
      %p101 = scmp.eq.s32.totalorder %s33, 0
      %p102 = por %p100, %p101
      %s104 = sadd.s32 %s103, 1
      %p107 = scmp.eq.s32.totalorder %s27, 1
      %p108 = scmp.ne.s32.totalorder %s103, %s105
      %p109 = scmp.eq.s32.totalorder %s27, 0
      %p110 = por %p108, %p109
      %p111 = scmp.ne.s32.totalorder %s103, %s105
      %p112 = scmp.eq.s32.totalorder %s32, 1
      %p113 = por %p111, %p112
      %p114 = scmp.ne.s32.totalorder %s105, %s106
      %p115 = scmp.eq.s32.totalorder %s32, 0
      %p116 = por %p114, %p115
      %p117 = scmp.ne.s32.totalorder %s105, %s106
      %p118 = scmp.eq.s32.totalorder %s33, 1
      %p119 = por %p117, %p118
      %p121 = scmp.ne.s32.totalorder %s106, %s120
      %p122 = scmp.eq.s32.totalorder %s33, 0
      %p123 = por %p121, %p122
      %s125 = sadd.s32 %s124, 1
      %p128 = scmp.eq.s32.totalorder %s27, 1
      %p129 = scmp.ne.s32.totalorder %s124, %s126
      %p130 = scmp.eq.s32.totalorder %s27, 0
      %p131 = por %p129, %p130
      %p132 = scmp.ne.s32.totalorder %s124, %s126
      %p133 = scmp.eq.s32.totalorder %s32, 1
      %p134 = por %p132, %p133
      %p135 = scmp.ne.s32.totalorder %s126, %s127
      %p136 = scmp.eq.s32.totalorder %s32, 0
      %p137 = por %p135, %p136
      %p138 = scmp.ne.s32.totalorder %s126, %s127
      %p139 = scmp.eq.s32.totalorder %s33, 1
      %p140 = por %p138, %p139
      %p142 = scmp.ne.s32.totalorder %s127, %s141
      %p143 = scmp.eq.s32.totalorder %s33, 0
      %p144 = por %p142, %p143
      %s146 = sadd.s32 %s145, 1
      %p149 = scmp.eq.s32.totalorder %s27, 1
      %p150 = scmp.ne.s32.totalorder %s145, %s147
      %p151 = scmp.eq.s32.totalorder %s27, 0
      %p152 = por %p150, %p151
      %p153 = scmp.ne.s32.totalorder %s145, %s147
      %p154 = scmp.eq.s32.totalorder %s32, 1
      %p155 = por %p153, %p154
      %p156 = scmp.ne.s32.totalorder %s147, %s148
      %p157 = scmp.eq.s32.totalorder %s32, 0
      %p158 = por %p156, %p157
      %p159 = scmp.ne.s32.totalorder %s147, %s148
      %p160 = scmp.eq.s32.totalorder %s33, 1
      %p161 = por %p159, %p160
      %p163 = scmp.ne.s32.totalorder %s148, %s162
      %p164 = scmp.eq.s32.totalorder %s33, 0
      %p165 = por %p163, %p164
      %s167 = sadd.s32 %s166, 1
      %p170 = scmp.eq.s32.totalorder %s27, 1
      %p171 = scmp.ne.s32.totalorder %s166, %s168
      %p172 = scmp.eq.s32.totalorder %s27, 0
      %p173 = por %p171, %p172
      %p174 = scmp.ne.s32.totalorder %s166, %s168
      %p175 = scmp.eq.s32.totalorder %s32, 1
      %p176 = por %p174, %p175
      %p177 = scmp.ne.s32.totalorder %s168, %s169
      %p178 = scmp.eq.s32.totalorder %s32, 0
      %p179 = por %p177, %p178
      %p180 = scmp.ne.s32.totalorder %s168, %s169
      %p181 = scmp.eq.s32.totalorder %s33, 1
      %p182 = por %p180, %p181
      %p184 = scmp.ne.s32.totalorder %s169, %s183
      %p185 = scmp.eq.s32.totalorder %s33, 0
      %p186 = por %p184, %p185
      %s188 = sadd.s32 %s187, 1
      %p191 = scmp.eq.s32.totalorder %s27, 1
      %p192 = scmp.ne.s32.totalorder %s187, %s189
      %p193 = scmp.eq.s32.totalorder %s27, 0
      %p194 = por %p192, %p193
      %p195 = scmp.ne.s32.totalorder %s187, %s189
      %p196 = scmp.eq.s32.totalorder %s32, 1
      %p197 = por %p195, %p196
      %p198 = scmp.ne.s32.totalorder %s189, %s190
      %p199 = scmp.eq.s32.totalorder %s32, 0
      %p200 = por %p198, %p199
      %p201 = scmp.ne.s32.totalorder %s189, %s190
      %p202 = scmp.eq.s32.totalorder %s33, 1
      %p203 = por %p201, %p202
      %p205 = scmp.ne.s32.totalorder %s190, %s204
      %p206 = scmp.eq.s32.totalorder %s33, 0
      %p207 = por %p205, %p206
      %s209 = sadd.s32 %s208, 1
      %p212 = scmp.eq.s32.totalorder %s27, 1
      %p213 = scmp.ne.s32.totalorder %s208, %s210
      %p214 = scmp.eq.s32.totalorder %s27, 0
      %p215 = por %p213, %p214
      %p216 = scmp.ne.s32.totalorder %s208, %s210
      %p217 = scmp.eq.s32.totalorder %s32, 1
      %p218 = por %p216, %p217
      %p219 = scmp.ne.s32.totalorder %s210, %s211
      %p220 = scmp.eq.s32.totalorder %s32, 0
      %p221 = por %p219, %p220
      %p222 = scmp.ne.s32.totalorder %s210, %s211
      %p223 = scmp.eq.s32.totalorder %s33, 1
      %p224 = por %p222, %p223
      %p226 = scmp.ne.s32.totalorder %s211, %s225
      %p227 = scmp.eq.s32.totalorder %s33, 0
      %p228 = por %p226, %p227
      %s230 = sadd.s32 %s229, 1
      %p233 = scmp.eq.s32.totalorder %s27, 1
      %p234 = scmp.ne.s32.totalorder %s229, %s231
      %p235 = scmp.eq.s32.totalorder %s27, 0
      %p236 = por %p234, %p235
      %p237 = scmp.ne.s32.totalorder %s229, %s231
      %p238 = scmp.eq.s32.totalorder %s32, 1
      %p239 = por %p237, %p238
      %p240 = scmp.ne.s32.totalorder %s231, %s232
      %p241 = scmp.eq.s32.totalorder %s32, 0
      %p242 = por %p240, %p241
      %p243 = scmp.ne.s32.totalorder %s231, %s232
      %p244 = scmp.eq.s32.totalorder %s33, 1
      %p245 = por %p243, %p244
      %p247 = scmp.ne.s32.totalorder %s232, %s246
      %p248 = scmp.eq.s32.totalorder %s33, 0
      %p249 = por %p247, %p248
      %s251 = sadd.s32 %s250, 1
      %p254 = scmp.eq.s32.totalorder %s27, 1
      %p255 = scmp.ne.s32.totalorder %s250, %s252
      %p256 = scmp.eq.s32.totalorder %s27, 0
      %p257 = por %p255, %p256
      %p258 = scmp.ne.s32.totalorder %s250, %s252
      %p259 = scmp.eq.s32.totalorder %s32, 1
      %p260 = por %p258, %p259
      %p261 = scmp.ne.s32.totalorder %s252, %s253
      %p262 = scmp.eq.s32.totalorder %s32, 0
      %p263 = por %p261, %p262
      %p264 = scmp.ne.s32.totalorder %s252, %s253
      %p265 = scmp.eq.s32.totalorder %s33, 1
      %p266 = por %p264, %p265
      %p268 = scmp.ne.s32.totalorder %s253, %s267
      %p269 = scmp.eq.s32.totalorder %s33, 0
      %p270 = por %p268, %p269
      %s272 = sadd.s32 %s271, 1
      %p275 = scmp.eq.s32.totalorder %s27, 1
      %p276 = scmp.ne.s32.totalorder %s271, %s273
      %p277 = scmp.eq.s32.totalorder %s27, 0
      %p278 = por %p276, %p277
      %p279 = scmp.ne.s32.totalorder %s271, %s273
      %p280 = scmp.eq.s32.totalorder %s32, 1
      %p281 = por %p279, %p280
      %p282 = scmp.ne.s32.totalorder %s273, %s274
      %p283 = scmp.eq.s32.totalorder %s32, 0
      %p284 = por %p282, %p283
      %p285 = scmp.ne.s32.totalorder %s273, %s274
      %p286 = scmp.eq.s32.totalorder %s33, 1
      %p287 = por %p285, %p286
      %p289 = scmp.ne.s32.totalorder %s274, %s288
      %p290 = scmp.eq.s32.totalorder %s33, 0
      %p291 = por %p289, %p290
      %s293 = sadd.s32 %s292, 1
      %p296 = scmp.eq.s32.totalorder %s27, 1
      %p297 = scmp.ne.s32.totalorder %s292, %s294
      %p298 = scmp.eq.s32.totalorder %s27, 0
      %p299 = por %p297, %p298
      %p300 = scmp.ne.s32.totalorder %s292, %s294
      %p301 = scmp.eq.s32.totalorder %s32, 1
      %p302 = por %p300, %p301
      %p303 = scmp.ne.s32.totalorder %s294, %s295
      %p304 = scmp.eq.s32.totalorder %s32, 0
      %p305 = por %p303, %p304
      %p306 = scmp.ne.s32.totalorder %s294, %s295
      %p307 = scmp.eq.s32.totalorder %s33, 1
      %p308 = por %p306, %p307
      %p310 = scmp.ne.s32.totalorder %s295, %s309
      %p311 = scmp.eq.s32.totalorder %s33, 0
      %p312 = por %p310, %p311
      %s314 = sadd.s32 %s313, 1
      %p317 = scmp.eq.s32.totalorder %s27, 1
      %p318 = scmp.ne.s32.totalorder %s313, %s315
      %p319 = scmp.eq.s32.totalorder %s27, 0
      %p320 = por %p318, %p319
      %p321 = scmp.ne.s32.totalorder %s313, %s315
      %p322 = scmp.eq.s32.totalorder %s32, 1
      %p323 = por %p321, %p322
      %p324 = scmp.ne.s32.totalorder %s315, %s316
      %p325 = scmp.eq.s32.totalorder %s32, 0
      %p326 = por %p324, %p325
      %p327 = scmp.ne.s32.totalorder %s315, %s316
      %p328 = scmp.eq.s32.totalorder %s33, 1
      %p329 = por %p327, %p328
      %p331 = scmp.ne.s32.totalorder %s316, %s330
      %p332 = scmp.eq.s32.totalorder %s33, 0
      %p333 = por %p331, %p332
      %s335 = sadd.s32 %s334, 1
      %p338 = scmp.eq.s32.totalorder %s27, 1
      %p339 = scmp.ne.s32.totalorder %s334, %s336
      %p340 = scmp.eq.s32.totalorder %s27, 0
      %p341 = por %p339, %p340
      %p342 = scmp.ne.s32.totalorder %s334, %s336
      %p343 = scmp.eq.s32.totalorder %s32, 1
      %p344 = por %p342, %p343
      %p345 = scmp.ne.s32.totalorder %s336, %s337
      %p346 = scmp.eq.s32.totalorder %s32, 0
      %p347 = por %p345, %p346
      %p348 = scmp.ne.s32.totalorder %s336, %s337
      %p349 = scmp.eq.s32.totalorder %s33, 1
      %p350 = por %p348, %p349
      %p352 = scmp.ne.s32.totalorder %s337, %s351
      %p353 = scmp.eq.s32.totalorder %s33, 0
      %p354 = por %p352, %p353
      %s356 = sadd.s32 %s355, 1
      %p359 = scmp.eq.s32.totalorder %s27, 1
      %p360 = scmp.ne.s32.totalorder %s355, %s357
      %p361 = scmp.eq.s32.totalorder %s27, 0
      %p362 = por %p360, %p361
      %p363 = scmp.ne.s32.totalorder %s355, %s357
      %p364 = scmp.eq.s32.totalorder %s32, 1
      %p365 = por %p363, %p364
      %p366 = scmp.ne.s32.totalorder %s357, %s358
      %p367 = scmp.eq.s32.totalorder %s32, 0
      %p368 = por %p366, %p367
      %p369 = scmp.ne.s32.totalorder %s357, %s358
      %p370 = scmp.eq.s32.totalorder %s33, 1
      %p371 = por %p369, %p370
      %p373 = scmp.ne.s32.totalorder %s358, %s372
      %p374 = scmp.eq.s32.totalorder %s33, 0
      %p375 = por %p373, %p374
      %s377 = sadd.s32 %s376, 1
      %p380 = scmp.eq.s32.totalorder %s27, 1
      %p381 = scmp.ne.s32.totalorder %s376, %s378
      %p382 = scmp.eq.s32.totalorder %s27, 0
      %p383 = por %p381, %p382
      %p384 = scmp.ne.s32.totalorder %s376, %s378
      %p385 = scmp.eq.s32.totalorder %s32, 1
      %p386 = por %p384, %p385
      %p387 = scmp.ne.s32.totalorder %s378, %s379
      %p388 = scmp.eq.s32.totalorder %s32, 0
      %p389 = por %p387, %p388
      %p390 = scmp.ne.s32.totalorder %s378, %s379
      %p391 = scmp.eq.s32.totalorder %s33, 1
      %p392 = por %p390, %p391
      %p394 = scmp.ne.s32.totalorder %s379, %s393
      %p395 = scmp.eq.s32.totalorder %s33, 0
      %p396 = por %p394, %p395
      %s398 = sadd.s32 %s397, 1
      %p401 = scmp.eq.s32.totalorder %s27, 1
      %p402 = scmp.ne.s32.totalorder %s397, %s399
      %p403 = scmp.eq.s32.totalorder %s27, 0
      %p404 = por %p402, %p403
      %p405 = scmp.ne.s32.totalorder %s397, %s399
      %p406 = scmp.eq.s32.totalorder %s32, 1
      %p407 = por %p405, %p406
      %p408 = scmp.ne.s32.totalorder %s399, %s400
      %p409 = scmp.eq.s32.totalorder %s32, 0
      %p410 = por %p408, %p409
      %p411 = scmp.ne.s32.totalorder %s399, %s400
      %p412 = scmp.eq.s32.totalorder %s33, 1
      %p413 = por %p411, %p412
      %p415 = scmp.ne.s32.totalorder %s400, %s414
      %p416 = scmp.eq.s32.totalorder %s33, 0
      %p417 = por %p415, %p416
      %s418 = ssub.s32 %s27, %s34
      %p419 = scmp.eq.s32.totalorder %s418, 0
      %s421 = sadd.s32 %s420, 1
      %s422 = scalar_select %p419, %s420, %s421
      %p425 = pneg %p419
      %p426 = scmp.eq.s32.totalorder %s27, 1
      %p427 = por %p425, %p426
      %p428 = scmp.ne.s32.totalorder %s420, %s423
      %p429 = scmp.eq.s32.totalorder %s27, 0
      %p430 = por %p428, %p429
      %p431 = scmp.ne.s32.totalorder %s420, %s423
      %p432 = scmp.eq.s32.totalorder %s32, 1
      %p433 = por %p431, %p432
      %p434 = scmp.ne.s32.totalorder %s423, %s424
      %p435 = scmp.eq.s32.totalorder %s32, 0
      %p436 = por %p434, %p435
      %p437 = scmp.ne.s32.totalorder %s423, %s424
      %p438 = scmp.eq.s32.totalorder %s33, 1
      %p439 = por %p437, %p438
      %p441 = scmp.ne.s32.totalorder %s424, %s440
      %p442 = scmp.eq.s32.totalorder %s33, 0
      %p443 = por %p441, %p442
      %p444 = scmp.le.s32.totalorder 1, %s27
      %p445 = scmp.lt.s32.totalorder %s27, 3
      %p446 = pnand %p444, %p445
      %p447 = pneg %p446
      // Predicated region
      $region9: #{gpt_forward.1} parent=5 // pred_check
        _
      $region10: #{gpt_forward.1} parent=5 // pred_check_branch
        %449 = sbr.rel (%p446) target = $region12
      $region11: #{gpt_forward.1} parent=5 // pred_region
        %s450 = ssub.s32 %s27, 1
        // Predicated region
        $region13: #{gpt_forward.1} parent=11 // pred_check
          %p451 = pneg %p74
        $region14: #{gpt_forward.1} parent=11 // pred_check_branch
          %453 = sbr.rel (%p451) target = $region16
        $region15: #{gpt_forward.1} parent=11 // pred_region
          _
        $region16: #{gpt_forward.1} parent=11 // pred_fallthru
          _
        // Predicated region
        $region17: #{gpt_forward.1} parent=11 // pred_check
          %p454 = pneg %p95
        $region18: #{gpt_forward.1} parent=11 // pred_check_branch
          %456 = sbr.rel (%p454) target = $region20
        $region19: #{gpt_forward.1} parent=11 // pred_region
          _
        $region20: #{gpt_forward.1} parent=11 // pred_fallthru
          _
        // Predicated region
        $region21: #{gpt_forward.1} parent=11 // pred_check
          %p457 = pneg %p116
        $region22: #{gpt_forward.1} parent=11 // pred_check_branch
          %459 = sbr.rel (%p457) target = $region24
        $region23: #{gpt_forward.1} parent=11 // pred_region
          _
        $region24: #{gpt_forward.1} parent=11 // pred_fallthru
          _
        // Predicated region
        $region25: #{gpt_forward.1} parent=11 // pred_check
          %p460 = pneg %p137
        $region26: #{gpt_forward.1} parent=11 // pred_check_branch
          %462 = sbr.rel (%p460) target = $region28
        $region27: #{gpt_forward.1} parent=11 // pred_region
          _
        $region28: #{gpt_forward.1} parent=11 // pred_fallthru
          _
        // Predicated region
        $region29: #{gpt_forward.1} parent=11 // pred_check
          %p463 = pneg %p158
        $region30: #{gpt_forward.1} parent=11 // pred_check_branch
          %465 = sbr.rel (%p463) target = $region32
        $region31: #{gpt_forward.1} parent=11 // pred_region
          _
        $region32: #{gpt_forward.1} parent=11 // pred_fallthru
          _
        // Predicated region
        $region33: #{gpt_forward.1} parent=11 // pred_check
          %p466 = pneg %p179
        $region34: #{gpt_forward.1} parent=11 // pred_check_branch
          %468 = sbr.rel (%p466) target = $region36
        $region35: #{gpt_forward.1} parent=11 // pred_region
          _
        $region36: #{gpt_forward.1} parent=11 // pred_fallthru
          _
        // Predicated region
        $region37: #{gpt_forward.1} parent=11 // pred_check
          %p469 = pneg %p200
        $region38: #{gpt_forward.1} parent=11 // pred_check_branch
          %471 = sbr.rel (%p469) target = $region40
        $region39: #{gpt_forward.1} parent=11 // pred_region
          _
        $region40: #{gpt_forward.1} parent=11 // pred_fallthru
          _
        // Predicated region
        $region41: #{gpt_forward.1} parent=11 // pred_check
          %p472 = pneg %p221
        $region42: #{gpt_forward.1} parent=11 // pred_check_branch
          %474 = sbr.rel (%p472) target = $region44
        $region43: #{gpt_forward.1} parent=11 // pred_region
          _
        $region44: #{gpt_forward.1} parent=11 // pred_fallthru
          _
        // Predicated region
        $region45: #{gpt_forward.1} parent=11 // pred_check
          %p475 = pneg %p242
        $region46: #{gpt_forward.1} parent=11 // pred_check_branch
          %477 = sbr.rel (%p475) target = $region48
        $region47: #{gpt_forward.1} parent=11 // pred_region
          _
        $region48: #{gpt_forward.1} parent=11 // pred_fallthru
          _
        // Predicated region
        $region49: #{gpt_forward.1} parent=11 // pred_check
          %p478 = pneg %p263
        $region50: #{gpt_forward.1} parent=11 // pred_check_branch
          %480 = sbr.rel (%p478) target = $region52
        $region51: #{gpt_forward.1} parent=11 // pred_region
          _
        $region52: #{gpt_forward.1} parent=11 // pred_fallthru
          _
        // Predicated region
        $region53: #{gpt_forward.1} parent=11 // pred_check
          %p481 = pneg %p284
        $region54: #{gpt_forward.1} parent=11 // pred_check_branch
          %483 = sbr.rel (%p481) target = $region56
        $region55: #{gpt_forward.1} parent=11 // pred_region
          _
        $region56: #{gpt_forward.1} parent=11 // pred_fallthru
          _
        // Predicated region
        $region57: #{gpt_forward.1} parent=11 // pred_check
          %p484 = pneg %p305
        $region58: #{gpt_forward.1} parent=11 // pred_check_branch
          %486 = sbr.rel (%p484) target = $region60
        $region59: #{gpt_forward.1} parent=11 // pred_region
          _
        $region60: #{gpt_forward.1} parent=11 // pred_fallthru
          _
        // Predicated region
        $region61: #{gpt_forward.1} parent=11 // pred_check
          %p487 = pneg %p326
        $region62: #{gpt_forward.1} parent=11 // pred_check_branch
          %489 = sbr.rel (%p487) target = $region64
        $region63: #{gpt_forward.1} parent=11 // pred_region
          _
        $region64: #{gpt_forward.1} parent=11 // pred_fallthru
          _
        // Predicated region
        $region65: #{gpt_forward.1} parent=11 // pred_check
          %p490 = pneg %p347
        $region66: #{gpt_forward.1} parent=11 // pred_check_branch
          %492 = sbr.rel (%p490) target = $region68
        $region67: #{gpt_forward.1} parent=11 // pred_region
          _
        $region68: #{gpt_forward.1} parent=11 // pred_fallthru
          _
        // Predicated region
        $region69: #{gpt_forward.1} parent=11 // pred_check
          %p493 = pneg %p368
        $region70: #{gpt_forward.1} parent=11 // pred_check_branch
          %495 = sbr.rel (%p493) target = $region72
        $region71: #{gpt_forward.1} parent=11 // pred_region
          _
        $region72: #{gpt_forward.1} parent=11 // pred_fallthru
          _
        // Predicated region
        $region73: #{gpt_forward.1} parent=11 // pred_check
          %p496 = pneg %p389
        $region74: #{gpt_forward.1} parent=11 // pred_check_branch
          %498 = sbr.rel (%p496) target = $region76
        $region75: #{gpt_forward.1} parent=11 // pred_region
          _
        $region76: #{gpt_forward.1} parent=11 // pred_fallthru
          _
        // Predicated region
        $region77: #{gpt_forward.1} parent=11 // pred_check
          %p499 = pneg %p410
        $region78: #{gpt_forward.1} parent=11 // pred_check_branch
          %501 = sbr.rel (%p499) target = $region80
        $region79: #{gpt_forward.1} parent=11 // pred_region
          _
        $region80: #{gpt_forward.1} parent=11 // pred_fallthru
          _
      $region12: #{gpt_forward.1} parent=5 // pred_fallthru
        _
      %p502 = scmp.lt.s32.totalorder %s27, 2
      // Predicated region
      $region81: #{gpt_forward.1} parent=5 // pred_check
        %p503 = pneg %p502
      $region82: #{gpt_forward.1} parent=5 // pred_check_branch
        %505 = sbr.rel (%p503) target = $region84
      $region83: #{gpt_forward.1} parent=5 // pred_region
        // Predicated region
        $region85: #{gpt_forward.1} parent=83 // pred_check
          %p506 = pneg %p47
        $region86: #{gpt_forward.1} parent=83 // pred_check_branch
          %508 = sbr.rel (%p506) target = $region88
        $region87: #{gpt_forward.1} parent=83 // pred_region
          %p509 = scmp.lt.s32.totalorder %s27, 1
          %s510 = scalar_select %p509, %s27, 1
          %s511 = smul.addr %s510, 8
          %s512 = scalar_lea.vmem %s0, %s511
        $region88: #{gpt_forward.1} parent=83 // pred_fallthru
          _
      $region84: #{gpt_forward.1} parent=5 // pred_fallthru
        _
      %p513 = scmp.le.s32.totalorder 1, %s27
      %p514 = scmp.lt.s32.totalorder %s27, 3
      %p515 = pnand %p513, %p514
      %p516 = pneg %p515
      // Predicated region
      $region89: #{gpt_forward.1} parent=5 // pred_check
        _
      $region90: #{gpt_forward.1} parent=5 // pred_check_branch
        %518 = sbr.rel (%p515) target = $region92
      $region91: #{gpt_forward.1} parent=5 // pred_region
        %s519 = ssub.s32 %s27, 1
        %p520 = scmp.lt.s32.totalorder %s32, 1
        %s521 = scalar_select %p520, %s32, 1
        %s522 = smul.addr %s521, 8
        %s523 = scalar_lea.vmem %s0, %s522
        %p524 = pneg %p53
        %p525 = pneg %p50
        %p526 = pneg %p74
        %p527 = pneg %p71
        %p528 = pneg %p95
        %p529 = pneg %p92
        %p530 = pneg %p116
        %p531 = pneg %p113
        %p532 = pneg %p137
        %p533 = pneg %p134
        %p534 = pneg %p158
        %p535 = pneg %p155
        %p536 = pneg %p179
        %p537 = pneg %p176
        %p538 = pneg %p200
        %p539 = pneg %p197
        %p540 = pneg %p221
        %p541 = pneg %p218
        %p542 = pneg %p242
        %p543 = pneg %p239
        %p544 = pneg %p263
        %p545 = pneg %p260
        %p546 = pneg %p284
        %p547 = pneg %p281
        %p548 = pneg %p305
        %p549 = pneg %p302
        %p550 = pneg %p326
        %p551 = pneg %p323
        %p552 = pneg %p347
        %p553 = pneg %p344
        %p554 = pneg %p368
        %p555 = pneg %p365
        %p556 = pneg %p389
        %p557 = pneg %p386
        %p558 = pneg %p410
        %p559 = pneg %p407
        %p560 = pneg %p436
        %p561 = pneg %p433
        %s562 = sand.u32 %s423, 1
        %s563 = scalar_lea.sflag [#allocation3], %s562
        %s564 = sand.u32 %s423, 1
        %s565 = smul.addr %s564, 8
        %s566 = scalar_lea.vmem [#allocation2], %s565
        %p567 = scmp.lt.s32.totalorder %s32, 1
        %s568 = scalar_select %p567, %s32, 1
        %s569 = smul.addr %s568, 8
        %s570 = scalar_lea.vmem %s0, %s569
        %v572 = vld [vmem:[%s570] sm:$0xff]
        %v573 = vlaneseq
        %v574 = vand.u32 %v573, 127
        %575 = vset.pattern.permute.xlu0 0
        %576 = vperm.xlu0 %575, %v572
        %v577 = vpop.permute.xlu0 %576
        %vm578 = vcmp.eq.s32.totalorder %v574, %v577
        %v579 = vsel %vm578, 1, 0
        %v580 = vcvt.s32.f32 %v579
        %v581 = vld [vmem:[%s1] sm:$0xff]
        %v582 = vld [vmem:[%s1 + $0x8] sm:$0xff]
        %v583 = vld [vmem:[%s1 + $0x10] sm:$0xff]
        %v584 = vld [vmem:[%s1 + $0x18] sm:$0xff]
        %v585 = vld [vmem:[%s1 + $0x20] sm:$0xff]
        %v586 = vld [vmem:[%s1 + $0x28] sm:$0xff]
        %v587 = vld [vmem:[%s1 + $0x30] sm:$0xff]
        %v588 = vld [vmem:[%s1 + $0x38] sm:$0xff]
        %v589 = vld [vmem:[%s1 + $0x40] sm:$0xff]
        %v590 = vld [vmem:[%s1 + $0x48] sm:$0xff]
        %v591 = vld [vmem:[%s1 + $0x50] sm:$0xff]
        %v592 = vld [vmem:[%s1 + $0x58] sm:$0xff]
        %v593 = vld [vmem:[%s1 + $0x60] sm:$0xff]
        %v594 = vld [vmem:[%s1 + $0x68] sm:$0xff]
        %v595 = vld [vmem:[%s1 + $0x70] sm:$0xff]
        %v596 = vld [vmem:[%s1 + $0x78] sm:$0xff]
        %v597 = vld [vmem:[%s2] sm:$0xff]
        %598 = vmatprep.subr.mxu0 0.0
        %599 = vmatpush1.msra.mxu0 %v596
        %600 = vmatprep.subr.mxu0 0.0
        %601 = vmatpush1.msra.mxu0 %v595
        %602 = vmatprep.subr.mxu0 0.0
        %603 = vmatpush1.msra.mxu0 %v594
        %604 = vmatprep.subr.mxu0 0.0
        %605 = vmatpush1.msra.mxu0 %v593
        %606 = vmatprep.subr.mxu0 0.0
        %607 = vmatpush1.msra.mxu0 %v592
        %608 = vmatprep.subr.mxu0 0.0
        %609 = vmatpush1.msra.mxu0 %v591
        %610 = vmatprep.subr.mxu0 0.0
        %611 = vmatpush1.msra.mxu0 %v590
        %612 = vmatprep.subr.mxu0 0.0
        %613 = vmatpush1.msra.mxu0 %v589
        %614 = vmatprep.subr.mxu0 0.0
        %615 = vmatpush1.msra.mxu0 %v588
        %616 = vmatprep.subr.mxu0 0.0
        %617 = vmatpush1.msra.mxu0 %v587
        %618 = vmatprep.subr.mxu0 0.0
        %619 = vmatpush1.msra.mxu0 %v586
        %620 = vmatprep.subr.mxu0 0.0
        %621 = vmatpush1.msra.mxu0 %v585
        %622 = vmatprep.subr.mxu0 0.0
        %623 = vmatpush1.msra.mxu0 %v584
        %624 = vmatprep.subr.mxu0 0.0
        %625 = vmatpush1.msra.mxu0 %v583
        %626 = vmatprep.subr.mxu0 0.0
        %627 = vmatpush1.msra.mxu0 %v582
        %628 = vmatprep.subr.mxu0 0.0
        %629 = vmatpush1.msra.mxu0 %v581
        %630 = vmatprep.subr.mxu0 0.0
        %631 = vmatpush2.msra.mxu0 0.0
        %632 = vmatprep.subr.mxu0 0.0
        %633 = vmatpush2.msra.mxu0 0.0
        %634 = vmatprep.subr.mxu0 0.0
        %635 = vmatpush2.msra.mxu0 0.0
        %636 = vmatprep.subr.mxu0 0.0
        %637 = vmatpush2.msra.mxu0 0.0
        %638 = vmatprep.subr.mxu0 0.0
        %639 = vmatpush2.msra.mxu0 0.0
        %640 = vmatprep.subr.mxu0 0.0
        %641 = vmatpush2.msra.mxu0 0.0
        %642 = vmatprep.subr.mxu0 0.0
        %643 = vmatpush2.msra.mxu0 0.0
        %644 = vmatprep.subr.mxu0 0.0
        %645 = vmatpush2.msra.mxu0 0.0
        %646 = vmatprep.subr.mxu0 0.0
        %647 = vmatpush2.msra.mxu0 0.0
        %648 = vmatprep.subr.mxu0 0.0
        %649 = vmatpush2.msra.mxu0 0.0
        %650 = vmatprep.subr.mxu0 0.0
        %651 = vmatpush2.msra.mxu0 0.0
        %652 = vmatprep.subr.mxu0 0.0
        %653 = vmatpush2.msra.mxu0 0.0
        %654 = vmatprep.subr.mxu0 0.0
        %655 = vmatpush2.msra.mxu0 0.0
        %656 = vmatprep.subr.mxu0 0.0
        %657 = vmatpush2.msra.mxu0 0.0
        %658 = vmatprep.subr.mxu0 0.0
        %659 = vmatpush2.msra.mxu0 0.0
        %660 = vmatprep.subr.mxu0 0.0
        %661 = vmatpush2.msra.mxu0 0.0
        %662 = vmatprep.mubr.f32.mxu0 0.0
        %663 = vmatmul.mubr.f32.gmra.mxu0 %v580
        %v664 = vpop.f32.mrf.mxu0
        %v665 = vadd.f32 %v597, %v664
        %v666 = vpop.f32.mrf.mxu0
        %667 = vdwg.mxu0
        %v668 = vlaneseq
        %v669 = vshrl.u32 %v668, 7
        %vm670 = vcmp.le.s32.totalorder %v574, %v669
        %v671 = vsel %vm670, 0.0, -1e+30
        %v672 = vld [vmem:[%s3] sm:$0x1]
        %v673 = vld [vmem:[%s4] sm:$0x1]
        %vm674 = vcmask 261120
        %v675 = vsel %vm674, %v665, 0.0
        %676 = vadd.xlane.f32.xlu0 %v675
        %v677 = vpop.xlane.xlu0 %676
        %v678 = vrcp.pop 32.0
        %v679 = vmul.f32 %v677, %v678
        %v680 = vsub.f32 %v665, %v679
        %v681 = vmul.f32 %v680, %v680
        %v682 = vsel %vm674, %v681, 0.0
        %683 = vadd.xlane.f32.xlu0 %v682
        %v684 = vpop.xlane.xlu0 %683
        %v685 = vmul.f32 %v684, %v678
        %v686 = vadd.f32 %v685, 1e-05
        %v687 = vrsqrt.pop %v686
        %v688 = vmul.f32 %v680, %v687
        %v690 = vlaneseq
        %v691 = vshrl.u32 %v690, 7
        %v692 = vsub.s32 0, %v691
        %v693 = vrot.slane %v672, %v692
        %v695 = vmul.f32 %v688, %v693
        %v697 = vlaneseq
        %v698 = vshrl.u32 %v697, 7
        %v699 = vsub.s32 0, %v698
        %v700 = vrot.slane %v673, %v699
        %v702 = vadd.f32 %v695, %v700
        %v703 = vpack.c.bf16 %v702, %v702
        %v704 = vld [vmem:[%s5] sm:$0xf]
        %v705 = vld [vmem:[%s5 + $0x4] sm:$0xf]
        %v706 = vld [vmem:[%s5 + $0x8] sm:$0xf]
        %v707 = vld [vmem:[%s5 + $0xc] sm:$0xf]
        %v708 = vld [vmem:[%s5 + $0x10] sm:$0xf]
        %v709 = vld [vmem:[%s5 + $0x14] sm:$0xf]
        %v710 = vld [vmem:[%s5 + $0x18] sm:$0xf]
        %v711 = vld [vmem:[%s5 + $0x1c] sm:$0xf]
        %v712 = vld [vmem:[%s5 + $0x20] sm:$0xf]
        %v713 = vld [vmem:[%s5 + $0x24] sm:$0xf]
        %v714 = vld [vmem:[%s5 + $0x28] sm:$0xf]
        %v715 = vld [vmem:[%s5 + $0x2c] sm:$0xf]
        %v716 = vld [vmem:[%s5 + $0x30] sm:$0xf]
        %v717 = vld [vmem:[%s5 + $0x34] sm:$0xf]
        %v718 = vld [vmem:[%s5 + $0x38] sm:$0xf]
        %v719 = vld [vmem:[%s5 + $0x3c] sm:$0xf]
        %v720 = vld [vmem:[%s5 + $0x40] sm:$0xf]
        %v721 = vld [vmem:[%s5 + $0x44] sm:$0xf]
        %v722 = vld [vmem:[%s5 + $0x48] sm:$0xf]
        %v723 = vld [vmem:[%s5 + $0x4c] sm:$0xf]
        %v724 = vld [vmem:[%s5 + $0x50] sm:$0xf]
        %v725 = vld [vmem:[%s5 + $0x54] sm:$0xf]
        %v726 = vld [vmem:[%s5 + $0x58] sm:$0xf]
        %v727 = vld [vmem:[%s5 + $0x5c] sm:$0xf]
        %v728 = vld [vmem:[%s5 + $0x60] sm:$0xf]
        %v729 = vld [vmem:[%s5 + $0x64] sm:$0xf]
        %v730 = vld [vmem:[%s5 + $0x68] sm:$0xf]
        %v731 = vld [vmem:[%s5 + $0x6c] sm:$0xf]
        %v732 = vld [vmem:[%s5 + $0x70] sm:$0xf]
        %v733 = vld [vmem:[%s5 + $0x74] sm:$0xf]
        %v734 = vld [vmem:[%s5 + $0x78] sm:$0xf]
        %v735 = vld [vmem:[%s5 + $0x7c] sm:$0xf]
        %v736 = vld [vmem:[%s5 + $0x80] sm:$0xf]
        %v737 = vld [vmem:[%s5 + $0x84] sm:$0xf]
        %v738 = vld [vmem:[%s5 + $0x88] sm:$0xf]
        %v739 = vld [vmem:[%s5 + $0x8c] sm:$0xf]
        %v740 = vld [vmem:[%s5 + $0x90] sm:$0xf]
        %v741 = vld [vmem:[%s5 + $0x94] sm:$0xf]
        %v742 = vld [vmem:[%s5 + $0x98] sm:$0xf]
        %v743 = vld [vmem:[%s5 + $0x9c] sm:$0xf]
        %v744 = vld [vmem:[%s5 + $0xa0] sm:$0xf]
        %v745 = vld [vmem:[%s5 + $0xa4] sm:$0xf]
        %v746 = vld [vmem:[%s5 + $0xa8] sm:$0xf]
        %v747 = vld [vmem:[%s5 + $0xac] sm:$0xf]
        %v748 = vld [vmem:[%s5 + $0xb0] sm:$0xf]
        %v749 = vld [vmem:[%s5 + $0xb4] sm:$0xf]
        %v750 = vld [vmem:[%s5 + $0xb8] sm:$0xf]
        %v751 = vld [vmem:[%s5 + $0xbc] sm:$0xf]
        %v752 = vld [vmem:[%s6] sm:$0x1]
        %v753 = vld [vmem:[%s6 + $0x1] sm:$0x1]
        %v754 = vld [vmem:[%s6 + $0x2] sm:$0x1]
        %v755 = vld [vmem:[%s6 + $0x3] sm:$0x1]
        %v756 = vld [vmem:[%s6 + $0x4] sm:$0x1]
        %v757 = vld [vmem:[%s6 + $0x5] sm:$0x1]
        %v758 = vld [vmem:[%s6 + $0x6] sm:$0x1]
        %v759 = vld [vmem:[%s6 + $0x7] sm:$0x1]
        %v760 = vld [vmem:[%s6 + $0x8] sm:$0x1]
        %v761 = vld [vmem:[%s6 + $0x9] sm:$0x1]
        %v762 = vld [vmem:[%s6 + $0xa] sm:$0x1]
        %v763 = vld [vmem:[%s6 + $0xb] sm:$0x1]
        %v776 = vlaneseq
        %v777 = vshrl.u32 %v776, 7
        %v778 = vsub.s32 0, %v777
        %v779 = vrot.slane %v752, %v778
        %v780 = vlaneseq
        %v781 = vshrl.u32 %v780, 7
        %v782 = vsub.s32 0, %v781
        %v783 = vrot.slane %v753, %v782
        %v784 = vlaneseq
        %v785 = vshrl.u32 %v784, 7
        %v786 = vsub.s32 0, %v785
        %v787 = vrot.slane %v754, %v786
        %v788 = vlaneseq
        %v789 = vshrl.u32 %v788, 7
        %v790 = vsub.s32 0, %v789
        %v791 = vrot.slane %v755, %v790
        %v792 = vlaneseq
        %v793 = vshrl.u32 %v792, 7
        %v794 = vsub.s32 0, %v793
        %v795 = vrot.slane %v756, %v794
        %v796 = vlaneseq
        %v797 = vshrl.u32 %v796, 7
        %v798 = vsub.s32 0, %v797
        %v799 = vrot.slane %v757, %v798
        %v800 = vlaneseq
        %v801 = vshrl.u32 %v800, 7
        %v802 = vsub.s32 0, %v801
        %v803 = vrot.slane %v758, %v802
        %v804 = vlaneseq
        %v805 = vshrl.u32 %v804, 7
        %v806 = vsub.s32 0, %v805
        %v807 = vrot.slane %v759, %v806
        %v808 = vlaneseq
        %v809 = vshrl.u32 %v808, 7
        %v810 = vsub.s32 0, %v809
        %v811 = vrot.slane %v760, %v810
        %v812 = vlaneseq
        %v813 = vshrl.u32 %v812, 7
        %v814 = vsub.s32 0, %v813
        %v815 = vrot.slane %v761, %v814
        %v816 = vlaneseq
        %v817 = vshrl.u32 %v816, 7
        %v818 = vsub.s32 0, %v817
        %v819 = vrot.slane %v762, %v818
        %v820 = vlaneseq
        %v821 = vshrl.u32 %v820, 7
        %v822 = vsub.s32 0, %v821
        %v823 = vrot.slane %v763, %v822
        %v840 = vunpack.c.l.b16 %v704
        %v841 = vunpack.c.l.b16 %v705
        %v842 = vunpack.c.l.b16 %v706
        %v843 = vunpack.c.l.b16 %v707
        %v844 = vpack.c.b16 %v841, %v840
        %v845 = vpack.c.b16 %v843, %v842
        %v849 = vsel %vm674, %v703, 0
        %851 = vmatprep.subr.bf16.mxu0 0
        %852 = vmatpush1.bf16.msra.mxu0 0
        %853 = vmatprep.subr.bf16.mxu0 0
        %854 = vmatpush1.bf16.msra.mxu0 0
        %855 = vmatprep.subr.bf16.mxu0 0
        %856 = vmatpush1.bf16.msra.mxu0 0
        %857 = vmatprep.subr.bf16.mxu0 0
        %858 = vmatpush1.bf16.msra.mxu0 0
        %859 = vmatprep.subr.bf16.mxu0 0
        %860 = vmatpush1.bf16.msra.mxu0 0
        %861 = vmatprep.subr.bf16.mxu0 0
        %862 = vmatpush1.bf16.msra.mxu0 0
        %863 = vmatprep.subr.bf16.mxu0 0
        %864 = vmatpush1.bf16.msra.mxu0 %v845
        %865 = vmatprep.subr.bf16.mxu0 0
        %866 = vmatpush1.bf16.msra.mxu0 %v844
        %867 = vmatprep.subr.bf16.mxu0 0
        %868 = vmatpush2.bf16.msra.mxu0 0
        %869 = vmatprep.subr.bf16.mxu0 0
        %870 = vmatpush2.bf16.msra.mxu0 0
        %871 = vmatprep.subr.bf16.mxu0 0
        %872 = vmatpush2.bf16.msra.mxu0 0
        %873 = vmatprep.subr.bf16.mxu0 0
        %874 = vmatpush2.bf16.msra.mxu0 0
        %875 = vmatprep.subr.bf16.mxu0 0
        %876 = vmatpush2.bf16.msra.mxu0 0
        %877 = vmatprep.subr.bf16.mxu0 0
        %878 = vmatpush2.bf16.msra.mxu0 0
        %879 = vmatprep.subr.bf16.mxu0 0
        %880 = vmatpush2.bf16.msra.mxu0 0
        %881 = vmatprep.subr.bf16.mxu0 0
        %882 = vmatpush2.bf16.msra.mxu0 0
        %883 = vmatprep.mubr.bf16.mxu0 0
        %884 = vmatmul.mubr.bf16.gmra.mxu0 %v849
        %v885 = vpop.f32.mrf.mxu0
        %v886 = vadd.f32 %v779, %v885
        %v887 = vpop.f32.mrf.mxu0
        %v888 = vpop.f32.mrf.mxu0
        %v889 = vpop.f32.mrf.mxu0
        %890 = vdwg.mxu0
        %v895 = vunpack.c.l.b16 %v708
        %v896 = vunpack.c.l.b16 %v709
        %v897 = vunpack.c.l.b16 %v710
        %v898 = vunpack.c.l.b16 %v711
        %v899 = vpack.c.b16 %v896, %v895
        %v900 = vpack.c.b16 %v898, %v897
        %903 = vmatprep.subr.bf16.mxu0 0
        %904 = vmatpush1.bf16.msra.mxu0 0
        %905 = vmatprep.subr.bf16.mxu0 0
        %906 = vmatpush1.bf16.msra.mxu0 0
        %907 = vmatprep.subr.bf16.mxu0 0
        %908 = vmatpush1.bf16.msra.mxu0 0
        %909 = vmatprep.subr.bf16.mxu0 0
        %910 = vmatpush1.bf16.msra.mxu0 0
        %911 = vmatprep.subr.bf16.mxu0 0
        %912 = vmatpush1.bf16.msra.mxu0 0
        %913 = vmatprep.subr.bf16.mxu0 0
        %914 = vmatpush1.bf16.msra.mxu0 0
        %915 = vmatprep.subr.bf16.mxu0 0
        %916 = vmatpush1.bf16.msra.mxu0 %v900
        %917 = vmatprep.subr.bf16.mxu0 0
        %918 = vmatpush1.bf16.msra.mxu0 %v899
        %919 = vmatprep.subr.bf16.mxu0 0
        %920 = vmatpush2.bf16.msra.mxu0 0
        %921 = vmatprep.subr.bf16.mxu0 0
        %922 = vmatpush2.bf16.msra.mxu0 0
        %923 = vmatprep.subr.bf16.mxu0 0
        %924 = vmatpush2.bf16.msra.mxu0 0
        %925 = vmatprep.subr.bf16.mxu0 0
        %926 = vmatpush2.bf16.msra.mxu0 0
        %927 = vmatprep.subr.bf16.mxu0 0
        %928 = vmatpush2.bf16.msra.mxu0 0
        %929 = vmatprep.subr.bf16.mxu0 0
        %930 = vmatpush2.bf16.msra.mxu0 0
        %931 = vmatprep.subr.bf16.mxu0 0
        %932 = vmatpush2.bf16.msra.mxu0 0
        %933 = vmatprep.subr.bf16.mxu0 0
        %934 = vmatpush2.bf16.msra.mxu0 0
        %935 = vmatprep.mubr.bf16.mxu0 0
        %936 = vmatmul.mubr.bf16.gmra.mxu0 %v849
        %v937 = vpop.f32.mrf.mxu0
        %v938 = vadd.f32 %v783, %v937
        %v939 = vpop.f32.mrf.mxu0
        %v940 = vpop.f32.mrf.mxu0
        %v941 = vpop.f32.mrf.mxu0
        %942 = vdwg.mxu0
        %v947 = vunpack.c.l.b16 %v712
        %v948 = vunpack.c.l.b16 %v713
        %v949 = vunpack.c.l.b16 %v714
        %v950 = vunpack.c.l.b16 %v715
        %v951 = vpack.c.b16 %v948, %v947
        %v952 = vpack.c.b16 %v950, %v949
        %955 = vmatprep.subr.bf16.mxu0 0
        %956 = vmatpush1.bf16.msra.mxu0 0
        %957 = vmatprep.subr.bf16.mxu0 0
        %958 = vmatpush1.bf16.msra.mxu0 0
        %959 = vmatprep.subr.bf16.mxu0 0
        %960 = vmatpush1.bf16.msra.mxu0 0
        %961 = vmatprep.subr.bf16.mxu0 0
        %962 = vmatpush1.bf16.msra.mxu0 0
        %963 = vmatprep.subr.bf16.mxu0 0
        %964 = vmatpush1.bf16.msra.mxu0 0
        %965 = vmatprep.subr.bf16.mxu0 0
        %966 = vmatpush1.bf16.msra.mxu0 0
        %967 = vmatprep.subr.bf16.mxu0 0
        %968 = vmatpush1.bf16.msra.mxu0 %v952
        %969 = vmatprep.subr.bf16.mxu0 0
        %970 = vmatpush1.bf16.msra.mxu0 %v951
        %971 = vmatprep.subr.bf16.mxu0 0
        %972 = vmatpush2.bf16.msra.mxu0 0
        %973 = vmatprep.subr.bf16.mxu0 0
        %974 = vmatpush2.bf16.msra.mxu0 0
        %975 = vmatprep.subr.bf16.mxu0 0
        %976 = vmatpush2.bf16.msra.mxu0 0
        %977 = vmatprep.subr.bf16.mxu0 0
        %978 = vmatpush2.bf16.msra.mxu0 0
        %979 = vmatprep.subr.bf16.mxu0 0
        %980 = vmatpush2.bf16.msra.mxu0 0
        %981 = vmatprep.subr.bf16.mxu0 0
        %982 = vmatpush2.bf16.msra.mxu0 0
        %983 = vmatprep.subr.bf16.mxu0 0
        %984 = vmatpush2.bf16.msra.mxu0 0
        %985 = vmatprep.subr.bf16.mxu0 0
        %986 = vmatpush2.bf16.msra.mxu0 0
        %987 = vmatprep.mubr.bf16.mxu0 0
        %988 = vmatmul.mubr.bf16.gmra.mxu0 %v849
        %v989 = vpop.f32.mrf.mxu0
        %v990 = vadd.f32 %v787, %v989
        %v991 = vpop.f32.mrf.mxu0
        %v992 = vpop.f32.mrf.mxu0
        %v993 = vpop.f32.mrf.mxu0
        %994 = vdwg.mxu0
        %v999 = vunpack.c.l.b16 %v716
        %v1000 = vunpack.c.l.b16 %v717
        %v1001 = vunpack.c.l.b16 %v718
        %v1002 = vunpack.c.l.b16 %v719
        %v1003 = vpack.c.b16 %v1000, %v999
        %v1004 = vpack.c.b16 %v1002, %v1001
        %1007 = vmatprep.subr.bf16.mxu0 0
        %1008 = vmatpush1.bf16.msra.mxu0 0
        %1009 = vmatprep.subr.bf16.mxu0 0
        %1010 = vmatpush1.bf16.msra.mxu0 0
        %1011 = vmatprep.subr.bf16.mxu0 0
        %1012 = vmatpush1.bf16.msra.mxu0 0
        %1013 = vmatprep.subr.bf16.mxu0 0
        %1014 = vmatpush1.bf16.msra.mxu0 0
        %1015 = vmatprep.subr.bf16.mxu0 0
        %1016 = vmatpush1.bf16.msra.mxu0 0
        %1017 = vmatprep.subr.bf16.mxu0 0
        %1018 = vmatpush1.bf16.msra.mxu0 0
        %1019 = vmatprep.subr.bf16.mxu0 0
        %1020 = vmatpush1.bf16.msra.mxu0 %v1004
        %1021 = vmatprep.subr.bf16.mxu0 0
        %1022 = vmatpush1.bf16.msra.mxu0 %v1003
        %1023 = vmatprep.subr.bf16.mxu0 0
        %1024 = vmatpush2.bf16.msra.mxu0 0
        %1025 = vmatprep.subr.bf16.mxu0 0
        %1026 = vmatpush2.bf16.msra.mxu0 0
        %1027 = vmatprep.subr.bf16.mxu0 0
        %1028 = vmatpush2.bf16.msra.mxu0 0
        %1029 = vmatprep.subr.bf16.mxu0 0
        %1030 = vmatpush2.bf16.msra.mxu0 0
        %1031 = vmatprep.subr.bf16.mxu0 0
        %1032 = vmatpush2.bf16.msra.mxu0 0
        %1033 = vmatprep.subr.bf16.mxu0 0
        %1034 = vmatpush2.bf16.msra.mxu0 0
        %1035 = vmatprep.subr.bf16.mxu0 0
        %1036 = vmatpush2.bf16.msra.mxu0 0
        %1037 = vmatprep.subr.bf16.mxu0 0
        %1038 = vmatpush2.bf16.msra.mxu0 0
        %1039 = vmatprep.mubr.bf16.mxu0 0
        %1040 = vmatmul.mubr.bf16.gmra.mxu0 %v849
        %v1041 = vpop.f32.mrf.mxu0
        %v1042 = vadd.f32 %v791, %v1041
        %v1043 = vpop.f32.mrf.mxu0
        %v1044 = vpop.f32.mrf.mxu0
        %v1045 = vpop.f32.mrf.mxu0
        %1046 = vdwg.mxu0
        %v1051 = vunpack.c.l.b16 %v720
        %v1052 = vunpack.c.l.b16 %v721
        %v1053 = vunpack.c.l.b16 %v722
        %v1054 = vunpack.c.l.b16 %v723
        %v1055 = vpack.c.b16 %v1052, %v1051
        %v1056 = vpack.c.b16 %v1054, %v1053
        %1059 = vmatprep.subr.bf16.mxu0 0
        %1060 = vmatpush1.bf16.msra.mxu0 0
        %1061 = vmatprep.subr.bf16.mxu0 0
        %1062 = vmatpush1.bf16.msra.mxu0 0
        %1063 = vmatprep.subr.bf16.mxu0 0
        %1064 = vmatpush1.bf16.msra.mxu0 0
        %1065 = vmatprep.subr.bf16.mxu0 0
        %1066 = vmatpush1.bf16.msra.mxu0 0
        %1067 = vmatprep.subr.bf16.mxu0 0
        %1068 = vmatpush1.bf16.msra.mxu0 0
        %1069 = vmatprep.subr.bf16.mxu0 0
        %1070 = vmatpush1.bf16.msra.mxu0 0
        %1071 = vmatprep.subr.bf16.mxu0 0
        %1072 = vmatpush1.bf16.msra.mxu0 %v1056
        %1073 = vmatprep.subr.bf16.mxu0 0
        %1074 = vmatpush1.bf16.msra.mxu0 %v1055
        %1075 = vmatprep.subr.bf16.mxu0 0
        %1076 = vmatpush2.bf16.msra.mxu0 0
        %1077 = vmatprep.subr.bf16.mxu0 0
        %1078 = vmatpush2.bf16.msra.mxu0 0
        %1079 = vmatprep.subr.bf16.mxu0 0
        %1080 = vmatpush2.bf16.msra.mxu0 0
        %1081 = vmatprep.subr.bf16.mxu0 0
        %1082 = vmatpush2.bf16.msra.mxu0 0
        %1083 = vmatprep.subr.bf16.mxu0 0
        %1084 = vmatpush2.bf16.msra.mxu0 0
        %1085 = vmatprep.subr.bf16.mxu0 0
        %1086 = vmatpush2.bf16.msra.mxu0 0
        %1087 = vmatprep.subr.bf16.mxu0 0
        %1088 = vmatpush2.bf16.msra.mxu0 0
        %1089 = vmatprep.subr.bf16.mxu0 0
        %1090 = vmatpush2.bf16.msra.mxu0 0
        %1091 = vmatprep.mubr.bf16.mxu0 0
        %1092 = vmatmul.mubr.bf16.gmra.mxu0 %v849
        %v1093 = vpop.f32.mrf.mxu0
        %v1094 = vadd.f32 %v795, %v1093
        %v1095 = vpop.f32.mrf.mxu0
        %v1096 = vpop.f32.mrf.mxu0
        %v1097 = vpop.f32.mrf.mxu0
        %1098 = vdwg.mxu0
        %v1103 = vunpack.c.l.b16 %v724
        %v1104 = vunpack.c.l.b16 %v725
        %v1105 = vunpack.c.l.b16 %v726
        %v1106 = vunpack.c.l.b16 %v727
        %v1107 = vpack.c.b16 %v1104, %v1103
        %v1108 = vpack.c.b16 %v1106, %v1105
        %1111 = vmatprep.subr.bf16.mxu0 0
        %1112 = vmatpush1.bf16.msra.mxu0 0
        %1113 = vmatprep.subr.bf16.mxu0 0
        %1114 = vmatpush1.bf16.msra.mxu0 0
        %1115 = vmatprep.subr.bf16.mxu0 0
        %1116 = vmatpush1.bf16.msra.mxu0 0
        %1117 = vmatprep.subr.bf16.mxu0 0
        %1118 = vmatpush1.bf16.msra.mxu0 0
        %1119 = vmatprep.subr.bf16.mxu0 0
        %1120 = vmatpush1.bf16.msra.mxu0 0
        %1121 = vmatprep.subr.bf16.mxu0 0
        %1122 = vmatpush1.bf16.msra.mxu0 0
        %1123 = vmatprep.subr.bf16.mxu0 0
        %1124 = vmatpush1.bf16.msra.mxu0 %v1108
        %1125 = vmatprep.subr.bf16.mxu0 0
        %1126 = vmatpush1.bf16.msra.mxu0 %v1107
        %1127 = vmatprep.subr.bf16.mxu0 0
        %1128 = vmatpush2.bf16.msra.mxu0 0
        %1129 = vmatprep.subr.bf16.mxu0 0
        %1130 = vmatpush2.bf16.msra.mxu0 0
        %1131 = vmatprep.subr.bf16.mxu0 0
        %1132 = vmatpush2.bf16.msra.mxu0 0
        %1133 = vmatprep.subr.bf16.mxu0 0
        %1134 = vmatpush2.bf16.msra.mxu0 0
        %1135 = vmatprep.subr.bf16.mxu0 0
        %1136 = vmatpush2.bf16.msra.mxu0 0
        %1137 = vmatprep.subr.bf16.mxu0 0
        %1138 = vmatpush2.bf16.msra.mxu0 0
        %1139 = vmatprep.subr.bf16.mxu0 0
        %1140 = vmatpush2.bf16.msra.mxu0 0
        %1141 = vmatprep.subr.bf16.mxu0 0
        %1142 = vmatpush2.bf16.msra.mxu0 0
        %1143 = vmatprep.mubr.bf16.mxu0 0
        %1144 = vmatmul.mubr.bf16.gmra.mxu0 %v849
        %v1145 = vpop.f32.mrf.mxu0
        %v1146 = vadd.f32 %v799, %v1145
        %v1147 = vpop.f32.mrf.mxu0
        %v1148 = vpop.f32.mrf.mxu0
        %v1149 = vpop.f32.mrf.mxu0
        %1150 = vdwg.mxu0
        %v1155 = vunpack.c.l.b16 %v728
        %v1156 = vunpack.c.l.b16 %v729
        %v1157 = vunpack.c.l.b16 %v730
        %v1158 = vunpack.c.l.b16 %v731
        %v1159 = vpack.c.b16 %v1156, %v1155
        %v1160 = vpack.c.b16 %v1158, %v1157
        %1163 = vmatprep.subr.bf16.mxu0 0
        %1164 = vmatpush1.bf16.msra.mxu0 0
        %1165 = vmatprep.subr.bf16.mxu0 0
        %1166 = vmatpush1.bf16.msra.mxu0 0
        %1167 = vmatprep.subr.bf16.mxu0 0
        %1168 = vmatpush1.bf16.msra.mxu0 0
        %1169 = vmatprep.subr.bf16.mxu0 0
        %1170 = vmatpush1.bf16.msra.mxu0 0
        %1171 = vmatprep.subr.bf16.mxu0 0
        %1172 = vmatpush1.bf16.msra.mxu0 0
        %1173 = vmatprep.subr.bf16.mxu0 0
        %1174 = vmatpush1.bf16.msra.mxu0 0
        %1175 = vmatprep.subr.bf16.mxu0 0
        %1176 = vmatpush1.bf16.msra.mxu0 %v1160
        %1177 = vmatprep.subr.bf16.mxu0 0
        %1178 = vmatpush1.bf16.msra.mxu0 %v1159
        %1179 = vmatprep.subr.bf16.mxu0 0
        %1180 = vmatpush2.bf16.msra.mxu0 0
        %1181 = vmatprep.subr.bf16.mxu0 0
        %1182 = vmatpush2.bf16.msra.mxu0 0
        %1183 = vmatprep.subr.bf16.mxu0 0
        %1184 = vmatpush2.bf16.msra.mxu0 0
        %1185 = vmatprep.subr.bf16.mxu0 0
        %1186 = vmatpush2.bf16.msra.mxu0 0
        %1187 = vmatprep.subr.bf16.mxu0 0
        %1188 = vmatpush2.bf16.msra.mxu0 0
        %1189 = vmatprep.subr.bf16.mxu0 0
        %1190 = vmatpush2.bf16.msra.mxu0 0
        %1191 = vmatprep.subr.bf16.mxu0 0
        %1192 = vmatpush2.bf16.msra.mxu0 0
        %1193 = vmatprep.subr.bf16.mxu0 0
        %1194 = vmatpush2.bf16.msra.mxu0 0
        %1195 = vmatprep.mubr.bf16.mxu0 0
        %1196 = vmatmul.mubr.bf16.gmra.mxu0 %v849
        %v1197 = vpop.f32.mrf.mxu0
        %v1198 = vadd.f32 %v803, %v1197
        %v1199 = vpop.f32.mrf.mxu0
        %v1200 = vpop.f32.mrf.mxu0
        %v1201 = vpop.f32.mrf.mxu0
        %1202 = vdwg.mxu0
        %v1207 = vunpack.c.l.b16 %v732
        %v1208 = vunpack.c.l.b16 %v733
        %v1209 = vunpack.c.l.b16 %v734
        %v1210 = vunpack.c.l.b16 %v735
        %v1211 = vpack.c.b16 %v1208, %v1207
        %v1212 = vpack.c.b16 %v1210, %v1209
        %1215 = vmatprep.subr.bf16.mxu0 0
        %1216 = vmatpush1.bf16.msra.mxu0 0
        %1217 = vmatprep.subr.bf16.mxu0 0
        %1218 = vmatpush1.bf16.msra.mxu0 0
        %1219 = vmatprep.subr.bf16.mxu0 0
        %1220 = vmatpush1.bf16.msra.mxu0 0
        %1221 = vmatprep.subr.bf16.mxu0 0
        %1222 = vmatpush1.bf16.msra.mxu0 0
        %1223 = vmatprep.subr.bf16.mxu0 0
        %1224 = vmatpush1.bf16.msra.mxu0 0
        %1225 = vmatprep.subr.bf16.mxu0 0
        %1226 = vmatpush1.bf16.msra.mxu0 0
        %1227 = vmatprep.subr.bf16.mxu0 0
        %1228 = vmatpush1.bf16.msra.mxu0 %v1212
        %1229 = vmatprep.subr.bf16.mxu0 0
        %1230 = vmatpush1.bf16.msra.mxu0 %v1211
        %1231 = vmatprep.subr.bf16.mxu0 0
        %1232 = vmatpush2.bf16.msra.mxu0 0
        %1233 = vmatprep.subr.bf16.mxu0 0
        %1234 = vmatpush2.bf16.msra.mxu0 0
        %1235 = vmatprep.subr.bf16.mxu0 0
        %1236 = vmatpush2.bf16.msra.mxu0 0
        %1237 = vmatprep.subr.bf16.mxu0 0
        %1238 = vmatpush2.bf16.msra.mxu0 0
        %1239 = vmatprep.subr.bf16.mxu0 0
        %1240 = vmatpush2.bf16.msra.mxu0 0
        %1241 = vmatprep.subr.bf16.mxu0 0
        %1242 = vmatpush2.bf16.msra.mxu0 0
        %1243 = vmatprep.subr.bf16.mxu0 0
        %1244 = vmatpush2.bf16.msra.mxu0 0
        %1245 = vmatprep.subr.bf16.mxu0 0
        %1246 = vmatpush2.bf16.msra.mxu0 0
        %1247 = vmatprep.mubr.bf16.mxu0 0
        %1248 = vmatmul.mubr.bf16.gmra.mxu0 %v849
        %v1249 = vpop.f32.mrf.mxu0
        %v1250 = vadd.f32 %v807, %v1249
        %v1251 = vpop.f32.mrf.mxu0
        %v1252 = vpop.f32.mrf.mxu0
        %v1253 = vpop.f32.mrf.mxu0
        %1254 = vdwg.mxu0
        %v1259 = vunpack.c.l.b16 %v736
        %v1260 = vunpack.c.l.b16 %v737
        %v1261 = vunpack.c.l.b16 %v738
        %v1262 = vunpack.c.l.b16 %v739
        %v1263 = vpack.c.b16 %v1260, %v1259
        %v1264 = vpack.c.b16 %v1262, %v1261
        %1267 = vmatprep.subr.bf16.mxu0 0
        %1268 = vmatpush1.bf16.msra.mxu0 0
        %1269 = vmatprep.subr.bf16.mxu0 0
        %1270 = vmatpush1.bf16.msra.mxu0 0
        %1271 = vmatprep.subr.bf16.mxu0 0
        %1272 = vmatpush1.bf16.msra.mxu0 0
        %1273 = vmatprep.subr.bf16.mxu0 0
        %1274 = vmatpush1.bf16.msra.mxu0 0
        %1275 = vmatprep.subr.bf16.mxu0 0
        %1276 = vmatpush1.bf16.msra.mxu0 0
        %1277 = vmatprep.subr.bf16.mxu0 0
        %1278 = vmatpush1.bf16.msra.mxu0 0
        %1279 = vmatprep.subr.bf16.mxu0 0
        %1280 = vmatpush1.bf16.msra.mxu0 %v1264
        %1281 = vmatprep.subr.bf16.mxu0 0
        %1282 = vmatpush1.bf16.msra.mxu0 %v1263
        %1283 = vmatprep.subr.bf16.mxu0 0
        %1284 = vmatpush2.bf16.msra.mxu0 0
        %1285 = vmatprep.subr.bf16.mxu0 0
        %1286 = vmatpush2.bf16.msra.mxu0 0
        %1287 = vmatprep.subr.bf16.mxu0 0
        %1288 = vmatpush2.bf16.msra.mxu0 0
        %1289 = vmatprep.subr.bf16.mxu0 0
        %1290 = vmatpush2.bf16.msra.mxu0 0
        %1291 = vmatprep.subr.bf16.mxu0 0
        %1292 = vmatpush2.bf16.msra.mxu0 0
        %1293 = vmatprep.subr.bf16.mxu0 0
        %1294 = vmatpush2.bf16.msra.mxu0 0
        %1295 = vmatprep.subr.bf16.mxu0 0
        %1296 = vmatpush2.bf16.msra.mxu0 0
        %1297 = vmatprep.subr.bf16.mxu0 0
        %1298 = vmatpush2.bf16.msra.mxu0 0
        %1299 = vmatprep.mubr.bf16.mxu0 0
        %1300 = vmatmul.mubr.bf16.gmra.mxu0 %v849
        %v1301 = vpop.f32.mrf.mxu0
        %v1302 = vadd.f32 %v811, %v1301
        %v1303 = vpop.f32.mrf.mxu0
        %v1304 = vpop.f32.mrf.mxu0
        %v1305 = vpop.f32.mrf.mxu0
        %1306 = vdwg.mxu0
        %v1311 = vunpack.c.l.b16 %v740
        %v1312 = vunpack.c.l.b16 %v741
        %v1313 = vunpack.c.l.b16 %v742
        %v1314 = vunpack.c.l.b16 %v743
        %v1315 = vpack.c.b16 %v1312, %v1311
        %v1316 = vpack.c.b16 %v1314, %v1313
        %1319 = vmatprep.subr.bf16.mxu0 0
        %1320 = vmatpush1.bf16.msra.mxu0 0
        %1321 = vmatprep.subr.bf16.mxu0 0
        %1322 = vmatpush1.bf16.msra.mxu0 0
        %1323 = vmatprep.subr.bf16.mxu0 0
        %1324 = vmatpush1.bf16.msra.mxu0 0
        %1325 = vmatprep.subr.bf16.mxu0 0
        %1326 = vmatpush1.bf16.msra.mxu0 0
        %1327 = vmatprep.subr.bf16.mxu0 0
        %1328 = vmatpush1.bf16.msra.mxu0 0
        %1329 = vmatprep.subr.bf16.mxu0 0
        %1330 = vmatpush1.bf16.msra.mxu0 0
        %1331 = vmatprep.subr.bf16.mxu0 0
        %1332 = vmatpush1.bf16.msra.mxu0 %v1316
        %1333 = vmatprep.subr.bf16.mxu0 0
        %1334 = vmatpush1.bf16.msra.mxu0 %v1315
        %1335 = vmatprep.subr.bf16.mxu0 0
        %1336 = vmatpush2.bf16.msra.mxu0 0
        %1337 = vmatprep.subr.bf16.mxu0 0
        %1338 = vmatpush2.bf16.msra.mxu0 0
        %1339 = vmatprep.subr.bf16.mxu0 0
        %1340 = vmatpush2.bf16.msra.mxu0 0
        %1341 = vmatprep.subr.bf16.mxu0 0
        %1342 = vmatpush2.bf16.msra.mxu0 0
        %1343 = vmatprep.subr.bf16.mxu0 0
        %1344 = vmatpush2.bf16.msra.mxu0 0
        %1345 = vmatprep.subr.bf16.mxu0 0
        %1346 = vmatpush2.bf16.msra.mxu0 0
        %1347 = vmatprep.subr.bf16.mxu0 0
        %1348 = vmatpush2.bf16.msra.mxu0 0
        %1349 = vmatprep.subr.bf16.mxu0 0
        %1350 = vmatpush2.bf16.msra.mxu0 0
        %1351 = vmatprep.mubr.bf16.mxu0 0
        %1352 = vmatmul.mubr.bf16.gmra.mxu0 %v849
        %v1353 = vpop.f32.mrf.mxu0
        %v1354 = vadd.f32 %v815, %v1353
        %v1355 = vpop.f32.mrf.mxu0
        %v1356 = vpop.f32.mrf.mxu0
        %v1357 = vpop.f32.mrf.mxu0
        %1358 = vdwg.mxu0
        %v1363 = vunpack.c.l.b16 %v744
        %v1364 = vunpack.c.l.b16 %v745
        %v1365 = vunpack.c.l.b16 %v746
        %v1366 = vunpack.c.l.b16 %v747
        %v1367 = vpack.c.b16 %v1364, %v1363
        %v1368 = vpack.c.b16 %v1366, %v1365
        %1371 = vmatprep.subr.bf16.mxu0 0
        %1372 = vmatpush1.bf16.msra.mxu0 0
        %1373 = vmatprep.subr.bf16.mxu0 0
        %1374 = vmatpush1.bf16.msra.mxu0 0
        %1375 = vmatprep.subr.bf16.mxu0 0
        %1376 = vmatpush1.bf16.msra.mxu0 0
        %1377 = vmatprep.subr.bf16.mxu0 0
        %1378 = vmatpush1.bf16.msra.mxu0 0
        %1379 = vmatprep.subr.bf16.mxu0 0
        %1380 = vmatpush1.bf16.msra.mxu0 0
        %1381 = vmatprep.subr.bf16.mxu0 0
        %1382 = vmatpush1.bf16.msra.mxu0 0
        %1383 = vmatprep.subr.bf16.mxu0 0
        %1384 = vmatpush1.bf16.msra.mxu0 %v1368
        %1385 = vmatprep.subr.bf16.mxu0 0
        %1386 = vmatpush1.bf16.msra.mxu0 %v1367
        %1387 = vmatprep.subr.bf16.mxu0 0
        %1388 = vmatpush2.bf16.msra.mxu0 0
        %1389 = vmatprep.subr.bf16.mxu0 0
        %1390 = vmatpush2.bf16.msra.mxu0 0
        %1391 = vmatprep.subr.bf16.mxu0 0
        %1392 = vmatpush2.bf16.msra.mxu0 0
        %1393 = vmatprep.subr.bf16.mxu0 0
        %1394 = vmatpush2.bf16.msra.mxu0 0
        %1395 = vmatprep.subr.bf16.mxu0 0
        %1396 = vmatpush2.bf16.msra.mxu0 0
        %1397 = vmatprep.subr.bf16.mxu0 0
        %1398 = vmatpush2.bf16.msra.mxu0 0
        %1399 = vmatprep.subr.bf16.mxu0 0
        %1400 = vmatpush2.bf16.msra.mxu0 0
        %1401 = vmatprep.subr.bf16.mxu0 0
        %1402 = vmatpush2.bf16.msra.mxu0 0
        %1403 = vmatprep.mubr.bf16.mxu0 0
        %1404 = vmatmul.mubr.bf16.gmra.mxu0 %v849
        %v1405 = vpop.f32.mrf.mxu0
        %v1406 = vadd.f32 %v819, %v1405
        %v1407 = vpop.f32.mrf.mxu0
        %v1408 = vpop.f32.mrf.mxu0
        %v1409 = vpop.f32.mrf.mxu0
        %1410 = vdwg.mxu0
        %v1415 = vunpack.c.l.b16 %v748
        %v1416 = vunpack.c.l.b16 %v749
        %v1417 = vunpack.c.l.b16 %v750
        %v1418 = vunpack.c.l.b16 %v751
        %v1419 = vpack.c.b16 %v1416, %v1415
        %v1420 = vpack.c.b16 %v1418, %v1417
        %1423 = vmatprep.subr.bf16.mxu0 0
        %1424 = vmatpush1.bf16.msra.mxu0 0
        %1425 = vmatprep.subr.bf16.mxu0 0
        %1426 = vmatpush1.bf16.msra.mxu0 0
        %1427 = vmatprep.subr.bf16.mxu0 0
        %1428 = vmatpush1.bf16.msra.mxu0 0
        %1429 = vmatprep.subr.bf16.mxu0 0
        %1430 = vmatpush1.bf16.msra.mxu0 0
        %1431 = vmatprep.subr.bf16.mxu0 0
        %1432 = vmatpush1.bf16.msra.mxu0 0
        %1433 = vmatprep.subr.bf16.mxu0 0
        %1434 = vmatpush1.bf16.msra.mxu0 0
        %1435 = vmatprep.subr.bf16.mxu0 0
        %1436 = vmatpush1.bf16.msra.mxu0 %v1420
        %1437 = vmatprep.subr.bf16.mxu0 0
        %1438 = vmatpush1.bf16.msra.mxu0 %v1419
        %1439 = vmatprep.subr.bf16.mxu0 0
        %1440 = vmatpush2.bf16.msra.mxu0 0
        %1441 = vmatprep.subr.bf16.mxu0 0
        %1442 = vmatpush2.bf16.msra.mxu0 0
        %1443 = vmatprep.subr.bf16.mxu0 0
        %1444 = vmatpush2.bf16.msra.mxu0 0
        %1445 = vmatprep.subr.bf16.mxu0 0
        %1446 = vmatpush2.bf16.msra.mxu0 0
        %1447 = vmatprep.subr.bf16.mxu0 0
        %1448 = vmatpush2.bf16.msra.mxu0 0
        %1449 = vmatprep.subr.bf16.mxu0 0
        %1450 = vmatpush2.bf16.msra.mxu0 0
        %1451 = vmatprep.subr.bf16.mxu0 0
        %1452 = vmatpush2.bf16.msra.mxu0 0
        %1453 = vmatprep.subr.bf16.mxu0 0
        %1454 = vmatpush2.bf16.msra.mxu0 0
        %1455 = vmatprep.mubr.bf16.mxu0 0
        %1456 = vmatmul.mubr.bf16.gmra.mxu0 %v849
        %v1457 = vpop.f32.mrf.mxu0
        %v1458 = vadd.f32 %v823, %v1457
        %v1459 = vpop.f32.mrf.mxu0
        %v1460 = vpop.f32.mrf.mxu0
        %v1461 = vpop.f32.mrf.mxu0
        %1462 = vdwg.mxu0
        %vm1463 = vcmask 64512
        %v1465 = vsel %vm1463, %v886, 0
        %v1468 = vsel %vm1463, %v1094, 0
        %1470 = vmatprep.subr.mxu0 0.0
        %1471 = vmatpush1.xpose.msra.mxu0 0.0
        %1472 = vmatprep.subr.mxu0 0.0
        %1473 = vmatpush1.xpose.msra.mxu0 0.0
        %1474 = vmatprep.subr.mxu0 0.0
        %1475 = vmatpush1.xpose.msra.mxu0 0.0
        %1476 = vmatprep.subr.mxu0 0.0
        %1477 = vmatpush1.xpose.msra.mxu0 0.0
        %1478 = vmatprep.subr.mxu0 0.0
        %1479 = vmatpush1.xpose.msra.mxu0 0.0
        %1480 = vmatprep.subr.mxu0 0.0
        %1481 = vmatpush1.xpose.msra.mxu0 0.0
        %1482 = vmatprep.subr.mxu0 0.0
        %1483 = vmatpush1.xpose.msra.mxu0 0.0
        %1484 = vmatprep.subr.mxu0 0.0
        %1485 = vmatpush1.xpose.msra.mxu0 0.0
        %1486 = vmatprep.subr.mxu0 0.0
        %1487 = vmatpush1.xpose.msra.mxu0 0.0
        %1488 = vmatprep.subr.mxu0 0.0
        %1489 = vmatpush1.xpose.msra.mxu0 0.0
        %1490 = vmatprep.subr.mxu0 0.0
        %1491 = vmatpush1.xpose.msra.mxu0 0.0
        %1492 = vmatprep.subr.mxu0 0.0
        %1493 = vmatpush1.xpose.msra.mxu0 0.0
        %1494 = vmatprep.subr.mxu0 0.0
        %1495 = vmatpush1.xpose.msra.mxu0 0.0
        %1496 = vmatprep.subr.mxu0 0.0
        %1497 = vmatpush1.xpose.msra.mxu0 0.0
        %1498 = vmatprep.subr.mxu0 0.0
        %1499 = vmatpush1.xpose.msra.mxu0 0.0
        %1500 = vmatprep.subr.mxu0 0.0
        %1501 = vmatpush1.xpose.msra.mxu0 %v1468
        %1502 = vmatprep.subr.mxu0 0.0
        %1503 = vmatpush2.xpose.msra.mxu0 0.0
        %1504 = vmatprep.subr.mxu0 0.0
        %1505 = vmatpush2.xpose.msra.mxu0 0.0
        %1506 = vmatprep.subr.mxu0 0.0
        %1507 = vmatpush2.xpose.msra.mxu0 0.0
        %1508 = vmatprep.subr.mxu0 0.0
        %1509 = vmatpush2.xpose.msra.mxu0 0.0
        %1510 = vmatprep.subr.mxu0 0.0
        %1511 = vmatpush2.xpose.msra.mxu0 0.0
        %1512 = vmatprep.subr.mxu0 0.0
        %1513 = vmatpush2.xpose.msra.mxu0 0.0
        %1514 = vmatprep.subr.mxu0 0.0
        %1515 = vmatpush2.xpose.msra.mxu0 0.0
        %1516 = vmatprep.subr.mxu0 0.0
        %1517 = vmatpush2.xpose.msra.mxu0 0.0
        %1518 = vmatprep.subr.mxu0 0.0
        %1519 = vmatpush2.xpose.msra.mxu0 0.0
        %1520 = vmatprep.subr.mxu0 0.0
        %1521 = vmatpush2.xpose.msra.mxu0 0.0
        %1522 = vmatprep.subr.mxu0 0.0
        %1523 = vmatpush2.xpose.msra.mxu0 0.0
        %1524 = vmatprep.subr.mxu0 0.0
        %1525 = vmatpush2.xpose.msra.mxu0 0.0
        %1526 = vmatprep.subr.mxu0 0.0
        %1527 = vmatpush2.xpose.msra.mxu0 0.0
        %1528 = vmatprep.subr.mxu0 0.0
        %1529 = vmatpush2.xpose.msra.mxu0 0.0
        %1530 = vmatprep.subr.mxu0 0.0
        %1531 = vmatpush2.xpose.msra.mxu0 0.0
        %1532 = vmatprep.subr.mxu0 0.0
        %1533 = vmatpush2.xpose.msra.mxu0 0.0
        %1534 = vmatprep.mubr.f32.mxu0 0.0
        %1535 = vmatmul.mubr.f32.gmra.mxu0 %v1465
        %v1536 = vpop.f32.mrf.mxu0
        %v1537 = vadd.f32 %v671, %v1536
        %v1538 = vpop.f32.mrf.mxu0
        %1539 = vdwg.mxu0
        %v1541 = vsel %vm1463, %v938, 0
        %v1544 = vsel %vm1463, %v1146, 0
        %1546 = vmatprep.subr.mxu0 0.0
        %1547 = vmatpush1.xpose.msra.mxu0 0.0
        %1548 = vmatprep.subr.mxu0 0.0
        %1549 = vmatpush1.xpose.msra.mxu0 0.0
        %1550 = vmatprep.subr.mxu0 0.0
        %1551 = vmatpush1.xpose.msra.mxu0 0.0
        %1552 = vmatprep.subr.mxu0 0.0
        %1553 = vmatpush1.xpose.msra.mxu0 0.0
        %1554 = vmatprep.subr.mxu0 0.0
        %1555 = vmatpush1.xpose.msra.mxu0 0.0
        %1556 = vmatprep.subr.mxu0 0.0
        %1557 = vmatpush1.xpose.msra.mxu0 0.0
        %1558 = vmatprep.subr.mxu0 0.0
        %1559 = vmatpush1.xpose.msra.mxu0 0.0
        %1560 = vmatprep.subr.mxu0 0.0
        %1561 = vmatpush1.xpose.msra.mxu0 0.0
        %1562 = vmatprep.subr.mxu0 0.0
        %1563 = vmatpush1.xpose.msra.mxu0 0.0
        %1564 = vmatprep.subr.mxu0 0.0
        %1565 = vmatpush1.xpose.msra.mxu0 0.0
        %1566 = vmatprep.subr.mxu0 0.0
        %1567 = vmatpush1.xpose.msra.mxu0 0.0
        %1568 = vmatprep.subr.mxu0 0.0
        %1569 = vmatpush1.xpose.msra.mxu0 0.0
        %1570 = vmatprep.subr.mxu0 0.0
        %1571 = vmatpush1.xpose.msra.mxu0 0.0
        %1572 = vmatprep.subr.mxu0 0.0
        %1573 = vmatpush1.xpose.msra.mxu0 0.0
        %1574 = vmatprep.subr.mxu0 0.0
        %1575 = vmatpush1.xpose.msra.mxu0 0.0
        %1576 = vmatprep.subr.mxu0 0.0
        %1577 = vmatpush1.xpose.msra.mxu0 %v1544
        %1578 = vmatprep.subr.mxu0 0.0
        %1579 = vmatpush2.xpose.msra.mxu0 0.0
        %1580 = vmatprep.subr.mxu0 0.0
        %1581 = vmatpush2.xpose.msra.mxu0 0.0
        %1582 = vmatprep.subr.mxu0 0.0
        %1583 = vmatpush2.xpose.msra.mxu0 0.0
        %1584 = vmatprep.subr.mxu0 0.0
        %1585 = vmatpush2.xpose.msra.mxu0 0.0
        %1586 = vmatprep.subr.mxu0 0.0
        %1587 = vmatpush2.xpose.msra.mxu0 0.0
        %1588 = vmatprep.subr.mxu0 0.0
        %1589 = vmatpush2.xpose.msra.mxu0 0.0
        %1590 = vmatprep.subr.mxu0 0.0
        %1591 = vmatpush2.xpose.msra.mxu0 0.0
        %1592 = vmatprep.subr.mxu0 0.0
        %1593 = vmatpush2.xpose.msra.mxu0 0.0
        %1594 = vmatprep.subr.mxu0 0.0
        %1595 = vmatpush2.xpose.msra.mxu0 0.0
        %1596 = vmatprep.subr.mxu0 0.0
        %1597 = vmatpush2.xpose.msra.mxu0 0.0
        %1598 = vmatprep.subr.mxu0 0.0
        %1599 = vmatpush2.xpose.msra.mxu0 0.0
        %1600 = vmatprep.subr.mxu0 0.0
        %1601 = vmatpush2.xpose.msra.mxu0 0.0
        %1602 = vmatprep.subr.mxu0 0.0
        %1603 = vmatpush2.xpose.msra.mxu0 0.0
        %1604 = vmatprep.subr.mxu0 0.0
        %1605 = vmatpush2.xpose.msra.mxu0 0.0
        %1606 = vmatprep.subr.mxu0 0.0
        %1607 = vmatpush2.xpose.msra.mxu0 0.0
        %1608 = vmatprep.subr.mxu0 0.0
        %1609 = vmatpush2.xpose.msra.mxu0 0.0
        %1610 = vmatprep.mubr.f32.mxu0 0.0
        %1611 = vmatmul.mubr.f32.gmra.mxu0 %v1541
        %v1612 = vpop.f32.mrf.mxu0
        %v1613 = vadd.f32 %v671, %v1612
        %v1614 = vpop.f32.mrf.mxu0
        %1615 = vdwg.mxu0
        %v1617 = vsel %vm1463, %v990, 0
        %v1620 = vsel %vm1463, %v1198, 0
        %1622 = vmatprep.subr.mxu0 0.0
        %1623 = vmatpush1.xpose.msra.mxu0 0.0
        %1624 = vmatprep.subr.mxu0 0.0
        %1625 = vmatpush1.xpose.msra.mxu0 0.0
        %1626 = vmatprep.subr.mxu0 0.0
        %1627 = vmatpush1.xpose.msra.mxu0 0.0
        %1628 = vmatprep.subr.mxu0 0.0
        %1629 = vmatpush1.xpose.msra.mxu0 0.0
        %1630 = vmatprep.subr.mxu0 0.0
        %1631 = vmatpush1.xpose.msra.mxu0 0.0
        %1632 = vmatprep.subr.mxu0 0.0
        %1633 = vmatpush1.xpose.msra.mxu0 0.0
        %1634 = vmatprep.subr.mxu0 0.0
        %1635 = vmatpush1.xpose.msra.mxu0 0.0
        %1636 = vmatprep.subr.mxu0 0.0
        %1637 = vmatpush1.xpose.msra.mxu0 0.0
        %1638 = vmatprep.subr.mxu0 0.0
        %1639 = vmatpush1.xpose.msra.mxu0 0.0
        %1640 = vmatprep.subr.mxu0 0.0
        %1641 = vmatpush1.xpose.msra.mxu0 0.0
        %1642 = vmatprep.subr.mxu0 0.0
        %1643 = vmatpush1.xpose.msra.mxu0 0.0
        %1644 = vmatprep.subr.mxu0 0.0
        %1645 = vmatpush1.xpose.msra.mxu0 0.0
        %1646 = vmatprep.subr.mxu0 0.0
        %1647 = vmatpush1.xpose.msra.mxu0 0.0
        %1648 = vmatprep.subr.mxu0 0.0
        %1649 = vmatpush1.xpose.msra.mxu0 0.0
        %1650 = vmatprep.subr.mxu0 0.0
        %1651 = vmatpush1.xpose.msra.mxu0 0.0
        %1652 = vmatprep.subr.mxu0 0.0
        %1653 = vmatpush1.xpose.msra.mxu0 %v1620
        %1654 = vmatprep.subr.mxu0 0.0
        %1655 = vmatpush2.xpose.msra.mxu0 0.0
        %1656 = vmatprep.subr.mxu0 0.0
        %1657 = vmatpush2.xpose.msra.mxu0 0.0
        %1658 = vmatprep.subr.mxu0 0.0
        %1659 = vmatpush2.xpose.msra.mxu0 0.0
        %1660 = vmatprep.subr.mxu0 0.0
        %1661 = vmatpush2.xpose.msra.mxu0 0.0
        %1662 = vmatprep.subr.mxu0 0.0
        %1663 = vmatpush2.xpose.msra.mxu0 0.0
        %1664 = vmatprep.subr.mxu0 0.0
        %1665 = vmatpush2.xpose.msra.mxu0 0.0
        %1666 = vmatprep.subr.mxu0 0.0
        %1667 = vmatpush2.xpose.msra.mxu0 0.0
        %1668 = vmatprep.subr.mxu0 0.0
        %1669 = vmatpush2.xpose.msra.mxu0 0.0
        %1670 = vmatprep.subr.mxu0 0.0
        %1671 = vmatpush2.xpose.msra.mxu0 0.0
        %1672 = vmatprep.subr.mxu0 0.0
        %1673 = vmatpush2.xpose.msra.mxu0 0.0
        %1674 = vmatprep.subr.mxu0 0.0
        %1675 = vmatpush2.xpose.msra.mxu0 0.0
        %1676 = vmatprep.subr.mxu0 0.0
        %1677 = vmatpush2.xpose.msra.mxu0 0.0
        %1678 = vmatprep.subr.mxu0 0.0
        %1679 = vmatpush2.xpose.msra.mxu0 0.0
        %1680 = vmatprep.subr.mxu0 0.0
        %1681 = vmatpush2.xpose.msra.mxu0 0.0
        %1682 = vmatprep.subr.mxu0 0.0
        %1683 = vmatpush2.xpose.msra.mxu0 0.0
        %1684 = vmatprep.subr.mxu0 0.0
        %1685 = vmatpush2.xpose.msra.mxu0 0.0
        %1686 = vmatprep.mubr.f32.mxu0 0.0
        %1687 = vmatmul.mubr.f32.gmra.mxu0 %v1617
        %v1688 = vpop.f32.mrf.mxu0
        %v1689 = vadd.f32 %v671, %v1688
        %v1690 = vpop.f32.mrf.mxu0
        %1691 = vdwg.mxu0
        %v1693 = vsel %vm1463, %v1042, 0
        %v1696 = vsel %vm1463, %v1250, 0
        %1698 = vmatprep.subr.mxu0 0.0
        %1699 = vmatpush1.xpose.msra.mxu0 0.0
        %1700 = vmatprep.subr.mxu0 0.0
        %1701 = vmatpush1.xpose.msra.mxu0 0.0
        %1702 = vmatprep.subr.mxu0 0.0
        %1703 = vmatpush1.xpose.msra.mxu0 0.0
        %1704 = vmatprep.subr.mxu0 0.0
        %1705 = vmatpush1.xpose.msra.mxu0 0.0
        %1706 = vmatprep.subr.mxu0 0.0
        %1707 = vmatpush1.xpose.msra.mxu0 0.0
        %1708 = vmatprep.subr.mxu0 0.0
        %1709 = vmatpush1.xpose.msra.mxu0 0.0
        %1710 = vmatprep.subr.mxu0 0.0
        %1711 = vmatpush1.xpose.msra.mxu0 0.0
        %1712 = vmatprep.subr.mxu0 0.0
        %1713 = vmatpush1.xpose.msra.mxu0 0.0
        %1714 = vmatprep.subr.mxu0 0.0
        %1715 = vmatpush1.xpose.msra.mxu0 0.0
        %1716 = vmatprep.subr.mxu0 0.0
        %1717 = vmatpush1.xpose.msra.mxu0 0.0
        %1718 = vmatprep.subr.mxu0 0.0
        %1719 = vmatpush1.xpose.msra.mxu0 0.0
        %1720 = vmatprep.subr.mxu0 0.0
        %1721 = vmatpush1.xpose.msra.mxu0 0.0
        %1722 = vmatprep.subr.mxu0 0.0
        %1723 = vmatpush1.xpose.msra.mxu0 0.0
        %1724 = vmatprep.subr.mxu0 0.0
        %1725 = vmatpush1.xpose.msra.mxu0 0.0
        %1726 = vmatprep.subr.mxu0 0.0
        %1727 = vmatpush1.xpose.msra.mxu0 0.0
        %1728 = vmatprep.subr.mxu0 0.0
        %1729 = vmatpush1.xpose.msra.mxu0 %v1696
        %1730 = vmatprep.subr.mxu0 0.0
        %1731 = vmatpush2.xpose.msra.mxu0 0.0
        %1732 = vmatprep.subr.mxu0 0.0
        %1733 = vmatpush2.xpose.msra.mxu0 0.0
        %1734 = vmatprep.subr.mxu0 0.0
        %1735 = vmatpush2.xpose.msra.mxu0 0.0
        %1736 = vmatprep.subr.mxu0 0.0
        %1737 = vmatpush2.xpose.msra.mxu0 0.0
        %1738 = vmatprep.subr.mxu0 0.0
        %1739 = vmatpush2.xpose.msra.mxu0 0.0
        %1740 = vmatprep.subr.mxu0 0.0
        %1741 = vmatpush2.xpose.msra.mxu0 0.0
        %1742 = vmatprep.subr.mxu0 0.0
        %1743 = vmatpush2.xpose.msra.mxu0 0.0
        %1744 = vmatprep.subr.mxu0 0.0
        %1745 = vmatpush2.xpose.msra.mxu0 0.0
        %1746 = vmatprep.subr.mxu0 0.0
        %1747 = vmatpush2.xpose.msra.mxu0 0.0
        %1748 = vmatprep.subr.mxu0 0.0
        %1749 = vmatpush2.xpose.msra.mxu0 0.0
        %1750 = vmatprep.subr.mxu0 0.0
        %1751 = vmatpush2.xpose.msra.mxu0 0.0
        %1752 = vmatprep.subr.mxu0 0.0
        %1753 = vmatpush2.xpose.msra.mxu0 0.0
        %1754 = vmatprep.subr.mxu0 0.0
        %1755 = vmatpush2.xpose.msra.mxu0 0.0
        %1756 = vmatprep.subr.mxu0 0.0
        %1757 = vmatpush2.xpose.msra.mxu0 0.0
        %1758 = vmatprep.subr.mxu0 0.0
        %1759 = vmatpush2.xpose.msra.mxu0 0.0
        %1760 = vmatprep.subr.mxu0 0.0
        %1761 = vmatpush2.xpose.msra.mxu0 0.0
        %1762 = vmatprep.mubr.f32.mxu0 0.0
        %1763 = vmatmul.mubr.f32.gmra.mxu0 %v1693
        %v1764 = vpop.f32.mrf.mxu0
        %v1765 = vadd.f32 %v671, %v1764
        %v1766 = vpop.f32.mrf.mxu0
        %1767 = vdwg.mxu0
        %v1768 = vsel %vm1463, %v1537, -inf
        %1769 = vmax.xlane.f32.xlu0 %v1768
        %v1770 = vpop.xlane.xlu0 %1769
        %v1771 = vsel %vm1463, %v1613, -inf
        %1772 = vmax.xlane.f32.xlu0 %v1771
        %v1773 = vpop.xlane.xlu0 %1772
        %v1774 = vsel %vm1463, %v1689, -inf
        %1775 = vmax.xlane.f32.xlu0 %v1774
        %v1776 = vpop.xlane.xlu0 %1775
        %v1777 = vsel %vm1463, %v1765, -inf
        %1778 = vmax.xlane.f32.xlu0 %v1777
        %v1779 = vpop.xlane.xlu0 %1778
        %v1780 = vsub.f32 %v1537, %v1770
        %v1781 = vsub.f32 %v1613, %v1773
        %v1782 = vsub.f32 %v1689, %v1776
        %v1783 = vsub.f32 %v1765, %v1779
        %v1784 = vmul.f32 %v1780, 1.442695
        %v1785 = vpow.pop %v1784
        %v1786 = vmul.f32 %v1781, 1.442695
        %v1787 = vpow.pop %v1786
        %v1788 = vmul.f32 %v1782, 1.442695
        %v1789 = vpow.pop %v1788
        %v1790 = vmul.f32 %v1783, 1.442695
        %v1791 = vpow.pop %v1790
        %v1792 = vsel %vm1463, %v1785, 0.0
        %1793 = vadd.xlane.f32.xlu0 %v1792
        %v1794 = vpop.xlane.xlu0 %1793
        %v1795 = vsel %vm1463, %v1787, 0.0
        %1796 = vadd.xlane.f32.xlu0 %v1795
        %v1797 = vpop.xlane.xlu0 %1796
        %v1798 = vsel %vm1463, %v1789, 0.0
        %1799 = vadd.xlane.f32.xlu0 %v1798
        %v1800 = vpop.xlane.xlu0 %1799
        %v1801 = vsel %vm1463, %v1791, 0.0
        %1802 = vadd.xlane.f32.xlu0 %v1801
        %v1803 = vpop.xlane.xlu0 %1802
        %v1804 = vrcp.pop %v1794
        %v1805 = vrcp.pop %v1797
        %v1806 = vrcp.pop %v1800
        %v1807 = vrcp.pop %v1803
        %v1808 = vmul.f32 %v1785, %v1804
        %v1809 = vmul.f32 %v1787, %v1805
        %v1810 = vmul.f32 %v1789, %v1806
        %v1811 = vmul.f32 %v1791, %v1807
        %v1813 = vsel %vm1463, %v1808, 0
        %1815 = vmatprep.subr.mxu0 0.0
        %1816 = vmatpush1.msra.mxu0 0.0
        %1817 = vmatprep.subr.mxu0 0.0
        %1818 = vmatpush1.msra.mxu0 0.0
        %1819 = vmatprep.subr.mxu0 0.0
        %1820 = vmatpush1.msra.mxu0 0.0
        %1821 = vmatprep.subr.mxu0 0.0
        %1822 = vmatpush1.msra.mxu0 0.0
        %1823 = vmatprep.subr.mxu0 0.0
        %1824 = vmatpush1.msra.mxu0 0.0
        %1825 = vmatprep.subr.mxu0 0.0
        %1826 = vmatpush1.msra.mxu0 0.0
        %1827 = vmatprep.subr.mxu0 0.0
        %1828 = vmatpush1.msra.mxu0 0.0
        %1829 = vmatprep.subr.mxu0 0.0
        %1830 = vmatpush1.msra.mxu0 0.0
        %1831 = vmatprep.subr.mxu0 0.0
        %1832 = vmatpush1.msra.mxu0 0.0
        %1833 = vmatprep.subr.mxu0 0.0
        %1834 = vmatpush1.msra.mxu0 0.0
        %1835 = vmatprep.subr.mxu0 0.0
        %1836 = vmatpush1.msra.mxu0 0.0
        %1837 = vmatprep.subr.mxu0 0.0
        %1838 = vmatpush1.msra.mxu0 0.0
        %1839 = vmatprep.subr.mxu0 0.0
        %1840 = vmatpush1.msra.mxu0 0.0
        %1841 = vmatprep.subr.mxu0 0.0
        %1842 = vmatpush1.msra.mxu0 0.0
        %1843 = vmatprep.subr.mxu0 0.0
        %1844 = vmatpush1.msra.mxu0 0.0
        %1845 = vmatprep.subr.mxu0 0.0
        %1846 = vmatpush1.msra.mxu0 %v1302
        %1847 = vmatprep.subr.mxu0 0.0
        %1848 = vmatpush2.msra.mxu0 0.0
        %1849 = vmatprep.subr.mxu0 0.0
        %1850 = vmatpush2.msra.mxu0 0.0
        %1851 = vmatprep.subr.mxu0 0.0
        %1852 = vmatpush2.msra.mxu0 0.0
        %1853 = vmatprep.subr.mxu0 0.0
        %1854 = vmatpush2.msra.mxu0 0.0
        %1855 = vmatprep.subr.mxu0 0.0
        %1856 = vmatpush2.msra.mxu0 0.0
        %1857 = vmatprep.subr.mxu0 0.0
        %1858 = vmatpush2.msra.mxu0 0.0
        %1859 = vmatprep.subr.mxu0 0.0
        %1860 = vmatpush2.msra.mxu0 0.0
        %1861 = vmatprep.subr.mxu0 0.0
        %1862 = vmatpush2.msra.mxu0 0.0
        %1863 = vmatprep.subr.mxu0 0.0
        %1864 = vmatpush2.msra.mxu0 0.0
        %1865 = vmatprep.subr.mxu0 0.0
        %1866 = vmatpush2.msra.mxu0 0.0
        %1867 = vmatprep.subr.mxu0 0.0
        %1868 = vmatpush2.msra.mxu0 0.0
        %1869 = vmatprep.subr.mxu0 0.0
        %1870 = vmatpush2.msra.mxu0 0.0
        %1871 = vmatprep.subr.mxu0 0.0
        %1872 = vmatpush2.msra.mxu0 0.0
        %1873 = vmatprep.subr.mxu0 0.0
        %1874 = vmatpush2.msra.mxu0 0.0
        %1875 = vmatprep.subr.mxu0 0.0
        %1876 = vmatpush2.msra.mxu0 0.0
        %1877 = vmatprep.subr.mxu0 0.0
        %1878 = vmatpush2.msra.mxu0 0.0
        %1879 = vmatprep.mubr.f32.mxu0 0.0
        %1880 = vmatmul.mubr.f32.gmra.mxu0 %v1813
        %v1881 = vpop.f32.mrf.mxu0
        %v1882 = vadd.f32 0.0, %v1881
        %v1883 = vpop.f32.mrf.mxu0
        %1884 = vdwg.mxu0
        %v1886 = vsel %vm1463, %v1809, 0
        %1888 = vmatprep.subr.mxu0 0.0
        %1889 = vmatpush1.msra.mxu0 0.0
        %1890 = vmatprep.subr.mxu0 0.0
        %1891 = vmatpush1.msra.mxu0 0.0
        %1892 = vmatprep.subr.mxu0 0.0
        %1893 = vmatpush1.msra.mxu0 0.0
        %1894 = vmatprep.subr.mxu0 0.0
        %1895 = vmatpush1.msra.mxu0 0.0
        %1896 = vmatprep.subr.mxu0 0.0
        %1897 = vmatpush1.msra.mxu0 0.0
        %1898 = vmatprep.subr.mxu0 0.0
        %1899 = vmatpush1.msra.mxu0 0.0
        %1900 = vmatprep.subr.mxu0 0.0
        %1901 = vmatpush1.msra.mxu0 0.0
        %1902 = vmatprep.subr.mxu0 0.0
        %1903 = vmatpush1.msra.mxu0 0.0
        %1904 = vmatprep.subr.mxu0 0.0
        %1905 = vmatpush1.msra.mxu0 0.0
        %1906 = vmatprep.subr.mxu0 0.0
        %1907 = vmatpush1.msra.mxu0 0.0
        %1908 = vmatprep.subr.mxu0 0.0
        %1909 = vmatpush1.msra.mxu0 0.0
        %1910 = vmatprep.subr.mxu0 0.0
        %1911 = vmatpush1.msra.mxu0 0.0
        %1912 = vmatprep.subr.mxu0 0.0
        %1913 = vmatpush1.msra.mxu0 0.0
        %1914 = vmatprep.subr.mxu0 0.0
        %1915 = vmatpush1.msra.mxu0 0.0
        %1916 = vmatprep.subr.mxu0 0.0
        %1917 = vmatpush1.msra.mxu0 0.0
        %1918 = vmatprep.subr.mxu0 0.0
        %1919 = vmatpush1.msra.mxu0 %v1354
        %1920 = vmatprep.subr.mxu0 0.0
        %1921 = vmatpush2.msra.mxu0 0.0
        %1922 = vmatprep.subr.mxu0 0.0
        %1923 = vmatpush2.msra.mxu0 0.0
        %1924 = vmatprep.subr.mxu0 0.0
        %1925 = vmatpush2.msra.mxu0 0.0
        %1926 = vmatprep.subr.mxu0 0.0
        %1927 = vmatpush2.msra.mxu0 0.0
        %1928 = vmatprep.subr.mxu0 0.0
        %1929 = vmatpush2.msra.mxu0 0.0
        %1930 = vmatprep.subr.mxu0 0.0
        %1931 = vmatpush2.msra.mxu0 0.0
        %1932 = vmatprep.subr.mxu0 0.0
        %1933 = vmatpush2.msra.mxu0 0.0
        %1934 = vmatprep.subr.mxu0 0.0
        %1935 = vmatpush2.msra.mxu0 0.0
        %1936 = vmatprep.subr.mxu0 0.0
        %1937 = vmatpush2.msra.mxu0 0.0
        %1938 = vmatprep.subr.mxu0 0.0
        %1939 = vmatpush2.msra.mxu0 0.0
        %1940 = vmatprep.subr.mxu0 0.0
        %1941 = vmatpush2.msra.mxu0 0.0
        %1942 = vmatprep.subr.mxu0 0.0
        %1943 = vmatpush2.msra.mxu0 0.0
        %1944 = vmatprep.subr.mxu0 0.0
        %1945 = vmatpush2.msra.mxu0 0.0
        %1946 = vmatprep.subr.mxu0 0.0
        %1947 = vmatpush2.msra.mxu0 0.0
        %1948 = vmatprep.subr.mxu0 0.0
        %1949 = vmatpush2.msra.mxu0 0.0
        %1950 = vmatprep.subr.mxu0 0.0
        %1951 = vmatpush2.msra.mxu0 0.0
        %1952 = vmatprep.mubr.f32.mxu0 0.0
        %1953 = vmatmul.mubr.f32.gmra.mxu0 %v1886
        %v1954 = vpop.f32.mrf.mxu0
        %v1955 = vadd.f32 0.0, %v1954
        %v1956 = vpop.f32.mrf.mxu0
        %1957 = vdwg.mxu0
        %v1959 = vsel %vm1463, %v1810, 0
        %1961 = vmatprep.subr.mxu0 0.0
        %1962 = vmatpush1.msra.mxu0 0.0
        %1963 = vmatprep.subr.mxu0 0.0
        %1964 = vmatpush1.msra.mxu0 0.0
        %1965 = vmatprep.subr.mxu0 0.0
        %1966 = vmatpush1.msra.mxu0 0.0
        %1967 = vmatprep.subr.mxu0 0.0
        %1968 = vmatpush1.msra.mxu0 0.0
        %1969 = vmatprep.subr.mxu0 0.0
        %1970 = vmatpush1.msra.mxu0 0.0
        %1971 = vmatprep.subr.mxu0 0.0
        %1972 = vmatpush1.msra.mxu0 0.0
        %1973 = vmatprep.subr.mxu0 0.0
        %1974 = vmatpush1.msra.mxu0 0.0
        %1975 = vmatprep.subr.mxu0 0.0
        %1976 = vmatpush1.msra.mxu0 0.0
        %1977 = vmatprep.subr.mxu0 0.0
        %1978 = vmatpush1.msra.mxu0 0.0
        %1979 = vmatprep.subr.mxu0 0.0
        %1980 = vmatpush1.msra.mxu0 0.0
        %1981 = vmatprep.subr.mxu0 0.0
        %1982 = vmatpush1.msra.mxu0 0.0
        %1983 = vmatprep.subr.mxu0 0.0
        %1984 = vmatpush1.msra.mxu0 0.0
        %1985 = vmatprep.subr.mxu0 0.0
        %1986 = vmatpush1.msra.mxu0 0.0
        %1987 = vmatprep.subr.mxu0 0.0
        %1988 = vmatpush1.msra.mxu0 0.0
        %1989 = vmatprep.subr.mxu0 0.0
        %1990 = vmatpush1.msra.mxu0 0.0
        %1991 = vmatprep.subr.mxu0 0.0
        %1992 = vmatpush1.msra.mxu0 %v1406
        %1993 = vmatprep.subr.mxu0 0.0
        %1994 = vmatpush2.msra.mxu0 0.0
        %1995 = vmatprep.subr.mxu0 0.0
        %1996 = vmatpush2.msra.mxu0 0.0
        %1997 = vmatprep.subr.mxu0 0.0
        %1998 = vmatpush2.msra.mxu0 0.0
        %1999 = vmatprep.subr.mxu0 0.0
        %2000 = vmatpush2.msra.mxu0 0.0
        %2001 = vmatprep.subr.mxu0 0.0
        %2002 = vmatpush2.msra.mxu0 0.0
        %2003 = vmatprep.subr.mxu0 0.0
        %2004 = vmatpush2.msra.mxu0 0.0
        %2005 = vmatprep.subr.mxu0 0.0
        %2006 = vmatpush2.msra.mxu0 0.0
        %2007 = vmatprep.subr.mxu0 0.0
        %2008 = vmatpush2.msra.mxu0 0.0
        %2009 = vmatprep.subr.mxu0 0.0
        %2010 = vmatpush2.msra.mxu0 0.0
        %2011 = vmatprep.subr.mxu0 0.0
        %2012 = vmatpush2.msra.mxu0 0.0
        %2013 = vmatprep.subr.mxu0 0.0
        %2014 = vmatpush2.msra.mxu0 0.0
        %2015 = vmatprep.subr.mxu0 0.0
        %2016 = vmatpush2.msra.mxu0 0.0
        %2017 = vmatprep.subr.mxu0 0.0
        %2018 = vmatpush2.msra.mxu0 0.0
        %2019 = vmatprep.subr.mxu0 0.0
        %2020 = vmatpush2.msra.mxu0 0.0
        %2021 = vmatprep.subr.mxu0 0.0
        %2022 = vmatpush2.msra.mxu0 0.0
        %2023 = vmatprep.subr.mxu0 0.0
        %2024 = vmatpush2.msra.mxu0 0.0
        %2025 = vmatprep.mubr.f32.mxu0 0.0
        %2026 = vmatmul.mubr.f32.gmra.mxu0 %v1959
        %v2027 = vpop.f32.mrf.mxu0
        %v2028 = vadd.f32 0.0, %v2027
        %v2029 = vpop.f32.mrf.mxu0
        %2030 = vdwg.mxu0
        %v2032 = vsel %vm1463, %v1811, 0
        %2034 = vmatprep.subr.mxu0 0.0
        %2035 = vmatpush1.msra.mxu0 0.0
        %2036 = vmatprep.subr.mxu0 0.0
        %2037 = vmatpush1.msra.mxu0 0.0
        %2038 = vmatprep.subr.mxu0 0.0
        %2039 = vmatpush1.msra.mxu0 0.0
        %2040 = vmatprep.subr.mxu0 0.0
        %2041 = vmatpush1.msra.mxu0 0.0
        %2042 = vmatprep.subr.mxu0 0.0
        %2043 = vmatpush1.msra.mxu0 0.0
        %2044 = vmatprep.subr.mxu0 0.0
        %2045 = vmatpush1.msra.mxu0 0.0
        %2046 = vmatprep.subr.mxu0 0.0
        %2047 = vmatpush1.msra.mxu0 0.0
        %2048 = vmatprep.subr.mxu0 0.0
        %2049 = vmatpush1.msra.mxu0 0.0
        %2050 = vmatprep.subr.mxu0 0.0
        %2051 = vmatpush1.msra.mxu0 0.0
        %2052 = vmatprep.subr.mxu0 0.0
        %2053 = vmatpush1.msra.mxu0 0.0
        %2054 = vmatprep.subr.mxu0 0.0
        %2055 = vmatpush1.msra.mxu0 0.0
        %2056 = vmatprep.subr.mxu0 0.0
        %2057 = vmatpush1.msra.mxu0 0.0
        %2058 = vmatprep.subr.mxu0 0.0
        %2059 = vmatpush1.msra.mxu0 0.0
        %2060 = vmatprep.subr.mxu0 0.0
        %2061 = vmatpush1.msra.mxu0 0.0
        %2062 = vmatprep.subr.mxu0 0.0
        %2063 = vmatpush1.msra.mxu0 0.0
        %2064 = vmatprep.subr.mxu0 0.0
        %2065 = vmatpush1.msra.mxu0 %v1458
        %2066 = vmatprep.subr.mxu0 0.0
        %2067 = vmatpush2.msra.mxu0 0.0
        %2068 = vmatprep.subr.mxu0 0.0
        %2069 = vmatpush2.msra.mxu0 0.0
        %2070 = vmatprep.subr.mxu0 0.0
        %2071 = vmatpush2.msra.mxu0 0.0
        %2072 = vmatprep.subr.mxu0 0.0
        %2073 = vmatpush2.msra.mxu0 0.0
        %2074 = vmatprep.subr.mxu0 0.0
        %2075 = vmatpush2.msra.mxu0 0.0
        %2076 = vmatprep.subr.mxu0 0.0
        %2077 = vmatpush2.msra.mxu0 0.0
        %2078 = vmatprep.subr.mxu0 0.0
        %2079 = vmatpush2.msra.mxu0 0.0
        %2080 = vmatprep.subr.mxu0 0.0
        %2081 = vmatpush2.msra.mxu0 0.0
        %2082 = vmatprep.subr.mxu0 0.0
        %2083 = vmatpush2.msra.mxu0 0.0
        %2084 = vmatprep.subr.mxu0 0.0
        %2085 = vmatpush2.msra.mxu0 0.0
        %2086 = vmatprep.subr.mxu0 0.0
        %2087 = vmatpush2.msra.mxu0 0.0
        %2088 = vmatprep.subr.mxu0 0.0
        %2089 = vmatpush2.msra.mxu0 0.0
        %2090 = vmatprep.subr.mxu0 0.0
        %2091 = vmatpush2.msra.mxu0 0.0
        %2092 = vmatprep.subr.mxu0 0.0
        %2093 = vmatpush2.msra.mxu0 0.0
        %2094 = vmatprep.subr.mxu0 0.0
        %2095 = vmatpush2.msra.mxu0 0.0
        %2096 = vmatprep.subr.mxu0 0.0
        %2097 = vmatpush2.msra.mxu0 0.0
        %2098 = vmatprep.mubr.f32.mxu0 0.0
        %2099 = vmatmul.mubr.f32.gmra.mxu0 %v2032
        %v2100 = vpop.f32.mrf.mxu0
        %v2101 = vadd.f32 0.0, %v2100
        %v2102 = vpop.f32.mrf.mxu0
        %2103 = vdwg.mxu0
        %v2104 = vpack.c.bf16 %v1882, %v1882
        %v2105 = vpack.c.bf16 %v1955, %v1955
        %v2106 = vpack.c.bf16 %v2028, %v2028
        %v2107 = vpack.c.bf16 %v2101, %v2101
        %v2108 = vld [vmem:[%s7] sm:$0xf]
        %v2109 = vld [vmem:[%s7 + $0x4] sm:$0xf]
        %v2110 = vld [vmem:[%s7 + $0x8] sm:$0xf]
        %v2111 = vld [vmem:[%s7 + $0xc] sm:$0xf]
        %v2113 = vsel %vm1463, %v2104, 0
        %vm2115 = vcmask 1043456
        %v2117 = vsel %vm2115, %v2108, 0
        %2119 = vmatprep.subr.bf16.mxu0 0
        %2120 = vmatpush1.bf16.msra.mxu0 0
        %2121 = vmatprep.subr.bf16.mxu0 0
        %2122 = vmatpush1.bf16.msra.mxu0 0
        %2123 = vmatprep.subr.bf16.mxu0 0
        %2124 = vmatpush1.bf16.msra.mxu0 0
        %2125 = vmatprep.subr.bf16.mxu0 0
        %2126 = vmatpush1.bf16.msra.mxu0 0
        %2127 = vmatprep.subr.bf16.mxu0 0
        %2128 = vmatpush1.bf16.msra.mxu0 0
        %2129 = vmatprep.subr.bf16.mxu0 0
        %2130 = vmatpush1.bf16.msra.mxu0 0
        %2131 = vmatprep.subr.bf16.mxu0 0
        %2132 = vmatpush1.bf16.msra.mxu0 0
        %2133 = vmatprep.subr.bf16.mxu0 0
        %2134 = vmatpush1.bf16.msra.mxu0 %v2117
        %2135 = vmatprep.subr.bf16.mxu0 0
        %2136 = vmatpush2.bf16.msra.mxu0 0
        %2137 = vmatprep.subr.bf16.mxu0 0
        %2138 = vmatpush2.bf16.msra.mxu0 0
        %2139 = vmatprep.subr.bf16.mxu0 0
        %2140 = vmatpush2.bf16.msra.mxu0 0
        %2141 = vmatprep.subr.bf16.mxu0 0
        %2142 = vmatpush2.bf16.msra.mxu0 0
        %2143 = vmatprep.subr.bf16.mxu0 0
        %2144 = vmatpush2.bf16.msra.mxu0 0
        %2145 = vmatprep.subr.bf16.mxu0 0
        %2146 = vmatpush2.bf16.msra.mxu0 0
        %2147 = vmatprep.subr.bf16.mxu0 0
        %2148 = vmatpush2.bf16.msra.mxu0 0
        %2149 = vmatprep.subr.bf16.mxu0 0
        %2150 = vmatpush2.bf16.msra.mxu0 0
        %2151 = vmatprep.mubr.bf16.mxu0 0
        %2152 = vmatmul.mubr.bf16.gmra.mxu0 %v2113
        %v2153 = vpop.f32.mrf.mxu0
        %v2154 = vadd.f32 0.0, %v2153
        %v2155 = vpop.f32.mrf.mxu0
        %v2156 = vpop.f32.mrf.mxu0
        %v2157 = vpop.f32.mrf.mxu0
        %2158 = vdwg.mxu0
        %v2160 = vsel %vm1463, %v2105, 0
        %v2163 = vsel %vm2115, %v2109, 0
        %2165 = vmatprep.subr.bf16.mxu0 0
        %2166 = vmatpush1.bf16.msra.mxu0 0
        %2167 = vmatprep.subr.bf16.mxu0 0
        %2168 = vmatpush1.bf16.msra.mxu0 0
        %2169 = vmatprep.subr.bf16.mxu0 0
        %2170 = vmatpush1.bf16.msra.mxu0 0
        %2171 = vmatprep.subr.bf16.mxu0 0
        %2172 = vmatpush1.bf16.msra.mxu0 0
        %2173 = vmatprep.subr.bf16.mxu0 0
        %2174 = vmatpush1.bf16.msra.mxu0 0
        %2175 = vmatprep.subr.bf16.mxu0 0
        %2176 = vmatpush1.bf16.msra.mxu0 0
        %2177 = vmatprep.subr.bf16.mxu0 0
        %2178 = vmatpush1.bf16.msra.mxu0 0
        %2179 = vmatprep.subr.bf16.mxu0 0
        %2180 = vmatpush1.bf16.msra.mxu0 %v2163
        %2181 = vmatprep.subr.bf16.mxu0 0
        %2182 = vmatpush2.bf16.msra.mxu0 0
        %2183 = vmatprep.subr.bf16.mxu0 0
        %2184 = vmatpush2.bf16.msra.mxu0 0
        %2185 = vmatprep.subr.bf16.mxu0 0
        %2186 = vmatpush2.bf16.msra.mxu0 0
        %2187 = vmatprep.subr.bf16.mxu0 0
        %2188 = vmatpush2.bf16.msra.mxu0 0
        %2189 = vmatprep.subr.bf16.mxu0 0
        %2190 = vmatpush2.bf16.msra.mxu0 0
        %2191 = vmatprep.subr.bf16.mxu0 0
        %2192 = vmatpush2.bf16.msra.mxu0 0
        %2193 = vmatprep.subr.bf16.mxu0 0
        %2194 = vmatpush2.bf16.msra.mxu0 0
        %2195 = vmatprep.subr.bf16.mxu0 0
        %2196 = vmatpush2.bf16.msra.mxu0 0
        %2197 = vmatprep.mubr.bf16.mxu0 0
        %2198 = vmatmul.mubr.bf16.gmra.mxu0 %v2160
        %v2199 = vpop.f32.mrf.mxu0
        %v2200 = vadd.f32 0.0, %v2199
        %v2201 = vpop.f32.mrf.mxu0
        %v2202 = vpop.f32.mrf.mxu0
        %v2203 = vpop.f32.mrf.mxu0
        %2204 = vdwg.mxu0
        %v2206 = vsel %vm1463, %v2106, 0
        %v2209 = vsel %vm2115, %v2110, 0
        %2211 = vmatprep.subr.bf16.mxu0 0
        %2212 = vmatpush1.bf16.msra.mxu0 0
        %2213 = vmatprep.subr.bf16.mxu0 0
        %2214 = vmatpush1.bf16.msra.mxu0 0
        %2215 = vmatprep.subr.bf16.mxu0 0
        %2216 = vmatpush1.bf16.msra.mxu0 0
        %2217 = vmatprep.subr.bf16.mxu0 0
        %2218 = vmatpush1.bf16.msra.mxu0 0
        %2219 = vmatprep.subr.bf16.mxu0 0
        %2220 = vmatpush1.bf16.msra.mxu0 0
        %2221 = vmatprep.subr.bf16.mxu0 0
        %2222 = vmatpush1.bf16.msra.mxu0 0
        %2223 = vmatprep.subr.bf16.mxu0 0
        %2224 = vmatpush1.bf16.msra.mxu0 0
        %2225 = vmatprep.subr.bf16.mxu0 0
        %2226 = vmatpush1.bf16.msra.mxu0 %v2209
        %2227 = vmatprep.subr.bf16.mxu0 0
        %2228 = vmatpush2.bf16.msra.mxu0 0
        %2229 = vmatprep.subr.bf16.mxu0 0
        %2230 = vmatpush2.bf16.msra.mxu0 0
        %2231 = vmatprep.subr.bf16.mxu0 0
        %2232 = vmatpush2.bf16.msra.mxu0 0
        %2233 = vmatprep.subr.bf16.mxu0 0
        %2234 = vmatpush2.bf16.msra.mxu0 0
        %2235 = vmatprep.subr.bf16.mxu0 0
        %2236 = vmatpush2.bf16.msra.mxu0 0
        %2237 = vmatprep.subr.bf16.mxu0 0
        %2238 = vmatpush2.bf16.msra.mxu0 0
        %2239 = vmatprep.subr.bf16.mxu0 0
        %2240 = vmatpush2.bf16.msra.mxu0 0
        %2241 = vmatprep.subr.bf16.mxu0 0
        %2242 = vmatpush2.bf16.msra.mxu0 0
        %2243 = vmatprep.mubr.bf16.mxu0 0
        %2244 = vmatmul.mubr.bf16.gmra.mxu0 %v2206
        %v2245 = vpop.f32.mrf.mxu0
        %v2246 = vadd.f32 0.0, %v2245
        %v2247 = vpop.f32.mrf.mxu0
        %v2248 = vpop.f32.mrf.mxu0
        %v2249 = vpop.f32.mrf.mxu0
        %2250 = vdwg.mxu0
        %v2252 = vsel %vm1463, %v2107, 0
        %v2255 = vsel %vm2115, %v2111, 0
        %2257 = vmatprep.subr.bf16.mxu0 0
        %2258 = vmatpush1.bf16.msra.mxu0 0
        %2259 = vmatprep.subr.bf16.mxu0 0
        %2260 = vmatpush1.bf16.msra.mxu0 0
        %2261 = vmatprep.subr.bf16.mxu0 0
        %2262 = vmatpush1.bf16.msra.mxu0 0
        %2263 = vmatprep.subr.bf16.mxu0 0
        %2264 = vmatpush1.bf16.msra.mxu0 0
        %2265 = vmatprep.subr.bf16.mxu0 0
        %2266 = vmatpush1.bf16.msra.mxu0 0
        %2267 = vmatprep.subr.bf16.mxu0 0
        %2268 = vmatpush1.bf16.msra.mxu0 0
        %2269 = vmatprep.subr.bf16.mxu0 0
        %2270 = vmatpush1.bf16.msra.mxu0 0
        %2271 = vmatprep.subr.bf16.mxu0 0
        %2272 = vmatpush1.bf16.msra.mxu0 %v2255
        %2273 = vmatprep.subr.bf16.mxu0 0
        %2274 = vmatpush2.bf16.msra.mxu0 0
        %2275 = vmatprep.subr.bf16.mxu0 0
        %2276 = vmatpush2.bf16.msra.mxu0 0
        %2277 = vmatprep.subr.bf16.mxu0 0
        %2278 = vmatpush2.bf16.msra.mxu0 0
        %2279 = vmatprep.subr.bf16.mxu0 0
        %2280 = vmatpush2.bf16.msra.mxu0 0
        %2281 = vmatprep.subr.bf16.mxu0 0
        %2282 = vmatpush2.bf16.msra.mxu0 0
        %2283 = vmatprep.subr.bf16.mxu0 0
        %2284 = vmatpush2.bf16.msra.mxu0 0
        %2285 = vmatprep.subr.bf16.mxu0 0
        %2286 = vmatpush2.bf16.msra.mxu0 0
        %2287 = vmatprep.subr.bf16.mxu0 0
        %2288 = vmatpush2.bf16.msra.mxu0 0
        %2289 = vmatprep.mubr.bf16.mxu0 0
        %2290 = vmatmul.mubr.bf16.gmra.mxu0 %v2252
        %v2291 = vpop.f32.mrf.mxu0
        %v2292 = vadd.f32 0.0, %v2291
        %v2293 = vpop.f32.mrf.mxu0
        %v2294 = vpop.f32.mrf.mxu0
        %v2295 = vpop.f32.mrf.mxu0
        %2296 = vdwg.mxu0
        %v2297 = vsel %vm674, %v2154, 0.0
        %v2298 = vsel %vm674, %v2200, 0.0
        %v2299 = vadd.f32 %v2297, %v2298
        %v2300 = vsel %vm674, %v2246, 0.0
        %v2301 = vadd.f32 %v2299, %v2300
        %v2302 = vsel %vm674, %v2292, 0.0
        %v2303 = vadd.f32 %v2301, %v2302
        %v2304 = vadd.f32 %v665, %v2303
        %v2305 = vld [vmem:[%s8] sm:$0x1]
        %v2307 = vlaneseq
        %v2308 = vshrl.u32 %v2307, 7
        %v2309 = vsub.s32 0, %v2308
        %v2310 = vrot.slane %v2305, %v2309
        %v2312 = vadd.f32 %v2304, %v2310
        %v2313 = vld [vmem:[%s9] sm:$0x1]
        %v2314 = vld [vmem:[%s10] sm:$0x1]
        %v2315 = vsel %vm674, %v2312, 0.0
        %2316 = vadd.xlane.f32.xlu0 %v2315
        %v2317 = vpop.xlane.xlu0 %2316
        %v2318 = vmul.f32 %v2317, %v678
        %v2319 = vsub.f32 %v2312, %v2318
        %v2320 = vmul.f32 %v2319, %v2319
        %v2321 = vsel %vm674, %v2320, 0.0
        %2322 = vadd.xlane.f32.xlu0 %v2321
        %v2323 = vpop.xlane.xlu0 %2322
        %v2324 = vmul.f32 %v2323, %v678
        %v2325 = vadd.f32 %v2324, 1e-05
        %v2326 = vrsqrt.pop %v2325
        %v2327 = vmul.f32 %v2319, %v2326
        %v2329 = vlaneseq
        %v2330 = vshrl.u32 %v2329, 7
        %v2331 = vsub.s32 0, %v2330
        %v2332 = vrot.slane %v2313, %v2331
        %v2334 = vmul.f32 %v2327, %v2332
        %v2336 = vlaneseq
        %v2337 = vshrl.u32 %v2336, 7
        %v2338 = vsub.s32 0, %v2337
        %v2339 = vrot.slane %v2314, %v2338
        %v2341 = vadd.f32 %v2334, %v2339
        %v2342 = vpack.c.bf16 %v2341, %v2341
        %v2343 = vld [vmem:[%s11] sm:$0xf]
        %v2344 = vld [vmem:[%s11 + $0x4] sm:$0xf]
        %v2345 = vld [vmem:[%s11 + $0x8] sm:$0xf]
        %v2346 = vld [vmem:[%s11 + $0xc] sm:$0xf]
        %v2347 = vld [vmem:[%s12] sm:$0x1]
        %v2349 = vlaneseq
        %v2350 = vshrl.u32 %v2349, 7
        %v2351 = vsub.s32 0, %v2350
        %v2352 = vrot.slane %v2347, %v2351
        %v2358 = vunpack.c.l.b16 %v2343
        %v2359 = vunpack.c.l.b16 %v2344
        %v2360 = vunpack.c.l.b16 %v2345
        %v2361 = vunpack.c.l.b16 %v2346
        %v2362 = vpack.c.b16 %v2359, %v2358
        %v2363 = vpack.c.b16 %v2361, %v2360
        %v2367 = vsel %vm674, %v2342, 0
        %2369 = vmatprep.subr.bf16.mxu0 0
        %2370 = vmatpush1.bf16.msra.mxu0 0
        %2371 = vmatprep.subr.bf16.mxu0 0
        %2372 = vmatpush1.bf16.msra.mxu0 0
        %2373 = vmatprep.subr.bf16.mxu0 0
        %2374 = vmatpush1.bf16.msra.mxu0 0
        %2375 = vmatprep.subr.bf16.mxu0 0
        %2376 = vmatpush1.bf16.msra.mxu0 0
        %2377 = vmatprep.subr.bf16.mxu0 0
        %2378 = vmatpush1.bf16.msra.mxu0 0
        %2379 = vmatprep.subr.bf16.mxu0 0
        %2380 = vmatpush1.bf16.msra.mxu0 0
        %2381 = vmatprep.subr.bf16.mxu0 0
        %2382 = vmatpush1.bf16.msra.mxu0 %v2363
        %2383 = vmatprep.subr.bf16.mxu0 0
        %2384 = vmatpush1.bf16.msra.mxu0 %v2362
        %2385 = vmatprep.subr.bf16.mxu0 0
        %2386 = vmatpush2.bf16.msra.mxu0 0
        %2387 = vmatprep.subr.bf16.mxu0 0
        %2388 = vmatpush2.bf16.msra.mxu0 0
        %2389 = vmatprep.subr.bf16.mxu0 0
        %2390 = vmatpush2.bf16.msra.mxu0 0
        %2391 = vmatprep.subr.bf16.mxu0 0
        %2392 = vmatpush2.bf16.msra.mxu0 0
        %2393 = vmatprep.subr.bf16.mxu0 0
        %2394 = vmatpush2.bf16.msra.mxu0 0
        %2395 = vmatprep.subr.bf16.mxu0 0
        %2396 = vmatpush2.bf16.msra.mxu0 0
        %2397 = vmatprep.subr.bf16.mxu0 0
        %2398 = vmatpush2.bf16.msra.mxu0 0
        %2399 = vmatprep.subr.bf16.mxu0 0
        %2400 = vmatpush2.bf16.msra.mxu0 0
        %2401 = vmatprep.mubr.bf16.mxu0 0
        %2402 = vmatmul.mubr.bf16.gmra.mxu0 %v2367
        %v2403 = vpop.f32.mrf.mxu0
        %v2404 = vadd.f32 %v2352, %v2403
        %v2405 = vpop.f32.mrf.mxu0
        %v2406 = vpop.f32.mrf.mxu0
        %v2407 = vpop.f32.mrf.mxu0
        %2408 = vdwg.mxu0
        %v2409 = vmul.f32 %v2404, 0.5
        %v2410 = vmul.f32 %v2404, 0.044715
        %v2411 = vmul.f32 %v2410, %v2404
        %v2412 = vmul.f32 %v2411, %v2404
        %v2413 = vadd.f32 %v2404, %v2412
        %v2414 = vmul.f32 %v2413, 0.7978846
        %v2415 = vtanh.pop %v2414
        %v2416 = vadd.f32 %v2415, 1.0
        %v2417 = vmul.f32 %v2409, %v2416
        %v2418 = vpack.c.bf16 %v2417, %v2417
        %v2419 = vld [vmem:[%s13] sm:$0xf]
        %v2420 = vld [vmem:[%s13 + $0x4] sm:$0xf]
        %v2421 = vld [vmem:[%s13 + $0x8] sm:$0xf]
        %v2422 = vld [vmem:[%s13 + $0xc] sm:$0xf]
        %v2423 = vld [vmem:[%s13 + $0x10] sm:$0xf]
        %v2424 = vld [vmem:[%s13 + $0x14] sm:$0xf]
        %v2425 = vld [vmem:[%s13 + $0x18] sm:$0xf]
        %v2426 = vld [vmem:[%s13 + $0x1c] sm:$0xf]
        %v2427 = vld [vmem:[%s13 + $0x20] sm:$0xf]
        %v2428 = vld [vmem:[%s13 + $0x24] sm:$0xf]
        %v2429 = vld [vmem:[%s13 + $0x28] sm:$0xf]
        %v2430 = vld [vmem:[%s13 + $0x2c] sm:$0xf]
        %v2431 = vld [vmem:[%s13 + $0x30] sm:$0xf]
        %v2432 = vld [vmem:[%s13 + $0x34] sm:$0xf]
        %v2433 = vld [vmem:[%s13 + $0x38] sm:$0xf]
        %v2434 = vld [vmem:[%s13 + $0x3c] sm:$0xf]
        %v2451 = vunpack.c.l.b16 %v2419
        %v2452 = vunpack.c.l.b16 %v2420
        %v2453 = vunpack.c.l.b16 %v2421
        %v2454 = vunpack.c.l.b16 %v2422
        %v2455 = vunpack.c.l.b16 %v2423
        %v2456 = vunpack.c.l.b16 %v2424
        %v2457 = vunpack.c.l.b16 %v2425
        %v2458 = vunpack.c.l.b16 %v2426
        %v2459 = vunpack.c.l.b16 %v2427
        %v2460 = vunpack.c.l.b16 %v2428
        %v2461 = vunpack.c.l.b16 %v2429
        %v2462 = vunpack.c.l.b16 %v2430
        %v2463 = vunpack.c.l.b16 %v2431
        %v2464 = vunpack.c.l.b16 %v2432
        %v2465 = vunpack.c.l.b16 %v2433
        %v2466 = vunpack.c.l.b16 %v2434
        %v2467 = vpack.c.b16 %v2452, %v2451
        %v2468 = vpack.c.b16 %v2454, %v2453
        %v2469 = vpack.c.b16 %v2456, %v2455
        %v2470 = vpack.c.b16 %v2458, %v2457
        %v2471 = vpack.c.b16 %v2460, %v2459
        %v2472 = vpack.c.b16 %v2462, %v2461
        %v2473 = vpack.c.b16 %v2464, %v2463
        %v2474 = vpack.c.b16 %v2466, %v2465
        %2483 = vmatprep.subr.bf16.mxu0 0
        %2484 = vmatpush1.bf16.msra.mxu0 %v2474
        %2485 = vmatprep.subr.bf16.mxu0 0
        %2486 = vmatpush1.bf16.msra.mxu0 %v2473
        %2487 = vmatprep.subr.bf16.mxu0 0
        %2488 = vmatpush1.bf16.msra.mxu0 %v2472
        %2489 = vmatprep.subr.bf16.mxu0 0
        %2490 = vmatpush1.bf16.msra.mxu0 %v2471
        %2491 = vmatprep.subr.bf16.mxu0 0
        %2492 = vmatpush1.bf16.msra.mxu0 %v2470
        %2493 = vmatprep.subr.bf16.mxu0 0
        %2494 = vmatpush1.bf16.msra.mxu0 %v2469
        %2495 = vmatprep.subr.bf16.mxu0 0
        %2496 = vmatpush1.bf16.msra.mxu0 %v2468
        %2497 = vmatprep.subr.bf16.mxu0 0
        %2498 = vmatpush1.bf16.msra.mxu0 %v2467
        %2499 = vmatprep.subr.bf16.mxu0 0
        %2500 = vmatpush2.bf16.msra.mxu0 0
        %2501 = vmatprep.subr.bf16.mxu0 0
        %2502 = vmatpush2.bf16.msra.mxu0 0
        %2503 = vmatprep.subr.bf16.mxu0 0
        %2504 = vmatpush2.bf16.msra.mxu0 0
        %2505 = vmatprep.subr.bf16.mxu0 0
        %2506 = vmatpush2.bf16.msra.mxu0 0
        %2507 = vmatprep.subr.bf16.mxu0 0
        %2508 = vmatpush2.bf16.msra.mxu0 0
        %2509 = vmatprep.subr.bf16.mxu0 0
        %2510 = vmatpush2.bf16.msra.mxu0 0
        %2511 = vmatprep.subr.bf16.mxu0 0
        %2512 = vmatpush2.bf16.msra.mxu0 0
        %2513 = vmatprep.subr.bf16.mxu0 0
        %2514 = vmatpush2.bf16.msra.mxu0 0
        %2515 = vmatprep.mubr.bf16.mxu0 0
        %2516 = vmatmul.mubr.bf16.gmra.mxu0 %v2418
        %v2517 = vpop.f32.mrf.mxu0
        %v2518 = vadd.f32 0.0, %v2517
        %v2519 = vpop.f32.mrf.mxu0
        %v2520 = vpop.f32.mrf.mxu0
        %v2521 = vpop.f32.mrf.mxu0
        %2522 = vdwg.mxu0
        %v2523 = vadd.f32 %v2312, %v2518
        %v2524 = vld [vmem:[%s14] sm:$0x1]
        %v2526 = vlaneseq
        %v2527 = vshrl.u32 %v2526, 7
        %v2528 = vsub.s32 0, %v2527
        %v2529 = vrot.slane %v2524, %v2528
        %v2531 = vadd.f32 %v2523, %v2529
        %s2532 = scalar_lea.vmem %s3, 1
        %v2533 = vld [vmem:[%s2532] sm:$0x1]
        %s2534 = scalar_lea.vmem %s4, 1
        %v2535 = vld [vmem:[%s2534] sm:$0x1]
        %v2536 = vsel %vm674, %v2531, 0.0
        %2537 = vadd.xlane.f32.xlu0 %v2536
        %v2538 = vpop.xlane.xlu0 %2537
        %v2539 = vmul.f32 %v2538, %v678
        %v2540 = vsub.f32 %v2531, %v2539
        %v2541 = vmul.f32 %v2540, %v2540
        %v2542 = vsel %vm674, %v2541, 0.0
        %2543 = vadd.xlane.f32.xlu0 %v2542
        %v2544 = vpop.xlane.xlu0 %2543
        %v2545 = vmul.f32 %v2544, %v678
        %v2546 = vadd.f32 %v2545, 1e-05
        %v2547 = vrsqrt.pop %v2546
        %v2548 = vmul.f32 %v2540, %v2547
        %v2550 = vlaneseq
        %v2551 = vshrl.u32 %v2550, 7
        %v2552 = vsub.s32 0, %v2551
        %v2553 = vrot.slane %v2533, %v2552
        %v2555 = vmul.f32 %v2548, %v2553
        %v2557 = vlaneseq
        %v2558 = vshrl.u32 %v2557, 7
        %v2559 = vsub.s32 0, %v2558
        %v2560 = vrot.slane %v2535, %v2559
        %v2562 = vadd.f32 %v2555, %v2560
        %v2563 = vpack.c.bf16 %v2562, %v2562
        %s2564 = scalar_lea.vmem %s5, 192
        %v2565 = vld [vmem:[%s2564] sm:$0xf]
        %v2566 = vld [vmem:[%s2564 + $0x4] sm:$0xf]
        %v2567 = vld [vmem:[%s2564 + $0x8] sm:$0xf]
        %v2568 = vld [vmem:[%s2564 + $0xc] sm:$0xf]
        %v2569 = vld [vmem:[%s2564 + $0x10] sm:$0xf]
        %v2570 = vld [vmem:[%s2564 + $0x14] sm:$0xf]
        %v2571 = vld [vmem:[%s2564 + $0x18] sm:$0xf]
        %v2572 = vld [vmem:[%s2564 + $0x1c] sm:$0xf]
        %v2573 = vld [vmem:[%s2564 + $0x20] sm:$0xf]
        %v2574 = vld [vmem:[%s2564 + $0x24] sm:$0xf]
        %v2575 = vld [vmem:[%s2564 + $0x28] sm:$0xf]
        %v2576 = vld [vmem:[%s2564 + $0x2c] sm:$0xf]
        %v2577 = vld [vmem:[%s2564 + $0x30] sm:$0xf]
        %v2578 = vld [vmem:[%s2564 + $0x34] sm:$0xf]
        %v2579 = vld [vmem:[%s2564 + $0x38] sm:$0xf]
        %v2580 = vld [vmem:[%s2564 + $0x3c] sm:$0xf]
        %v2581 = vld [vmem:[%s2564 + $0x40] sm:$0xf]
        %v2582 = vld [vmem:[%s2564 + $0x44] sm:$0xf]
        %v2583 = vld [vmem:[%s2564 + $0x48] sm:$0xf]
        %v2584 = vld [vmem:[%s2564 + $0x4c] sm:$0xf]
        %v2585 = vld [vmem:[%s2564 + $0x50] sm:$0xf]
        %v2586 = vld [vmem:[%s2564 + $0x54] sm:$0xf]
        %v2587 = vld [vmem:[%s2564 + $0x58] sm:$0xf]
        %v2588 = vld [vmem:[%s2564 + $0x5c] sm:$0xf]
        %v2589 = vld [vmem:[%s2564 + $0x60] sm:$0xf]
        %v2590 = vld [vmem:[%s2564 + $0x64] sm:$0xf]
        %v2591 = vld [vmem:[%s2564 + $0x68] sm:$0xf]
        %v2592 = vld [vmem:[%s2564 + $0x6c] sm:$0xf]
        %v2593 = vld [vmem:[%s2564 + $0x70] sm:$0xf]
        %v2594 = vld [vmem:[%s2564 + $0x74] sm:$0xf]
        %v2595 = vld [vmem:[%s2564 + $0x78] sm:$0xf]
        %v2596 = vld [vmem:[%s2564 + $0x7c] sm:$0xf]
        %v2597 = vld [vmem:[%s2564 + $0x80] sm:$0xf]
        %v2598 = vld [vmem:[%s2564 + $0x84] sm:$0xf]
        %v2599 = vld [vmem:[%s2564 + $0x88] sm:$0xf]
        %v2600 = vld [vmem:[%s2564 + $0x8c] sm:$0xf]
        %v2601 = vld [vmem:[%s2564 + $0x90] sm:$0xf]
        %v2602 = vld [vmem:[%s2564 + $0x94] sm:$0xf]
        %v2603 = vld [vmem:[%s2564 + $0x98] sm:$0xf]
        %v2604 = vld [vmem:[%s2564 + $0x9c] sm:$0xf]
        %v2605 = vld [vmem:[%s2564 + $0xa0] sm:$0xf]
        %v2606 = vld [vmem:[%s2564 + $0xa4] sm:$0xf]
        %v2607 = vld [vmem:[%s2564 + $0xa8] sm:$0xf]
        %v2608 = vld [vmem:[%s2564 + $0xac] sm:$0xf]
        %v2609 = vld [vmem:[%s2564 + $0xb0] sm:$0xf]
        %v2610 = vld [vmem:[%s2564 + $0xb4] sm:$0xf]
        %v2611 = vld [vmem:[%s2564 + $0xb8] sm:$0xf]
        %v2612 = vld [vmem:[%s2564 + $0xbc] sm:$0xf]
        %s2613 = scalar_lea.vmem %s6, 12
        %v2614 = vld [vmem:[%s2613] sm:$0x1]
        %v2615 = vld [vmem:[%s2613 + $0x1] sm:$0x1]
        %v2616 = vld [vmem:[%s2613 + $0x2] sm:$0x1]
        %v2617 = vld [vmem:[%s2613 + $0x3] sm:$0x1]
        %v2618 = vld [vmem:[%s2613 + $0x4] sm:$0x1]
        %v2619 = vld [vmem:[%s2613 + $0x5] sm:$0x1]
        %v2620 = vld [vmem:[%s2613 + $0x6] sm:$0x1]
        %v2621 = vld [vmem:[%s2613 + $0x7] sm:$0x1]
        %v2622 = vld [vmem:[%s2613 + $0x8] sm:$0x1]
        %v2623 = vld [vmem:[%s2613 + $0x9] sm:$0x1]
        %v2624 = vld [vmem:[%s2613 + $0xa] sm:$0x1]
        %v2625 = vld [vmem:[%s2613 + $0xb] sm:$0x1]
        %v2638 = vlaneseq
        %v2639 = vshrl.u32 %v2638, 7
        %v2640 = vsub.s32 0, %v2639
        %v2641 = vrot.slane %v2614, %v2640
        %v2642 = vlaneseq
        %v2643 = vshrl.u32 %v2642, 7
        %v2644 = vsub.s32 0, %v2643
        %v2645 = vrot.slane %v2615, %v2644
        %v2646 = vlaneseq
        %v2647 = vshrl.u32 %v2646, 7
        %v2648 = vsub.s32 0, %v2647
        %v2649 = vrot.slane %v2616, %v2648
        %v2650 = vlaneseq
        %v2651 = vshrl.u32 %v2650, 7
        %v2652 = vsub.s32 0, %v2651
        %v2653 = vrot.slane %v2617, %v2652
        %v2654 = vlaneseq
        %v2655 = vshrl.u32 %v2654, 7
        %v2656 = vsub.s32 0, %v2655
        %v2657 = vrot.slane %v2618, %v2656
        %v2658 = vlaneseq
        %v2659 = vshrl.u32 %v2658, 7
        %v2660 = vsub.s32 0, %v2659
        %v2661 = vrot.slane %v2619, %v2660
        %v2662 = vlaneseq
        %v2663 = vshrl.u32 %v2662, 7
        %v2664 = vsub.s32 0, %v2663
        %v2665 = vrot.slane %v2620, %v2664
        %v2666 = vlaneseq
        %v2667 = vshrl.u32 %v2666, 7
        %v2668 = vsub.s32 0, %v2667
        %v2669 = vrot.slane %v2621, %v2668
        %v2670 = vlaneseq
        %v2671 = vshrl.u32 %v2670, 7
        %v2672 = vsub.s32 0, %v2671
        %v2673 = vrot.slane %v2622, %v2672
        %v2674 = vlaneseq
        %v2675 = vshrl.u32 %v2674, 7
        %v2676 = vsub.s32 0, %v2675
        %v2677 = vrot.slane %v2623, %v2676
        %v2678 = vlaneseq
        %v2679 = vshrl.u32 %v2678, 7
        %v2680 = vsub.s32 0, %v2679
        %v2681 = vrot.slane %v2624, %v2680
        %v2682 = vlaneseq
        %v2683 = vshrl.u32 %v2682, 7
        %v2684 = vsub.s32 0, %v2683
        %v2685 = vrot.slane %v2625, %v2684
        %v2702 = vunpack.c.l.b16 %v2565
        %v2703 = vunpack.c.l.b16 %v2566
        %v2704 = vunpack.c.l.b16 %v2567
        %v2705 = vunpack.c.l.b16 %v2568
        %v2706 = vpack.c.b16 %v2703, %v2702
        %v2707 = vpack.c.b16 %v2705, %v2704
        %v2711 = vsel %vm674, %v2563, 0
        %2713 = vmatprep.subr.bf16.mxu0 0
        %2714 = vmatpush1.bf16.msra.mxu0 0
        %2715 = vmatprep.subr.bf16.mxu0 0
        %2716 = vmatpush1.bf16.msra.mxu0 0
        %2717 = vmatprep.subr.bf16.mxu0 0
        %2718 = vmatpush1.bf16.msra.mxu0 0
        %2719 = vmatprep.subr.bf16.mxu0 0
        %2720 = vmatpush1.bf16.msra.mxu0 0
        %2721 = vmatprep.subr.bf16.mxu0 0
        %2722 = vmatpush1.bf16.msra.mxu0 0
        %2723 = vmatprep.subr.bf16.mxu0 0
        %2724 = vmatpush1.bf16.msra.mxu0 0
        %2725 = vmatprep.subr.bf16.mxu0 0
        %2726 = vmatpush1.bf16.msra.mxu0 %v2707
        %2727 = vmatprep.subr.bf16.mxu0 0
        %2728 = vmatpush1.bf16.msra.mxu0 %v2706
        %2729 = vmatprep.subr.bf16.mxu0 0
        %2730 = vmatpush2.bf16.msra.mxu0 0
        %2731 = vmatprep.subr.bf16.mxu0 0
        %2732 = vmatpush2.bf16.msra.mxu0 0
        %2733 = vmatprep.subr.bf16.mxu0 0
        %2734 = vmatpush2.bf16.msra.mxu0 0
        %2735 = vmatprep.subr.bf16.mxu0 0
        %2736 = vmatpush2.bf16.msra.mxu0 0
        %2737 = vmatprep.subr.bf16.mxu0 0
        %2738 = vmatpush2.bf16.msra.mxu0 0
        %2739 = vmatprep.subr.bf16.mxu0 0
        %2740 = vmatpush2.bf16.msra.mxu0 0
        %2741 = vmatprep.subr.bf16.mxu0 0
        %2742 = vmatpush2.bf16.msra.mxu0 0
        %2743 = vmatprep.subr.bf16.mxu0 0
        %2744 = vmatpush2.bf16.msra.mxu0 0
        %2745 = vmatprep.mubr.bf16.mxu0 0
        %2746 = vmatmul.mubr.bf16.gmra.mxu0 %v2711
        %v2747 = vpop.f32.mrf.mxu0
        %v2748 = vadd.f32 %v2641, %v2747
        %v2749 = vpop.f32.mrf.mxu0
        %v2750 = vpop.f32.mrf.mxu0
        %v2751 = vpop.f32.mrf.mxu0
        %2752 = vdwg.mxu0
        %v2757 = vunpack.c.l.b16 %v2569
        %v2758 = vunpack.c.l.b16 %v2570
        %v2759 = vunpack.c.l.b16 %v2571
        %v2760 = vunpack.c.l.b16 %v2572
        %v2761 = vpack.c.b16 %v2758, %v2757
        %v2762 = vpack.c.b16 %v2760, %v2759
        %2765 = vmatprep.subr.bf16.mxu0 0
        %2766 = vmatpush1.bf16.msra.mxu0 0
        %2767 = vmatprep.subr.bf16.mxu0 0
        %2768 = vmatpush1.bf16.msra.mxu0 0
        %2769 = vmatprep.subr.bf16.mxu0 0
        %2770 = vmatpush1.bf16.msra.mxu0 0
        %2771 = vmatprep.subr.bf16.mxu0 0
        %2772 = vmatpush1.bf16.msra.mxu0 0
        %2773 = vmatprep.subr.bf16.mxu0 0
        %2774 = vmatpush1.bf16.msra.mxu0 0
        %2775 = vmatprep.subr.bf16.mxu0 0
        %2776 = vmatpush1.bf16.msra.mxu0 0
        %2777 = vmatprep.subr.bf16.mxu0 0
        %2778 = vmatpush1.bf16.msra.mxu0 %v2762
        %2779 = vmatprep.subr.bf16.mxu0 0
        %2780 = vmatpush1.bf16.msra.mxu0 %v2761
        %2781 = vmatprep.subr.bf16.mxu0 0
        %2782 = vmatpush2.bf16.msra.mxu0 0
        %2783 = vmatprep.subr.bf16.mxu0 0
        %2784 = vmatpush2.bf16.msra.mxu0 0
        %2785 = vmatprep.subr.bf16.mxu0 0
        %2786 = vmatpush2.bf16.msra.mxu0 0
        %2787 = vmatprep.subr.bf16.mxu0 0
        %2788 = vmatpush2.bf16.msra.mxu0 0
        %2789 = vmatprep.subr.bf16.mxu0 0
        %2790 = vmatpush2.bf16.msra.mxu0 0
        %2791 = vmatprep.subr.bf16.mxu0 0
        %2792 = vmatpush2.bf16.msra.mxu0 0
        %2793 = vmatprep.subr.bf16.mxu0 0
        %2794 = vmatpush2.bf16.msra.mxu0 0
        %2795 = vmatprep.subr.bf16.mxu0 0
        %2796 = vmatpush2.bf16.msra.mxu0 0
        %2797 = vmatprep.mubr.bf16.mxu0 0
        %2798 = vmatmul.mubr.bf16.gmra.mxu0 %v2711
        %v2799 = vpop.f32.mrf.mxu0
        %v2800 = vadd.f32 %v2645, %v2799
        %v2801 = vpop.f32.mrf.mxu0
        %v2802 = vpop.f32.mrf.mxu0
        %v2803 = vpop.f32.mrf.mxu0
        %2804 = vdwg.mxu0
        %v2809 = vunpack.c.l.b16 %v2573
        %v2810 = vunpack.c.l.b16 %v2574
        %v2811 = vunpack.c.l.b16 %v2575
        %v2812 = vunpack.c.l.b16 %v2576
        %v2813 = vpack.c.b16 %v2810, %v2809
        %v2814 = vpack.c.b16 %v2812, %v2811
        %2817 = vmatprep.subr.bf16.mxu0 0
        %2818 = vmatpush1.bf16.msra.mxu0 0
        %2819 = vmatprep.subr.bf16.mxu0 0
        %2820 = vmatpush1.bf16.msra.mxu0 0
        %2821 = vmatprep.subr.bf16.mxu0 0
        %2822 = vmatpush1.bf16.msra.mxu0 0
        %2823 = vmatprep.subr.bf16.mxu0 0
        %2824 = vmatpush1.bf16.msra.mxu0 0
        %2825 = vmatprep.subr.bf16.mxu0 0
        %2826 = vmatpush1.bf16.msra.mxu0 0
        %2827 = vmatprep.subr.bf16.mxu0 0
        %2828 = vmatpush1.bf16.msra.mxu0 0
        %2829 = vmatprep.subr.bf16.mxu0 0
        %2830 = vmatpush1.bf16.msra.mxu0 %v2814
        %2831 = vmatprep.subr.bf16.mxu0 0
        %2832 = vmatpush1.bf16.msra.mxu0 %v2813
        %2833 = vmatprep.subr.bf16.mxu0 0
        %2834 = vmatpush2.bf16.msra.mxu0 0
        %2835 = vmatprep.subr.bf16.mxu0 0
        %2836 = vmatpush2.bf16.msra.mxu0 0
        %2837 = vmatprep.subr.bf16.mxu0 0
        %2838 = vmatpush2.bf16.msra.mxu0 0
        %2839 = vmatprep.subr.bf16.mxu0 0
        %2840 = vmatpush2.bf16.msra.mxu0 0
        %2841 = vmatprep.subr.bf16.mxu0 0
        %2842 = vmatpush2.bf16.msra.mxu0 0
        %2843 = vmatprep.subr.bf16.mxu0 0
        %2844 = vmatpush2.bf16.msra.mxu0 0
        %2845 = vmatprep.subr.bf16.mxu0 0
        %2846 = vmatpush2.bf16.msra.mxu0 0
        %2847 = vmatprep.subr.bf16.mxu0 0
        %2848 = vmatpush2.bf16.msra.mxu0 0
        %2849 = vmatprep.mubr.bf16.mxu0 0
        %2850 = vmatmul.mubr.bf16.gmra.mxu0 %v2711
        %v2851 = vpop.f32.mrf.mxu0
        %v2852 = vadd.f32 %v2649, %v2851
        %v2853 = vpop.f32.mrf.mxu0
        %v2854 = vpop.f32.mrf.mxu0
        %v2855 = vpop.f32.mrf.mxu0
        %2856 = vdwg.mxu0
        %v2861 = vunpack.c.l.b16 %v2577
        %v2862 = vunpack.c.l.b16 %v2578
        %v2863 = vunpack.c.l.b16 %v2579
        %v2864 = vunpack.c.l.b16 %v2580
        %v2865 = vpack.c.b16 %v2862, %v2861
        %v2866 = vpack.c.b16 %v2864, %v2863
        %2869 = vmatprep.subr.bf16.mxu0 0
        %2870 = vmatpush1.bf16.msra.mxu0 0
        %2871 = vmatprep.subr.bf16.mxu0 0
        %2872 = vmatpush1.bf16.msra.mxu0 0
        %2873 = vmatprep.subr.bf16.mxu0 0
        %2874 = vmatpush1.bf16.msra.mxu0 0
        %2875 = vmatprep.subr.bf16.mxu0 0
        %2876 = vmatpush1.bf16.msra.mxu0 0
        %2877 = vmatprep.subr.bf16.mxu0 0
        %2878 = vmatpush1.bf16.msra.mxu0 0
        %2879 = vmatprep.subr.bf16.mxu0 0
        %2880 = vmatpush1.bf16.msra.mxu0 0
        %2881 = vmatprep.subr.bf16.mxu0 0
        %2882 = vmatpush1.bf16.msra.mxu0 %v2866
        %2883 = vmatprep.subr.bf16.mxu0 0
        %2884 = vmatpush1.bf16.msra.mxu0 %v2865
        %2885 = vmatprep.subr.bf16.mxu0 0
        %2886 = vmatpush2.bf16.msra.mxu0 0
        %2887 = vmatprep.subr.bf16.mxu0 0
        %2888 = vmatpush2.bf16.msra.mxu0 0
        %2889 = vmatprep.subr.bf16.mxu0 0
        %2890 = vmatpush2.bf16.msra.mxu0 0
        %2891 = vmatprep.subr.bf16.mxu0 0
        %2892 = vmatpush2.bf16.msra.mxu0 0
        %2893 = vmatprep.subr.bf16.mxu0 0
        %2894 = vmatpush2.bf16.msra.mxu0 0
        %2895 = vmatprep.subr.bf16.mxu0 0
        %2896 = vmatpush2.bf16.msra.mxu0 0
        %2897 = vmatprep.subr.bf16.mxu0 0
        %2898 = vmatpush2.bf16.msra.mxu0 0
        %2899 = vmatprep.subr.bf16.mxu0 0
        %2900 = vmatpush2.bf16.msra.mxu0 0
        %2901 = vmatprep.mubr.bf16.mxu0 0
        %2902 = vmatmul.mubr.bf16.gmra.mxu0 %v2711
        %v2903 = vpop.f32.mrf.mxu0
        %v2904 = vadd.f32 %v2653, %v2903
        %v2905 = vpop.f32.mrf.mxu0
        %v2906 = vpop.f32.mrf.mxu0
        %v2907 = vpop.f32.mrf.mxu0
        %2908 = vdwg.mxu0
        %v2913 = vunpack.c.l.b16 %v2581
        %v2914 = vunpack.c.l.b16 %v2582
        %v2915 = vunpack.c.l.b16 %v2583
        %v2916 = vunpack.c.l.b16 %v2584
        %v2917 = vpack.c.b16 %v2914, %v2913
        %v2918 = vpack.c.b16 %v2916, %v2915
        %2921 = vmatprep.subr.bf16.mxu0 0
        %2922 = vmatpush1.bf16.msra.mxu0 0
        %2923 = vmatprep.subr.bf16.mxu0 0
        %2924 = vmatpush1.bf16.msra.mxu0 0
        %2925 = vmatprep.subr.bf16.mxu0 0
        %2926 = vmatpush1.bf16.msra.mxu0 0
        %2927 = vmatprep.subr.bf16.mxu0 0
        %2928 = vmatpush1.bf16.msra.mxu0 0
        %2929 = vmatprep.subr.bf16.mxu0 0
        %2930 = vmatpush1.bf16.msra.mxu0 0
        %2931 = vmatprep.subr.bf16.mxu0 0
        %2932 = vmatpush1.bf16.msra.mxu0 0
        %2933 = vmatprep.subr.bf16.mxu0 0
        %2934 = vmatpush1.bf16.msra.mxu0 %v2918
        %2935 = vmatprep.subr.bf16.mxu0 0
        %2936 = vmatpush1.bf16.msra.mxu0 %v2917
        %2937 = vmatprep.subr.bf16.mxu0 0
        %2938 = vmatpush2.bf16.msra.mxu0 0
        %2939 = vmatprep.subr.bf16.mxu0 0
        %2940 = vmatpush2.bf16.msra.mxu0 0
        %2941 = vmatprep.subr.bf16.mxu0 0
        %2942 = vmatpush2.bf16.msra.mxu0 0
        %2943 = vmatprep.subr.bf16.mxu0 0
        %2944 = vmatpush2.bf16.msra.mxu0 0
        %2945 = vmatprep.subr.bf16.mxu0 0
        %2946 = vmatpush2.bf16.msra.mxu0 0
        %2947 = vmatprep.subr.bf16.mxu0 0
        %2948 = vmatpush2.bf16.msra.mxu0 0
        %2949 = vmatprep.subr.bf16.mxu0 0
        %2950 = vmatpush2.bf16.msra.mxu0 0
        %2951 = vmatprep.subr.bf16.mxu0 0
        %2952 = vmatpush2.bf16.msra.mxu0 0
        %2953 = vmatprep.mubr.bf16.mxu0 0
        %2954 = vmatmul.mubr.bf16.gmra.mxu0 %v2711
        %v2955 = vpop.f32.mrf.mxu0
        %v2956 = vadd.f32 %v2657, %v2955
        %v2957 = vpop.f32.mrf.mxu0
        %v2958 = vpop.f32.mrf.mxu0
        %v2959 = vpop.f32.mrf.mxu0
        %2960 = vdwg.mxu0
        %v2965 = vunpack.c.l.b16 %v2585
        %v2966 = vunpack.c.l.b16 %v2586
        %v2967 = vunpack.c.l.b16 %v2587
        %v2968 = vunpack.c.l.b16 %v2588
        %v2969 = vpack.c.b16 %v2966, %v2965
        %v2970 = vpack.c.b16 %v2968, %v2967
        %2973 = vmatprep.subr.bf16.mxu0 0
        %2974 = vmatpush1.bf16.msra.mxu0 0
        %2975 = vmatprep.subr.bf16.mxu0 0
        %2976 = vmatpush1.bf16.msra.mxu0 0
        %2977 = vmatprep.subr.bf16.mxu0 0
        %2978 = vmatpush1.bf16.msra.mxu0 0
        %2979 = vmatprep.subr.bf16.mxu0 0
        %2980 = vmatpush1.bf16.msra.mxu0 0
        %2981 = vmatprep.subr.bf16.mxu0 0
        %2982 = vmatpush1.bf16.msra.mxu0 0
        %2983 = vmatprep.subr.bf16.mxu0 0
        %2984 = vmatpush1.bf16.msra.mxu0 0
        %2985 = vmatprep.subr.bf16.mxu0 0
        %2986 = vmatpush1.bf16.msra.mxu0 %v2970
        %2987 = vmatprep.subr.bf16.mxu0 0
        %2988 = vmatpush1.bf16.msra.mxu0 %v2969
        %2989 = vmatprep.subr.bf16.mxu0 0
        %2990 = vmatpush2.bf16.msra.mxu0 0
        %2991 = vmatprep.subr.bf16.mxu0 0
        %2992 = vmatpush2.bf16.msra.mxu0 0
        %2993 = vmatprep.subr.bf16.mxu0 0
        %2994 = vmatpush2.bf16.msra.mxu0 0
        %2995 = vmatprep.subr.bf16.mxu0 0
        %2996 = vmatpush2.bf16.msra.mxu0 0
        %2997 = vmatprep.subr.bf16.mxu0 0
        %2998 = vmatpush2.bf16.msra.mxu0 0
        %2999 = vmatprep.subr.bf16.mxu0 0
        %3000 = vmatpush2.bf16.msra.mxu0 0
        %3001 = vmatprep.subr.bf16.mxu0 0
        %3002 = vmatpush2.bf16.msra.mxu0 0
        %3003 = vmatprep.subr.bf16.mxu0 0
        %3004 = vmatpush2.bf16.msra.mxu0 0
        %3005 = vmatprep.mubr.bf16.mxu0 0
        %3006 = vmatmul.mubr.bf16.gmra.mxu0 %v2711
        %v3007 = vpop.f32.mrf.mxu0
        %v3008 = vadd.f32 %v2661, %v3007
        %v3009 = vpop.f32.mrf.mxu0
        %v3010 = vpop.f32.mrf.mxu0
        %v3011 = vpop.f32.mrf.mxu0
        %3012 = vdwg.mxu0
        %v3017 = vunpack.c.l.b16 %v2589
        %v3018 = vunpack.c.l.b16 %v2590
        %v3019 = vunpack.c.l.b16 %v2591
        %v3020 = vunpack.c.l.b16 %v2592
        %v3021 = vpack.c.b16 %v3018, %v3017
        %v3022 = vpack.c.b16 %v3020, %v3019
        %3025 = vmatprep.subr.bf16.mxu0 0
        %3026 = vmatpush1.bf16.msra.mxu0 0
        %3027 = vmatprep.subr.bf16.mxu0 0
        %3028 = vmatpush1.bf16.msra.mxu0 0
        %3029 = vmatprep.subr.bf16.mxu0 0
        %3030 = vmatpush1.bf16.msra.mxu0 0
        %3031 = vmatprep.subr.bf16.mxu0 0
        %3032 = vmatpush1.bf16.msra.mxu0 0
        %3033 = vmatprep.subr.bf16.mxu0 0
        %3034 = vmatpush1.bf16.msra.mxu0 0
        %3035 = vmatprep.subr.bf16.mxu0 0
        %3036 = vmatpush1.bf16.msra.mxu0 0
        %3037 = vmatprep.subr.bf16.mxu0 0
        %3038 = vmatpush1.bf16.msra.mxu0 %v3022
        %3039 = vmatprep.subr.bf16.mxu0 0
        %3040 = vmatpush1.bf16.msra.mxu0 %v3021
        %3041 = vmatprep.subr.bf16.mxu0 0
        %3042 = vmatpush2.bf16.msra.mxu0 0
        %3043 = vmatprep.subr.bf16.mxu0 0
        %3044 = vmatpush2.bf16.msra.mxu0 0
        %3045 = vmatprep.subr.bf16.mxu0 0
        %3046 = vmatpush2.bf16.msra.mxu0 0
        %3047 = vmatprep.subr.bf16.mxu0 0
        %3048 = vmatpush2.bf16.msra.mxu0 0
        %3049 = vmatprep.subr.bf16.mxu0 0
        %3050 = vmatpush2.bf16.msra.mxu0 0
        %3051 = vmatprep.subr.bf16.mxu0 0
        %3052 = vmatpush2.bf16.msra.mxu0 0
        %3053 = vmatprep.subr.bf16.mxu0 0
        %3054 = vmatpush2.bf16.msra.mxu0 0
        %3055 = vmatprep.subr.bf16.mxu0 0
        %3056 = vmatpush2.bf16.msra.mxu0 0
        %3057 = vmatprep.mubr.bf16.mxu0 0
        %3058 = vmatmul.mubr.bf16.gmra.mxu0 %v2711
        %v3059 = vpop.f32.mrf.mxu0
        %v3060 = vadd.f32 %v2665, %v3059
        %v3061 = vpop.f32.mrf.mxu0
        %v3062 = vpop.f32.mrf.mxu0
        %v3063 = vpop.f32.mrf.mxu0
        %3064 = vdwg.mxu0
        %v3069 = vunpack.c.l.b16 %v2593
        %v3070 = vunpack.c.l.b16 %v2594
        %v3071 = vunpack.c.l.b16 %v2595
        %v3072 = vunpack.c.l.b16 %v2596
        %v3073 = vpack.c.b16 %v3070, %v3069
        %v3074 = vpack.c.b16 %v3072, %v3071
        %3077 = vmatprep.subr.bf16.mxu0 0
        %3078 = vmatpush1.bf16.msra.mxu0 0
        %3079 = vmatprep.subr.bf16.mxu0 0
        %3080 = vmatpush1.bf16.msra.mxu0 0
        %3081 = vmatprep.subr.bf16.mxu0 0
        %3082 = vmatpush1.bf16.msra.mxu0 0
        %3083 = vmatprep.subr.bf16.mxu0 0
        %3084 = vmatpush1.bf16.msra.mxu0 0
        %3085 = vmatprep.subr.bf16.mxu0 0
        %3086 = vmatpush1.bf16.msra.mxu0 0
        %3087 = vmatprep.subr.bf16.mxu0 0
        %3088 = vmatpush1.bf16.msra.mxu0 0
        %3089 = vmatprep.subr.bf16.mxu0 0
        %3090 = vmatpush1.bf16.msra.mxu0 %v3074
        %3091 = vmatprep.subr.bf16.mxu0 0
        %3092 = vmatpush1.bf16.msra.mxu0 %v3073
        %3093 = vmatprep.subr.bf16.mxu0 0
        %3094 = vmatpush2.bf16.msra.mxu0 0
        %3095 = vmatprep.subr.bf16.mxu0 0
        %3096 = vmatpush2.bf16.msra.mxu0 0
        %3097 = vmatprep.subr.bf16.mxu0 0
        %3098 = vmatpush2.bf16.msra.mxu0 0
        %3099 = vmatprep.subr.bf16.mxu0 0
        %3100 = vmatpush2.bf16.msra.mxu0 0
        %3101 = vmatprep.subr.bf16.mxu0 0
        %3102 = vmatpush2.bf16.msra.mxu0 0
        %3103 = vmatprep.subr.bf16.mxu0 0
        %3104 = vmatpush2.bf16.msra.mxu0 0
        %3105 = vmatprep.subr.bf16.mxu0 0
        %3106 = vmatpush2.bf16.msra.mxu0 0
        %3107 = vmatprep.subr.bf16.mxu0 0
        %3108 = vmatpush2.bf16.msra.mxu0 0
        %3109 = vmatprep.mubr.bf16.mxu0 0
        %3110 = vmatmul.mubr.bf16.gmra.mxu0 %v2711
        %v3111 = vpop.f32.mrf.mxu0
        %v3112 = vadd.f32 %v2669, %v3111
        %v3113 = vpop.f32.mrf.mxu0
        %v3114 = vpop.f32.mrf.mxu0
        %v3115 = vpop.f32.mrf.mxu0
        %3116 = vdwg.mxu0
        %v3121 = vunpack.c.l.b16 %v2597
        %v3122 = vunpack.c.l.b16 %v2598
        %v3123 = vunpack.c.l.b16 %v2599
        %v3124 = vunpack.c.l.b16 %v2600
        %v3125 = vpack.c.b16 %v3122, %v3121
        %v3126 = vpack.c.b16 %v3124, %v3123
        %3129 = vmatprep.subr.bf16.mxu0 0
        %3130 = vmatpush1.bf16.msra.mxu0 0
        %3131 = vmatprep.subr.bf16.mxu0 0
        %3132 = vmatpush1.bf16.msra.mxu0 0
        %3133 = vmatprep.subr.bf16.mxu0 0
        %3134 = vmatpush1.bf16.msra.mxu0 0
        %3135 = vmatprep.subr.bf16.mxu0 0
        %3136 = vmatpush1.bf16.msra.mxu0 0
        %3137 = vmatprep.subr.bf16.mxu0 0
        %3138 = vmatpush1.bf16.msra.mxu0 0
        %3139 = vmatprep.subr.bf16.mxu0 0
        %3140 = vmatpush1.bf16.msra.mxu0 0
        %3141 = vmatprep.subr.bf16.mxu0 0
        %3142 = vmatpush1.bf16.msra.mxu0 %v3126
        %3143 = vmatprep.subr.bf16.mxu0 0
        %3144 = vmatpush1.bf16.msra.mxu0 %v3125
        %3145 = vmatprep.subr.bf16.mxu0 0
        %3146 = vmatpush2.bf16.msra.mxu0 0
        %3147 = vmatprep.subr.bf16.mxu0 0
        %3148 = vmatpush2.bf16.msra.mxu0 0
        %3149 = vmatprep.subr.bf16.mxu0 0
        %3150 = vmatpush2.bf16.msra.mxu0 0
        %3151 = vmatprep.subr.bf16.mxu0 0
        %3152 = vmatpush2.bf16.msra.mxu0 0
        %3153 = vmatprep.subr.bf16.mxu0 0
        %3154 = vmatpush2.bf16.msra.mxu0 0
        %3155 = vmatprep.subr.bf16.mxu0 0
        %3156 = vmatpush2.bf16.msra.mxu0 0
        %3157 = vmatprep.subr.bf16.mxu0 0
        %3158 = vmatpush2.bf16.msra.mxu0 0
        %3159 = vmatprep.subr.bf16.mxu0 0
        %3160 = vmatpush2.bf16.msra.mxu0 0
        %3161 = vmatprep.mubr.bf16.mxu0 0
        %3162 = vmatmul.mubr.bf16.gmra.mxu0 %v2711
        %v3163 = vpop.f32.mrf.mxu0
        %v3164 = vadd.f32 %v2673, %v3163
        %v3165 = vpop.f32.mrf.mxu0
        %v3166 = vpop.f32.mrf.mxu0
        %v3167 = vpop.f32.mrf.mxu0
        %3168 = vdwg.mxu0
        %v3173 = vunpack.c.l.b16 %v2601
        %v3174 = vunpack.c.l.b16 %v2602
        %v3175 = vunpack.c.l.b16 %v2603
        %v3176 = vunpack.c.l.b16 %v2604
        %v3177 = vpack.c.b16 %v3174, %v3173
        %v3178 = vpack.c.b16 %v3176, %v3175
        %3181 = vmatprep.subr.bf16.mxu0 0
        %3182 = vmatpush1.bf16.msra.mxu0 0
        %3183 = vmatprep.subr.bf16.mxu0 0
        %3184 = vmatpush1.bf16.msra.mxu0 0
        %3185 = vmatprep.subr.bf16.mxu0 0
        %3186 = vmatpush1.bf16.msra.mxu0 0
        %3187 = vmatprep.subr.bf16.mxu0 0
        %3188 = vmatpush1.bf16.msra.mxu0 0
        %3189 = vmatprep.subr.bf16.mxu0 0
        %3190 = vmatpush1.bf16.msra.mxu0 0
        %3191 = vmatprep.subr.bf16.mxu0 0
        %3192 = vmatpush1.bf16.msra.mxu0 0
        %3193 = vmatprep.subr.bf16.mxu0 0
        %3194 = vmatpush1.bf16.msra.mxu0 %v3178
        %3195 = vmatprep.subr.bf16.mxu0 0
        %3196 = vmatpush1.bf16.msra.mxu0 %v3177
        %3197 = vmatprep.subr.bf16.mxu0 0
        %3198 = vmatpush2.bf16.msra.mxu0 0
        %3199 = vmatprep.subr.bf16.mxu0 0
        %3200 = vmatpush2.bf16.msra.mxu0 0
        %3201 = vmatprep.subr.bf16.mxu0 0
        %3202 = vmatpush2.bf16.msra.mxu0 0
        %3203 = vmatprep.subr.bf16.mxu0 0
        %3204 = vmatpush2.bf16.msra.mxu0 0
        %3205 = vmatprep.subr.bf16.mxu0 0
        %3206 = vmatpush2.bf16.msra.mxu0 0
        %3207 = vmatprep.subr.bf16.mxu0 0
        %3208 = vmatpush2.bf16.msra.mxu0 0
        %3209 = vmatprep.subr.bf16.mxu0 0
        %3210 = vmatpush2.bf16.msra.mxu0 0
        %3211 = vmatprep.subr.bf16.mxu0 0
        %3212 = vmatpush2.bf16.msra.mxu0 0
        %3213 = vmatprep.mubr.bf16.mxu0 0
        %3214 = vmatmul.mubr.bf16.gmra.mxu0 %v2711
        %v3215 = vpop.f32.mrf.mxu0
        %v3216 = vadd.f32 %v2677, %v3215
        %v3217 = vpop.f32.mrf.mxu0
        %v3218 = vpop.f32.mrf.mxu0
        %v3219 = vpop.f32.mrf.mxu0
        %3220 = vdwg.mxu0
        %v3225 = vunpack.c.l.b16 %v2605
        %v3226 = vunpack.c.l.b16 %v2606
        %v3227 = vunpack.c.l.b16 %v2607
        %v3228 = vunpack.c.l.b16 %v2608
        %v3229 = vpack.c.b16 %v3226, %v3225
        %v3230 = vpack.c.b16 %v3228, %v3227
        %3233 = vmatprep.subr.bf16.mxu0 0
        %3234 = vmatpush1.bf16.msra.mxu0 0
        %3235 = vmatprep.subr.bf16.mxu0 0
        %3236 = vmatpush1.bf16.msra.mxu0 0
        %3237 = vmatprep.subr.bf16.mxu0 0
        %3238 = vmatpush1.bf16.msra.mxu0 0
        %3239 = vmatprep.subr.bf16.mxu0 0
        %3240 = vmatpush1.bf16.msra.mxu0 0
        %3241 = vmatprep.subr.bf16.mxu0 0
        %3242 = vmatpush1.bf16.msra.mxu0 0
        %3243 = vmatprep.subr.bf16.mxu0 0
        %3244 = vmatpush1.bf16.msra.mxu0 0
        %3245 = vmatprep.subr.bf16.mxu0 0
        %3246 = vmatpush1.bf16.msra.mxu0 %v3230
        %3247 = vmatprep.subr.bf16.mxu0 0
        %3248 = vmatpush1.bf16.msra.mxu0 %v3229
        %3249 = vmatprep.subr.bf16.mxu0 0
        %3250 = vmatpush2.bf16.msra.mxu0 0
        %3251 = vmatprep.subr.bf16.mxu0 0
        %3252 = vmatpush2.bf16.msra.mxu0 0
        %3253 = vmatprep.subr.bf16.mxu0 0
        %3254 = vmatpush2.bf16.msra.mxu0 0
        %3255 = vmatprep.subr.bf16.mxu0 0
        %3256 = vmatpush2.bf16.msra.mxu0 0
        %3257 = vmatprep.subr.bf16.mxu0 0
        %3258 = vmatpush2.bf16.msra.mxu0 0
        %3259 = vmatprep.subr.bf16.mxu0 0
        %3260 = vmatpush2.bf16.msra.mxu0 0
        %3261 = vmatprep.subr.bf16.mxu0 0
        %3262 = vmatpush2.bf16.msra.mxu0 0
        %3263 = vmatprep.subr.bf16.mxu0 0
        %3264 = vmatpush2.bf16.msra.mxu0 0
        %3265 = vmatprep.mubr.bf16.mxu0 0
        %3266 = vmatmul.mubr.bf16.gmra.mxu0 %v2711
        %v3267 = vpop.f32.mrf.mxu0
        %v3268 = vadd.f32 %v2681, %v3267
        %v3269 = vpop.f32.mrf.mxu0
        %v3270 = vpop.f32.mrf.mxu0
        %v3271 = vpop.f32.mrf.mxu0
        %3272 = vdwg.mxu0
        %v3277 = vunpack.c.l.b16 %v2609
        %v3278 = vunpack.c.l.b16 %v2610
        %v3279 = vunpack.c.l.b16 %v2611
        %v3280 = vunpack.c.l.b16 %v2612
        %v3281 = vpack.c.b16 %v3278, %v3277
        %v3282 = vpack.c.b16 %v3280, %v3279
        %3285 = vmatprep.subr.bf16.mxu0 0
        %3286 = vmatpush1.bf16.msra.mxu0 0
        %3287 = vmatprep.subr.bf16.mxu0 0
        %3288 = vmatpush1.bf16.msra.mxu0 0
        %3289 = vmatprep.subr.bf16.mxu0 0
        %3290 = vmatpush1.bf16.msra.mxu0 0
        %3291 = vmatprep.subr.bf16.mxu0 0
        %3292 = vmatpush1.bf16.msra.mxu0 0
        %3293 = vmatprep.subr.bf16.mxu0 0
        %3294 = vmatpush1.bf16.msra.mxu0 0
        %3295 = vmatprep.subr.bf16.mxu0 0
        %3296 = vmatpush1.bf16.msra.mxu0 0
        %3297 = vmatprep.subr.bf16.mxu0 0
        %3298 = vmatpush1.bf16.msra.mxu0 %v3282
        %3299 = vmatprep.subr.bf16.mxu0 0
        %3300 = vmatpush1.bf16.msra.mxu0 %v3281
        %3301 = vmatprep.subr.bf16.mxu0 0
        %3302 = vmatpush2.bf16.msra.mxu0 0
        %3303 = vmatprep.subr.bf16.mxu0 0
        %3304 = vmatpush2.bf16.msra.mxu0 0
        %3305 = vmatprep.subr.bf16.mxu0 0
        %3306 = vmatpush2.bf16.msra.mxu0 0
        %3307 = vmatprep.subr.bf16.mxu0 0
        %3308 = vmatpush2.bf16.msra.mxu0 0
        %3309 = vmatprep.subr.bf16.mxu0 0
        %3310 = vmatpush2.bf16.msra.mxu0 0
        %3311 = vmatprep.subr.bf16.mxu0 0
        %3312 = vmatpush2.bf16.msra.mxu0 0
        %3313 = vmatprep.subr.bf16.mxu0 0
        %3314 = vmatpush2.bf16.msra.mxu0 0
        %3315 = vmatprep.subr.bf16.mxu0 0
        %3316 = vmatpush2.bf16.msra.mxu0 0
        %3317 = vmatprep.mubr.bf16.mxu0 0
        %3318 = vmatmul.mubr.bf16.gmra.mxu0 %v2711
        %v3319 = vpop.f32.mrf.mxu0
        %v3320 = vadd.f32 %v2685, %v3319
        %v3321 = vpop.f32.mrf.mxu0
        %v3322 = vpop.f32.mrf.mxu0
        %v3323 = vpop.f32.mrf.mxu0
        %3324 = vdwg.mxu0
        %v3326 = vsel %vm1463, %v2748, 0
        %v3329 = vsel %vm1463, %v2956, 0
        %3331 = vmatprep.subr.mxu0 0.0
        %3332 = vmatpush1.xpose.msra.mxu0 0.0
        %3333 = vmatprep.subr.mxu0 0.0
        %3334 = vmatpush1.xpose.msra.mxu0 0.0
        %3335 = vmatprep.subr.mxu0 0.0
        %3336 = vmatpush1.xpose.msra.mxu0 0.0
        %3337 = vmatprep.subr.mxu0 0.0
        %3338 = vmatpush1.xpose.msra.mxu0 0.0
        %3339 = vmatprep.subr.mxu0 0.0
        %3340 = vmatpush1.xpose.msra.mxu0 0.0
        %3341 = vmatprep.subr.mxu0 0.0
        %3342 = vmatpush1.xpose.msra.mxu0 0.0
        %3343 = vmatprep.subr.mxu0 0.0
        %3344 = vmatpush1.xpose.msra.mxu0 0.0
        %3345 = vmatprep.subr.mxu0 0.0
        %3346 = vmatpush1.xpose.msra.mxu0 0.0
        %3347 = vmatprep.subr.mxu0 0.0
        %3348 = vmatpush1.xpose.msra.mxu0 0.0
        %3349 = vmatprep.subr.mxu0 0.0
        %3350 = vmatpush1.xpose.msra.mxu0 0.0
        %3351 = vmatprep.subr.mxu0 0.0
        %3352 = vmatpush1.xpose.msra.mxu0 0.0
        %3353 = vmatprep.subr.mxu0 0.0
        %3354 = vmatpush1.xpose.msra.mxu0 0.0
        %3355 = vmatprep.subr.mxu0 0.0
        %3356 = vmatpush1.xpose.msra.mxu0 0.0
        %3357 = vmatprep.subr.mxu0 0.0
        %3358 = vmatpush1.xpose.msra.mxu0 0.0
        %3359 = vmatprep.subr.mxu0 0.0
        %3360 = vmatpush1.xpose.msra.mxu0 0.0
        %3361 = vmatprep.subr.mxu0 0.0
        %3362 = vmatpush1.xpose.msra.mxu0 %v3329
        %3363 = vmatprep.subr.mxu0 0.0
        %3364 = vmatpush2.xpose.msra.mxu0 0.0
        %3365 = vmatprep.subr.mxu0 0.0
        %3366 = vmatpush2.xpose.msra.mxu0 0.0
        %3367 = vmatprep.subr.mxu0 0.0
        %3368 = vmatpush2.xpose.msra.mxu0 0.0
        %3369 = vmatprep.subr.mxu0 0.0
        %3370 = vmatpush2.xpose.msra.mxu0 0.0
        %3371 = vmatprep.subr.mxu0 0.0
        %3372 = vmatpush2.xpose.msra.mxu0 0.0
        %3373 = vmatprep.subr.mxu0 0.0
        %3374 = vmatpush2.xpose.msra.mxu0 0.0
        %3375 = vmatprep.subr.mxu0 0.0
        %3376 = vmatpush2.xpose.msra.mxu0 0.0
        %3377 = vmatprep.subr.mxu0 0.0
        %3378 = vmatpush2.xpose.msra.mxu0 0.0
        %3379 = vmatprep.subr.mxu0 0.0
        %3380 = vmatpush2.xpose.msra.mxu0 0.0
        %3381 = vmatprep.subr.mxu0 0.0
        %3382 = vmatpush2.xpose.msra.mxu0 0.0
        %3383 = vmatprep.subr.mxu0 0.0
        %3384 = vmatpush2.xpose.msra.mxu0 0.0
        %3385 = vmatprep.subr.mxu0 0.0
        %3386 = vmatpush2.xpose.msra.mxu0 0.0
        %3387 = vmatprep.subr.mxu0 0.0
        %3388 = vmatpush2.xpose.msra.mxu0 0.0
        %3389 = vmatprep.subr.mxu0 0.0
        %3390 = vmatpush2.xpose.msra.mxu0 0.0
        %3391 = vmatprep.subr.mxu0 0.0
        %3392 = vmatpush2.xpose.msra.mxu0 0.0
        %3393 = vmatprep.subr.mxu0 0.0
        %3394 = vmatpush2.xpose.msra.mxu0 0.0
        %3395 = vmatprep.mubr.f32.mxu0 0.0
        %3396 = vmatmul.mubr.f32.gmra.mxu0 %v3326
        %v3397 = vpop.f32.mrf.mxu0
        %v3398 = vadd.f32 %v671, %v3397
        %v3399 = vpop.f32.mrf.mxu0
        %3400 = vdwg.mxu0
        %v3402 = vsel %vm1463, %v2800, 0
        %v3405 = vsel %vm1463, %v3008, 0
        %3407 = vmatprep.subr.mxu0 0.0
        %3408 = vmatpush1.xpose.msra.mxu0 0.0
        %3409 = vmatprep.subr.mxu0 0.0
        %3410 = vmatpush1.xpose.msra.mxu0 0.0
        %3411 = vmatprep.subr.mxu0 0.0
        %3412 = vmatpush1.xpose.msra.mxu0 0.0
        %3413 = vmatprep.subr.mxu0 0.0
        %3414 = vmatpush1.xpose.msra.mxu0 0.0
        %3415 = vmatprep.subr.mxu0 0.0
        %3416 = vmatpush1.xpose.msra.mxu0 0.0
        %3417 = vmatprep.subr.mxu0 0.0
        %3418 = vmatpush1.xpose.msra.mxu0 0.0
        %3419 = vmatprep.subr.mxu0 0.0
        %3420 = vmatpush1.xpose.msra.mxu0 0.0
        %3421 = vmatprep.subr.mxu0 0.0
        %3422 = vmatpush1.xpose.msra.mxu0 0.0
        %3423 = vmatprep.subr.mxu0 0.0
        %3424 = vmatpush1.xpose.msra.mxu0 0.0
        %3425 = vmatprep.subr.mxu0 0.0
        %3426 = vmatpush1.xpose.msra.mxu0 0.0
        %3427 = vmatprep.subr.mxu0 0.0
        %3428 = vmatpush1.xpose.msra.mxu0 0.0
        %3429 = vmatprep.subr.mxu0 0.0
        %3430 = vmatpush1.xpose.msra.mxu0 0.0
        %3431 = vmatprep.subr.mxu0 0.0
        %3432 = vmatpush1.xpose.msra.mxu0 0.0
        %3433 = vmatprep.subr.mxu0 0.0
        %3434 = vmatpush1.xpose.msra.mxu0 0.0
        %3435 = vmatprep.subr.mxu0 0.0
        %3436 = vmatpush1.xpose.msra.mxu0 0.0
        %3437 = vmatprep.subr.mxu0 0.0
        %3438 = vmatpush1.xpose.msra.mxu0 %v3405
        %3439 = vmatprep.subr.mxu0 0.0
        %3440 = vmatpush2.xpose.msra.mxu0 0.0
        %3441 = vmatprep.subr.mxu0 0.0
        %3442 = vmatpush2.xpose.msra.mxu0 0.0
        %3443 = vmatprep.subr.mxu0 0.0
        %3444 = vmatpush2.xpose.msra.mxu0 0.0
        %3445 = vmatprep.subr.mxu0 0.0
        %3446 = vmatpush2.xpose.msra.mxu0 0.0
        %3447 = vmatprep.subr.mxu0 0.0
        %3448 = vmatpush2.xpose.msra.mxu0 0.0
        %3449 = vmatprep.subr.mxu0 0.0
        %3450 = vmatpush2.xpose.msra.mxu0 0.0
        %3451 = vmatprep.subr.mxu0 0.0
        %3452 = vmatpush2.xpose.msra.mxu0 0.0
        %3453 = vmatprep.subr.mxu0 0.0
        %3454 = vmatpush2.xpose.msra.mxu0 0.0
        %3455 = vmatprep.subr.mxu0 0.0
        %3456 = vmatpush2.xpose.msra.mxu0 0.0
        %3457 = vmatprep.subr.mxu0 0.0
        %3458 = vmatpush2.xpose.msra.mxu0 0.0
        %3459 = vmatprep.subr.mxu0 0.0
        %3460 = vmatpush2.xpose.msra.mxu0 0.0
        %3461 = vmatprep.subr.mxu0 0.0
        %3462 = vmatpush2.xpose.msra.mxu0 0.0
        %3463 = vmatprep.subr.mxu0 0.0
        %3464 = vmatpush2.xpose.msra.mxu0 0.0
        %3465 = vmatprep.subr.mxu0 0.0
        %3466 = vmatpush2.xpose.msra.mxu0 0.0
        %3467 = vmatprep.subr.mxu0 0.0
        %3468 = vmatpush2.xpose.msra.mxu0 0.0
        %3469 = vmatprep.subr.mxu0 0.0
        %3470 = vmatpush2.xpose.msra.mxu0 0.0
        %3471 = vmatprep.mubr.f32.mxu0 0.0
        %3472 = vmatmul.mubr.f32.gmra.mxu0 %v3402
        %v3473 = vpop.f32.mrf.mxu0
        %v3474 = vadd.f32 %v671, %v3473
        %v3475 = vpop.f32.mrf.mxu0
        %3476 = vdwg.mxu0
        %v3478 = vsel %vm1463, %v2852, 0
        %v3481 = vsel %vm1463, %v3060, 0
        %3483 = vmatprep.subr.mxu0 0.0
        %3484 = vmatpush1.xpose.msra.mxu0 0.0
        %3485 = vmatprep.subr.mxu0 0.0
        %3486 = vmatpush1.xpose.msra.mxu0 0.0
        %3487 = vmatprep.subr.mxu0 0.0
        %3488 = vmatpush1.xpose.msra.mxu0 0.0
        %3489 = vmatprep.subr.mxu0 0.0
        %3490 = vmatpush1.xpose.msra.mxu0 0.0
        %3491 = vmatprep.subr.mxu0 0.0
        %3492 = vmatpush1.xpose.msra.mxu0 0.0
        %3493 = vmatprep.subr.mxu0 0.0
        %3494 = vmatpush1.xpose.msra.mxu0 0.0
        %3495 = vmatprep.subr.mxu0 0.0
        %3496 = vmatpush1.xpose.msra.mxu0 0.0
        %3497 = vmatprep.subr.mxu0 0.0
        %3498 = vmatpush1.xpose.msra.mxu0 0.0
        %3499 = vmatprep.subr.mxu0 0.0
        %3500 = vmatpush1.xpose.msra.mxu0 0.0
        %3501 = vmatprep.subr.mxu0 0.0
        %3502 = vmatpush1.xpose.msra.mxu0 0.0
        %3503 = vmatprep.subr.mxu0 0.0
        %3504 = vmatpush1.xpose.msra.mxu0 0.0
        %3505 = vmatprep.subr.mxu0 0.0
        %3506 = vmatpush1.xpose.msra.mxu0 0.0
        %3507 = vmatprep.subr.mxu0 0.0
        %3508 = vmatpush1.xpose.msra.mxu0 0.0
        %3509 = vmatprep.subr.mxu0 0.0
        %3510 = vmatpush1.xpose.msra.mxu0 0.0
        %3511 = vmatprep.subr.mxu0 0.0
        %3512 = vmatpush1.xpose.msra.mxu0 0.0
        %3513 = vmatprep.subr.mxu0 0.0
        %3514 = vmatpush1.xpose.msra.mxu0 %v3481
        %3515 = vmatprep.subr.mxu0 0.0
        %3516 = vmatpush2.xpose.msra.mxu0 0.0
        %3517 = vmatprep.subr.mxu0 0.0
        %3518 = vmatpush2.xpose.msra.mxu0 0.0
        %3519 = vmatprep.subr.mxu0 0.0
        %3520 = vmatpush2.xpose.msra.mxu0 0.0
        %3521 = vmatprep.subr.mxu0 0.0
        %3522 = vmatpush2.xpose.msra.mxu0 0.0
        %3523 = vmatprep.subr.mxu0 0.0
        %3524 = vmatpush2.xpose.msra.mxu0 0.0
        %3525 = vmatprep.subr.mxu0 0.0
        %3526 = vmatpush2.xpose.msra.mxu0 0.0
        %3527 = vmatprep.subr.mxu0 0.0
        %3528 = vmatpush2.xpose.msra.mxu0 0.0
        %3529 = vmatprep.subr.mxu0 0.0
        %3530 = vmatpush2.xpose.msra.mxu0 0.0
        %3531 = vmatprep.subr.mxu0 0.0
        %3532 = vmatpush2.xpose.msra.mxu0 0.0
        %3533 = vmatprep.subr.mxu0 0.0
        %3534 = vmatpush2.xpose.msra.mxu0 0.0
        %3535 = vmatprep.subr.mxu0 0.0
        %3536 = vmatpush2.xpose.msra.mxu0 0.0
        %3537 = vmatprep.subr.mxu0 0.0
        %3538 = vmatpush2.xpose.msra.mxu0 0.0
        %3539 = vmatprep.subr.mxu0 0.0
        %3540 = vmatpush2.xpose.msra.mxu0 0.0
        %3541 = vmatprep.subr.mxu0 0.0
        %3542 = vmatpush2.xpose.msra.mxu0 0.0
        %3543 = vmatprep.subr.mxu0 0.0
        %3544 = vmatpush2.xpose.msra.mxu0 0.0
        %3545 = vmatprep.subr.mxu0 0.0
        %3546 = vmatpush2.xpose.msra.mxu0 0.0
        %3547 = vmatprep.mubr.f32.mxu0 0.0
        %3548 = vmatmul.mubr.f32.gmra.mxu0 %v3478
        %v3549 = vpop.f32.mrf.mxu0
        %v3550 = vadd.f32 %v671, %v3549
        %v3551 = vpop.f32.mrf.mxu0
        %3552 = vdwg.mxu0
        %v3554 = vsel %vm1463, %v2904, 0
        %v3557 = vsel %vm1463, %v3112, 0
        %3559 = vmatprep.subr.mxu0 0.0
        %3560 = vmatpush1.xpose.msra.mxu0 0.0
        %3561 = vmatprep.subr.mxu0 0.0
        %3562 = vmatpush1.xpose.msra.mxu0 0.0
        %3563 = vmatprep.subr.mxu0 0.0
        %3564 = vmatpush1.xpose.msra.mxu0 0.0
        %3565 = vmatprep.subr.mxu0 0.0
        %3566 = vmatpush1.xpose.msra.mxu0 0.0
        %3567 = vmatprep.subr.mxu0 0.0
        %3568 = vmatpush1.xpose.msra.mxu0 0.0
        %3569 = vmatprep.subr.mxu0 0.0
        %3570 = vmatpush1.xpose.msra.mxu0 0.0
        %3571 = vmatprep.subr.mxu0 0.0
        %3572 = vmatpush1.xpose.msra.mxu0 0.0
        %3573 = vmatprep.subr.mxu0 0.0
        %3574 = vmatpush1.xpose.msra.mxu0 0.0
        %3575 = vmatprep.subr.mxu0 0.0
        %3576 = vmatpush1.xpose.msra.mxu0 0.0
        %3577 = vmatprep.subr.mxu0 0.0
        %3578 = vmatpush1.xpose.msra.mxu0 0.0
        %3579 = vmatprep.subr.mxu0 0.0
        %3580 = vmatpush1.xpose.msra.mxu0 0.0
        %3581 = vmatprep.subr.mxu0 0.0
        %3582 = vmatpush1.xpose.msra.mxu0 0.0
        %3583 = vmatprep.subr.mxu0 0.0
        %3584 = vmatpush1.xpose.msra.mxu0 0.0
        %3585 = vmatprep.subr.mxu0 0.0
        %3586 = vmatpush1.xpose.msra.mxu0 0.0
        %3587 = vmatprep.subr.mxu0 0.0
        %3588 = vmatpush1.xpose.msra.mxu0 0.0
        %3589 = vmatprep.subr.mxu0 0.0
        %3590 = vmatpush1.xpose.msra.mxu0 %v3557
        %3591 = vmatprep.subr.mxu0 0.0
        %3592 = vmatpush2.xpose.msra.mxu0 0.0
        %3593 = vmatprep.subr.mxu0 0.0
        %3594 = vmatpush2.xpose.msra.mxu0 0.0
        %3595 = vmatprep.subr.mxu0 0.0
        %3596 = vmatpush2.xpose.msra.mxu0 0.0
        %3597 = vmatprep.subr.mxu0 0.0
        %3598 = vmatpush2.xpose.msra.mxu0 0.0
        %3599 = vmatprep.subr.mxu0 0.0
        %3600 = vmatpush2.xpose.msra.mxu0 0.0
        %3601 = vmatprep.subr.mxu0 0.0
        %3602 = vmatpush2.xpose.msra.mxu0 0.0
        %3603 = vmatprep.subr.mxu0 0.0
        %3604 = vmatpush2.xpose.msra.mxu0 0.0
        %3605 = vmatprep.subr.mxu0 0.0
        %3606 = vmatpush2.xpose.msra.mxu0 0.0
        %3607 = vmatprep.subr.mxu0 0.0
        %3608 = vmatpush2.xpose.msra.mxu0 0.0
        %3609 = vmatprep.subr.mxu0 0.0
        %3610 = vmatpush2.xpose.msra.mxu0 0.0
        %3611 = vmatprep.subr.mxu0 0.0
        %3612 = vmatpush2.xpose.msra.mxu0 0.0
        %3613 = vmatprep.subr.mxu0 0.0
        %3614 = vmatpush2.xpose.msra.mxu0 0.0
        %3615 = vmatprep.subr.mxu0 0.0
        %3616 = vmatpush2.xpose.msra.mxu0 0.0
        %3617 = vmatprep.subr.mxu0 0.0
        %3618 = vmatpush2.xpose.msra.mxu0 0.0
        %3619 = vmatprep.subr.mxu0 0.0
        %3620 = vmatpush2.xpose.msra.mxu0 0.0
        %3621 = vmatprep.subr.mxu0 0.0
        %3622 = vmatpush2.xpose.msra.mxu0 0.0
        %3623 = vmatprep.mubr.f32.mxu0 0.0
        %3624 = vmatmul.mubr.f32.gmra.mxu0 %v3554
        %v3625 = vpop.f32.mrf.mxu0
        %v3626 = vadd.f32 %v671, %v3625
        %v3627 = vpop.f32.mrf.mxu0
        %3628 = vdwg.mxu0
        %v3629 = vsel %vm1463, %v3398, -inf
        %3630 = vmax.xlane.f32.xlu0 %v3629
        %v3631 = vpop.xlane.xlu0 %3630
        %v3632 = vsel %vm1463, %v3474, -inf
        %3633 = vmax.xlane.f32.xlu0 %v3632
        %v3634 = vpop.xlane.xlu0 %3633
        %v3635 = vsel %vm1463, %v3550, -inf
        %3636 = vmax.xlane.f32.xlu0 %v3635
        %v3637 = vpop.xlane.xlu0 %3636
        %v3638 = vsel %vm1463, %v3626, -inf
        %3639 = vmax.xlane.f32.xlu0 %v3638
        %v3640 = vpop.xlane.xlu0 %3639
        %v3641 = vsub.f32 %v3398, %v3631
        %v3642 = vsub.f32 %v3474, %v3634
        %v3643 = vsub.f32 %v3550, %v3637
        %v3644 = vsub.f32 %v3626, %v3640
        %v3645 = vmul.f32 %v3641, 1.442695
        %v3646 = vpow.pop %v3645
        %v3647 = vmul.f32 %v3642, 1.442695
        %v3648 = vpow.pop %v3647
        %v3649 = vmul.f32 %v3643, 1.442695
        %v3650 = vpow.pop %v3649
        %v3651 = vmul.f32 %v3644, 1.442695
        %v3652 = vpow.pop %v3651
        %v3653 = vsel %vm1463, %v3646, 0.0
        %3654 = vadd.xlane.f32.xlu0 %v3653
        %v3655 = vpop.xlane.xlu0 %3654
        %v3656 = vsel %vm1463, %v3648, 0.0
        %3657 = vadd.xlane.f32.xlu0 %v3656
        %v3658 = vpop.xlane.xlu0 %3657
        %v3659 = vsel %vm1463, %v3650, 0.0
        %3660 = vadd.xlane.f32.xlu0 %v3659
        %v3661 = vpop.xlane.xlu0 %3660
        %v3662 = vsel %vm1463, %v3652, 0.0
        %3663 = vadd.xlane.f32.xlu0 %v3662
        %v3664 = vpop.xlane.xlu0 %3663
        %v3665 = vrcp.pop %v3655
        %v3666 = vrcp.pop %v3658
        %v3667 = vrcp.pop %v3661
        %v3668 = vrcp.pop %v3664
        %v3669 = vmul.f32 %v3646, %v3665
        %v3670 = vmul.f32 %v3648, %v3666
        %v3671 = vmul.f32 %v3650, %v3667
        %v3672 = vmul.f32 %v3652, %v3668
        %v3674 = vsel %vm1463, %v3669, 0
        %3676 = vmatprep.subr.mxu0 0.0
        %3677 = vmatpush1.msra.mxu0 0.0
        %3678 = vmatprep.subr.mxu0 0.0
        %3679 = vmatpush1.msra.mxu0 0.0
        %3680 = vmatprep.subr.mxu0 0.0
        %3681 = vmatpush1.msra.mxu0 0.0
        %3682 = vmatprep.subr.mxu0 0.0
        %3683 = vmatpush1.msra.mxu0 0.0
        %3684 = vmatprep.subr.mxu0 0.0
        %3685 = vmatpush1.msra.mxu0 0.0
        %3686 = vmatprep.subr.mxu0 0.0
        %3687 = vmatpush1.msra.mxu0 0.0
        %3688 = vmatprep.subr.mxu0 0.0
        %3689 = vmatpush1.msra.mxu0 0.0
        %3690 = vmatprep.subr.mxu0 0.0
        %3691 = vmatpush1.msra.mxu0 0.0
        %3692 = vmatprep.subr.mxu0 0.0
        %3693 = vmatpush1.msra.mxu0 0.0
        %3694 = vmatprep.subr.mxu0 0.0
        %3695 = vmatpush1.msra.mxu0 0.0
        %3696 = vmatprep.subr.mxu0 0.0
        %3697 = vmatpush1.msra.mxu0 0.0
        %3698 = vmatprep.subr.mxu0 0.0
        %3699 = vmatpush1.msra.mxu0 0.0
        %3700 = vmatprep.subr.mxu0 0.0
        %3701 = vmatpush1.msra.mxu0 0.0
        %3702 = vmatprep.subr.mxu0 0.0
        %3703 = vmatpush1.msra.mxu0 0.0
        %3704 = vmatprep.subr.mxu0 0.0
        %3705 = vmatpush1.msra.mxu0 0.0
        %3706 = vmatprep.subr.mxu0 0.0
        %3707 = vmatpush1.msra.mxu0 %v3164
        %3708 = vmatprep.subr.mxu0 0.0
        %3709 = vmatpush2.msra.mxu0 0.0
        %3710 = vmatprep.subr.mxu0 0.0
        %3711 = vmatpush2.msra.mxu0 0.0
        %3712 = vmatprep.subr.mxu0 0.0
        %3713 = vmatpush2.msra.mxu0 0.0
        %3714 = vmatprep.subr.mxu0 0.0
        %3715 = vmatpush2.msra.mxu0 0.0
        %3716 = vmatprep.subr.mxu0 0.0
        %3717 = vmatpush2.msra.mxu0 0.0
        %3718 = vmatprep.subr.mxu0 0.0
        %3719 = vmatpush2.msra.mxu0 0.0
        %3720 = vmatprep.subr.mxu0 0.0
        %3721 = vmatpush2.msra.mxu0 0.0
        %3722 = vmatprep.subr.mxu0 0.0
        %3723 = vmatpush2.msra.mxu0 0.0
        %3724 = vmatprep.subr.mxu0 0.0
        %3725 = vmatpush2.msra.mxu0 0.0
        %3726 = vmatprep.subr.mxu0 0.0
        %3727 = vmatpush2.msra.mxu0 0.0
        %3728 = vmatprep.subr.mxu0 0.0
        %3729 = vmatpush2.msra.mxu0 0.0
        %3730 = vmatprep.subr.mxu0 0.0
        %3731 = vmatpush2.msra.mxu0 0.0
        %3732 = vmatprep.subr.mxu0 0.0
        %3733 = vmatpush2.msra.mxu0 0.0
        %3734 = vmatprep.subr.mxu0 0.0
        %3735 = vmatpush2.msra.mxu0 0.0
        %3736 = vmatprep.subr.mxu0 0.0
        %3737 = vmatpush2.msra.mxu0 0.0
        %3738 = vmatprep.subr.mxu0 0.0
        %3739 = vmatpush2.msra.mxu0 0.0
        %3740 = vmatprep.mubr.f32.mxu0 0.0
        %3741 = vmatmul.mubr.f32.gmra.mxu0 %v3674
        %v3742 = vpop.f32.mrf.mxu0
        %v3743 = vadd.f32 0.0, %v3742
        %v3744 = vpop.f32.mrf.mxu0
        %3745 = vdwg.mxu0
        %v3747 = vsel %vm1463, %v3670, 0
        %3749 = vmatprep.subr.mxu0 0.0
        %3750 = vmatpush1.msra.mxu0 0.0
        %3751 = vmatprep.subr.mxu0 0.0
        %3752 = vmatpush1.msra.mxu0 0.0
        %3753 = vmatprep.subr.mxu0 0.0
        %3754 = vmatpush1.msra.mxu0 0.0
        %3755 = vmatprep.subr.mxu0 0.0
        %3756 = vmatpush1.msra.mxu0 0.0
        %3757 = vmatprep.subr.mxu0 0.0
        %3758 = vmatpush1.msra.mxu0 0.0
        %3759 = vmatprep.subr.mxu0 0.0
        %3760 = vmatpush1.msra.mxu0 0.0
        %3761 = vmatprep.subr.mxu0 0.0
        %3762 = vmatpush1.msra.mxu0 0.0
        %3763 = vmatprep.subr.mxu0 0.0
        %3764 = vmatpush1.msra.mxu0 0.0
        %3765 = vmatprep.subr.mxu0 0.0
        %3766 = vmatpush1.msra.mxu0 0.0
        %3767 = vmatprep.subr.mxu0 0.0
        %3768 = vmatpush1.msra.mxu0 0.0
        %3769 = vmatprep.subr.mxu0 0.0
        %3770 = vmatpush1.msra.mxu0 0.0
        %3771 = vmatprep.subr.mxu0 0.0
        %3772 = vmatpush1.msra.mxu0 0.0
        %3773 = vmatprep.subr.mxu0 0.0
        %3774 = vmatpush1.msra.mxu0 0.0
        %3775 = vmatprep.subr.mxu0 0.0
        %3776 = vmatpush1.msra.mxu0 0.0
        %3777 = vmatprep.subr.mxu0 0.0
        %3778 = vmatpush1.msra.mxu0 0.0
        %3779 = vmatprep.subr.mxu0 0.0
        %3780 = vmatpush1.msra.mxu0 %v3216
        %3781 = vmatprep.subr.mxu0 0.0
        %3782 = vmatpush2.msra.mxu0 0.0
        %3783 = vmatprep.subr.mxu0 0.0
        %3784 = vmatpush2.msra.mxu0 0.0
        %3785 = vmatprep.subr.mxu0 0.0
        %3786 = vmatpush2.msra.mxu0 0.0
        %3787 = vmatprep.subr.mxu0 0.0
        %3788 = vmatpush2.msra.mxu0 0.0
        %3789 = vmatprep.subr.mxu0 0.0
        %3790 = vmatpush2.msra.mxu0 0.0
        %3791 = vmatprep.subr.mxu0 0.0
        %3792 = vmatpush2.msra.mxu0 0.0
        %3793 = vmatprep.subr.mxu0 0.0
        %3794 = vmatpush2.msra.mxu0 0.0
        %3795 = vmatprep.subr.mxu0 0.0
        %3796 = vmatpush2.msra.mxu0 0.0
        %3797 = vmatprep.subr.mxu0 0.0
        %3798 = vmatpush2.msra.mxu0 0.0
        %3799 = vmatprep.subr.mxu0 0.0
        %3800 = vmatpush2.msra.mxu0 0.0
        %3801 = vmatprep.subr.mxu0 0.0
        %3802 = vmatpush2.msra.mxu0 0.0
        %3803 = vmatprep.subr.mxu0 0.0
        %3804 = vmatpush2.msra.mxu0 0.0
        %3805 = vmatprep.subr.mxu0 0.0
        %3806 = vmatpush2.msra.mxu0 0.0
        %3807 = vmatprep.subr.mxu0 0.0
        %3808 = vmatpush2.msra.mxu0 0.0
        %3809 = vmatprep.subr.mxu0 0.0
        %3810 = vmatpush2.msra.mxu0 0.0
        %3811 = vmatprep.subr.mxu0 0.0
        %3812 = vmatpush2.msra.mxu0 0.0
        %3813 = vmatprep.mubr.f32.mxu0 0.0
        %3814 = vmatmul.mubr.f32.gmra.mxu0 %v3747
        %v3815 = vpop.f32.mrf.mxu0
        %v3816 = vadd.f32 0.0, %v3815
        %v3817 = vpop.f32.mrf.mxu0
        %3818 = vdwg.mxu0
        %v3820 = vsel %vm1463, %v3671, 0
        %3822 = vmatprep.subr.mxu0 0.0
        %3823 = vmatpush1.msra.mxu0 0.0
        %3824 = vmatprep.subr.mxu0 0.0
        %3825 = vmatpush1.msra.mxu0 0.0
        %3826 = vmatprep.subr.mxu0 0.0
        %3827 = vmatpush1.msra.mxu0 0.0
        %3828 = vmatprep.subr.mxu0 0.0
        %3829 = vmatpush1.msra.mxu0 0.0
        %3830 = vmatprep.subr.mxu0 0.0
        %3831 = vmatpush1.msra.mxu0 0.0
        %3832 = vmatprep.subr.mxu0 0.0
        %3833 = vmatpush1.msra.mxu0 0.0
        %3834 = vmatprep.subr.mxu0 0.0
        %3835 = vmatpush1.msra.mxu0 0.0
        %3836 = vmatprep.subr.mxu0 0.0
        %3837 = vmatpush1.msra.mxu0 0.0
        %3838 = vmatprep.subr.mxu0 0.0
        %3839 = vmatpush1.msra.mxu0 0.0
        %3840 = vmatprep.subr.mxu0 0.0
        %3841 = vmatpush1.msra.mxu0 0.0
        %3842 = vmatprep.subr.mxu0 0.0
        %3843 = vmatpush1.msra.mxu0 0.0
        %3844 = vmatprep.subr.mxu0 0.0
        %3845 = vmatpush1.msra.mxu0 0.0
        %3846 = vmatprep.subr.mxu0 0.0
        %3847 = vmatpush1.msra.mxu0 0.0
        %3848 = vmatprep.subr.mxu0 0.0
        %3849 = vmatpush1.msra.mxu0 0.0
        %3850 = vmatprep.subr.mxu0 0.0
        %3851 = vmatpush1.msra.mxu0 0.0
        %3852 = vmatprep.subr.mxu0 0.0
        %3853 = vmatpush1.msra.mxu0 %v3268
        %3854 = vmatprep.subr.mxu0 0.0
        %3855 = vmatpush2.msra.mxu0 0.0
        %3856 = vmatprep.subr.mxu0 0.0
        %3857 = vmatpush2.msra.mxu0 0.0
        %3858 = vmatprep.subr.mxu0 0.0
        %3859 = vmatpush2.msra.mxu0 0.0
        %3860 = vmatprep.subr.mxu0 0.0
        %3861 = vmatpush2.msra.mxu0 0.0
        %3862 = vmatprep.subr.mxu0 0.0
        %3863 = vmatpush2.msra.mxu0 0.0
        %3864 = vmatprep.subr.mxu0 0.0
        %3865 = vmatpush2.msra.mxu0 0.0
        %3866 = vmatprep.subr.mxu0 0.0
        %3867 = vmatpush2.msra.mxu0 0.0
        %3868 = vmatprep.subr.mxu0 0.0
        %3869 = vmatpush2.msra.mxu0 0.0
        %3870 = vmatprep.subr.mxu0 0.0
        %3871 = vmatpush2.msra.mxu0 0.0
        %3872 = vmatprep.subr.mxu0 0.0
        %3873 = vmatpush2.msra.mxu0 0.0
        %3874 = vmatprep.subr.mxu0 0.0
        %3875 = vmatpush2.msra.mxu0 0.0
        %3876 = vmatprep.subr.mxu0 0.0
        %3877 = vmatpush2.msra.mxu0 0.0
        %3878 = vmatprep.subr.mxu0 0.0
        %3879 = vmatpush2.msra.mxu0 0.0
        %3880 = vmatprep.subr.mxu0 0.0
        %3881 = vmatpush2.msra.mxu0 0.0
        %3882 = vmatprep.subr.mxu0 0.0
        %3883 = vmatpush2.msra.mxu0 0.0
        %3884 = vmatprep.subr.mxu0 0.0
        %3885 = vmatpush2.msra.mxu0 0.0
        %3886 = vmatprep.mubr.f32.mxu0 0.0
        %3887 = vmatmul.mubr.f32.gmra.mxu0 %v3820
        %v3888 = vpop.f32.mrf.mxu0
        %v3889 = vadd.f32 0.0, %v3888
        %v3890 = vpop.f32.mrf.mxu0
        %3891 = vdwg.mxu0
        %v3893 = vsel %vm1463, %v3672, 0
        %3895 = vmatprep.subr.mxu0 0.0
        %3896 = vmatpush1.msra.mxu0 0.0
        %3897 = vmatprep.subr.mxu0 0.0
        %3898 = vmatpush1.msra.mxu0 0.0
        %3899 = vmatprep.subr.mxu0 0.0
        %3900 = vmatpush1.msra.mxu0 0.0
        %3901 = vmatprep.subr.mxu0 0.0
        %3902 = vmatpush1.msra.mxu0 0.0
        %3903 = vmatprep.subr.mxu0 0.0
        %3904 = vmatpush1.msra.mxu0 0.0
        %3905 = vmatprep.subr.mxu0 0.0
        %3906 = vmatpush1.msra.mxu0 0.0
        %3907 = vmatprep.subr.mxu0 0.0
        %3908 = vmatpush1.msra.mxu0 0.0
        %3909 = vmatprep.subr.mxu0 0.0
        %3910 = vmatpush1.msra.mxu0 0.0
        %3911 = vmatprep.subr.mxu0 0.0
        %3912 = vmatpush1.msra.mxu0 0.0
        %3913 = vmatprep.subr.mxu0 0.0
        %3914 = vmatpush1.msra.mxu0 0.0
        %3915 = vmatprep.subr.mxu0 0.0
        %3916 = vmatpush1.msra.mxu0 0.0
        %3917 = vmatprep.subr.mxu0 0.0
        %3918 = vmatpush1.msra.mxu0 0.0
        %3919 = vmatprep.subr.mxu0 0.0
        %3920 = vmatpush1.msra.mxu0 0.0
        %3921 = vmatprep.subr.mxu0 0.0
        %3922 = vmatpush1.msra.mxu0 0.0
        %3923 = vmatprep.subr.mxu0 0.0
        %3924 = vmatpush1.msra.mxu0 0.0
        %3925 = vmatprep.subr.mxu0 0.0
        %3926 = vmatpush1.msra.mxu0 %v3320
        %3927 = vmatprep.subr.mxu0 0.0
        %3928 = vmatpush2.msra.mxu0 0.0
        %3929 = vmatprep.subr.mxu0 0.0
        %3930 = vmatpush2.msra.mxu0 0.0
        %3931 = vmatprep.subr.mxu0 0.0
        %3932 = vmatpush2.msra.mxu0 0.0
        %3933 = vmatprep.subr.mxu0 0.0
        %3934 = vmatpush2.msra.mxu0 0.0
        %3935 = vmatprep.subr.mxu0 0.0
        %3936 = vmatpush2.msra.mxu0 0.0
        %3937 = vmatprep.subr.mxu0 0.0
        %3938 = vmatpush2.msra.mxu0 0.0
        %3939 = vmatprep.subr.mxu0 0.0
        %3940 = vmatpush2.msra.mxu0 0.0
        %3941 = vmatprep.subr.mxu0 0.0
        %3942 = vmatpush2.msra.mxu0 0.0
        %3943 = vmatprep.subr.mxu0 0.0
        %3944 = vmatpush2.msra.mxu0 0.0
        %3945 = vmatprep.subr.mxu0 0.0
        %3946 = vmatpush2.msra.mxu0 0.0
        %3947 = vmatprep.subr.mxu0 0.0
        %3948 = vmatpush2.msra.mxu0 0.0
        %3949 = vmatprep.subr.mxu0 0.0
        %3950 = vmatpush2.msra.mxu0 0.0
        %3951 = vmatprep.subr.mxu0 0.0
        %3952 = vmatpush2.msra.mxu0 0.0
        %3953 = vmatprep.subr.mxu0 0.0
        %3954 = vmatpush2.msra.mxu0 0.0
        %3955 = vmatprep.subr.mxu0 0.0
        %3956 = vmatpush2.msra.mxu0 0.0
        %3957 = vmatprep.subr.mxu0 0.0
        %3958 = vmatpush2.msra.mxu0 0.0
        %3959 = vmatprep.mubr.f32.mxu0 0.0
        %3960 = vmatmul.mubr.f32.gmra.mxu0 %v3893
        %v3961 = vpop.f32.mrf.mxu0
        %v3962 = vadd.f32 0.0, %v3961
        %v3963 = vpop.f32.mrf.mxu0
        %3964 = vdwg.mxu0
        %v3965 = vpack.c.bf16 %v3743, %v3743
        %v3966 = vpack.c.bf16 %v3816, %v3816
        %v3967 = vpack.c.bf16 %v3889, %v3889
        %v3968 = vpack.c.bf16 %v3962, %v3962
        %s3969 = scalar_lea.vmem %s7, 16
        %v3970 = vld [vmem:[%s3969] sm:$0xf]
        %v3971 = vld [vmem:[%s3969 + $0x4] sm:$0xf]
        %v3972 = vld [vmem:[%s3969 + $0x8] sm:$0xf]
        %v3973 = vld [vmem:[%s3969 + $0xc] sm:$0xf]
        %v3975 = vsel %vm1463, %v3965, 0
        %v3978 = vsel %vm2115, %v3970, 0
        %3980 = vmatprep.subr.bf16.mxu0 0
        %3981 = vmatpush1.bf16.msra.mxu0 0
        %3982 = vmatprep.subr.bf16.mxu0 0
        %3983 = vmatpush1.bf16.msra.mxu0 0
        %3984 = vmatprep.subr.bf16.mxu0 0
        %3985 = vmatpush1.bf16.msra.mxu0 0
        %3986 = vmatprep.subr.bf16.mxu0 0
        %3987 = vmatpush1.bf16.msra.mxu0 0
        %3988 = vmatprep.subr.bf16.mxu0 0
        %3989 = vmatpush1.bf16.msra.mxu0 0
        %3990 = vmatprep.subr.bf16.mxu0 0
        %3991 = vmatpush1.bf16.msra.mxu0 0
        %3992 = vmatprep.subr.bf16.mxu0 0
        %3993 = vmatpush1.bf16.msra.mxu0 0
        %3994 = vmatprep.subr.bf16.mxu0 0
        %3995 = vmatpush1.bf16.msra.mxu0 %v3978
        %3996 = vmatprep.subr.bf16.mxu0 0
        %3997 = vmatpush2.bf16.msra.mxu0 0
        %3998 = vmatprep.subr.bf16.mxu0 0
        %3999 = vmatpush2.bf16.msra.mxu0 0
        %4000 = vmatprep.subr.bf16.mxu0 0
        %4001 = vmatpush2.bf16.msra.mxu0 0
        %4002 = vmatprep.subr.bf16.mxu0 0
        %4003 = vmatpush2.bf16.msra.mxu0 0
        %4004 = vmatprep.subr.bf16.mxu0 0
        %4005 = vmatpush2.bf16.msra.mxu0 0
        %4006 = vmatprep.subr.bf16.mxu0 0
        %4007 = vmatpush2.bf16.msra.mxu0 0
        %4008 = vmatprep.subr.bf16.mxu0 0
        %4009 = vmatpush2.bf16.msra.mxu0 0
        %4010 = vmatprep.subr.bf16.mxu0 0
        %4011 = vmatpush2.bf16.msra.mxu0 0
        %4012 = vmatprep.mubr.bf16.mxu0 0
        %4013 = vmatmul.mubr.bf16.gmra.mxu0 %v3975
        %v4014 = vpop.f32.mrf.mxu0
        %v4015 = vadd.f32 0.0, %v4014
        %v4016 = vpop.f32.mrf.mxu0
        %v4017 = vpop.f32.mrf.mxu0
        %v4018 = vpop.f32.mrf.mxu0
        %4019 = vdwg.mxu0
        %v4021 = vsel %vm1463, %v3966, 0
        %v4024 = vsel %vm2115, %v3971, 0
        %4026 = vmatprep.subr.bf16.mxu0 0
        %4027 = vmatpush1.bf16.msra.mxu0 0
        %4028 = vmatprep.subr.bf16.mxu0 0
        %4029 = vmatpush1.bf16.msra.mxu0 0
        %4030 = vmatprep.subr.bf16.mxu0 0
        %4031 = vmatpush1.bf16.msra.mxu0 0
        %4032 = vmatprep.subr.bf16.mxu0 0
        %4033 = vmatpush1.bf16.msra.mxu0 0
        %4034 = vmatprep.subr.bf16.mxu0 0
        %4035 = vmatpush1.bf16.msra.mxu0 0
        %4036 = vmatprep.subr.bf16.mxu0 0
        %4037 = vmatpush1.bf16.msra.mxu0 0
        %4038 = vmatprep.subr.bf16.mxu0 0
        %4039 = vmatpush1.bf16.msra.mxu0 0
        %4040 = vmatprep.subr.bf16.mxu0 0
        %4041 = vmatpush1.bf16.msra.mxu0 %v4024
        %4042 = vmatprep.subr.bf16.mxu0 0
        %4043 = vmatpush2.bf16.msra.mxu0 0
        %4044 = vmatprep.subr.bf16.mxu0 0
        %4045 = vmatpush2.bf16.msra.mxu0 0
        %4046 = vmatprep.subr.bf16.mxu0 0
        %4047 = vmatpush2.bf16.msra.mxu0 0
        %4048 = vmatprep.subr.bf16.mxu0 0
        %4049 = vmatpush2.bf16.msra.mxu0 0
        %4050 = vmatprep.subr.bf16.mxu0 0
        %4051 = vmatpush2.bf16.msra.mxu0 0
        %4052 = vmatprep.subr.bf16.mxu0 0
        %4053 = vmatpush2.bf16.msra.mxu0 0
        %4054 = vmatprep.subr.bf16.mxu0 0
        %4055 = vmatpush2.bf16.msra.mxu0 0
        %4056 = vmatprep.subr.bf16.mxu0 0
        %4057 = vmatpush2.bf16.msra.mxu0 0
        %4058 = vmatprep.mubr.bf16.mxu0 0
        %4059 = vmatmul.mubr.bf16.gmra.mxu0 %v4021
        %v4060 = vpop.f32.mrf.mxu0
        %v4061 = vadd.f32 0.0, %v4060
        %v4062 = vpop.f32.mrf.mxu0
        %v4063 = vpop.f32.mrf.mxu0
        %v4064 = vpop.f32.mrf.mxu0
        %4065 = vdwg.mxu0
        %v4067 = vsel %vm1463, %v3967, 0
        %v4070 = vsel %vm2115, %v3972, 0
        %4072 = vmatprep.subr.bf16.mxu0 0
        %4073 = vmatpush1.bf16.msra.mxu0 0
        %4074 = vmatprep.subr.bf16.mxu0 0
        %4075 = vmatpush1.bf16.msra.mxu0 0
        %4076 = vmatprep.subr.bf16.mxu0 0
        %4077 = vmatpush1.bf16.msra.mxu0 0
        %4078 = vmatprep.subr.bf16.mxu0 0
        %4079 = vmatpush1.bf16.msra.mxu0 0
        %4080 = vmatprep.subr.bf16.mxu0 0
        %4081 = vmatpush1.bf16.msra.mxu0 0
        %4082 = vmatprep.subr.bf16.mxu0 0
        %4083 = vmatpush1.bf16.msra.mxu0 0
        %4084 = vmatprep.subr.bf16.mxu0 0
        %4085 = vmatpush1.bf16.msra.mxu0 0
        %4086 = vmatprep.subr.bf16.mxu0 0
        %4087 = vmatpush1.bf16.msra.mxu0 %v4070
        %4088 = vmatprep.subr.bf16.mxu0 0
        %4089 = vmatpush2.bf16.msra.mxu0 0
        %4090 = vmatprep.subr.bf16.mxu0 0
        %4091 = vmatpush2.bf16.msra.mxu0 0
        %4092 = vmatprep.subr.bf16.mxu0 0
        %4093 = vmatpush2.bf16.msra.mxu0 0
        %4094 = vmatprep.subr.bf16.mxu0 0
        %4095 = vmatpush2.bf16.msra.mxu0 0
        %4096 = vmatprep.subr.bf16.mxu0 0
        %4097 = vmatpush2.bf16.msra.mxu0 0
        %4098 = vmatprep.subr.bf16.mxu0 0
        %4099 = vmatpush2.bf16.msra.mxu0 0
        %4100 = vmatprep.subr.bf16.mxu0 0
        %4101 = vmatpush2.bf16.msra.mxu0 0
        %4102 = vmatprep.subr.bf16.mxu0 0
        %4103 = vmatpush2.bf16.msra.mxu0 0
        %4104 = vmatprep.mubr.bf16.mxu0 0
        %4105 = vmatmul.mubr.bf16.gmra.mxu0 %v4067
        %v4106 = vpop.f32.mrf.mxu0
        %v4107 = vadd.f32 0.0, %v4106
        %v4108 = vpop.f32.mrf.mxu0
        %v4109 = vpop.f32.mrf.mxu0
        %v4110 = vpop.f32.mrf.mxu0
        %4111 = vdwg.mxu0
        %v4113 = vsel %vm1463, %v3968, 0
        %v4116 = vsel %vm2115, %v3973, 0
        %4118 = vmatprep.subr.bf16.mxu0 0
        %4119 = vmatpush1.bf16.msra.mxu0 0
        %4120 = vmatprep.subr.bf16.mxu0 0
        %4121 = vmatpush1.bf16.msra.mxu0 0
        %4122 = vmatprep.subr.bf16.mxu0 0
        %4123 = vmatpush1.bf16.msra.mxu0 0
        %4124 = vmatprep.subr.bf16.mxu0 0
        %4125 = vmatpush1.bf16.msra.mxu0 0
        %4126 = vmatprep.subr.bf16.mxu0 0
        %4127 = vmatpush1.bf16.msra.mxu0 0
        %4128 = vmatprep.subr.bf16.mxu0 0
        %4129 = vmatpush1.bf16.msra.mxu0 0
        %4130 = vmatprep.subr.bf16.mxu0 0
        %4131 = vmatpush1.bf16.msra.mxu0 0
        %4132 = vmatprep.subr.bf16.mxu0 0
        %4133 = vmatpush1.bf16.msra.mxu0 %v4116
        %4134 = vmatprep.subr.bf16.mxu0 0
        %4135 = vmatpush2.bf16.msra.mxu0 0
        %4136 = vmatprep.subr.bf16.mxu0 0
        %4137 = vmatpush2.bf16.msra.mxu0 0
        %4138 = vmatprep.subr.bf16.mxu0 0
        %4139 = vmatpush2.bf16.msra.mxu0 0
        %4140 = vmatprep.subr.bf16.mxu0 0
        %4141 = vmatpush2.bf16.msra.mxu0 0
        %4142 = vmatprep.subr.bf16.mxu0 0
        %4143 = vmatpush2.bf16.msra.mxu0 0
        %4144 = vmatprep.subr.bf16.mxu0 0
        %4145 = vmatpush2.bf16.msra.mxu0 0
        %4146 = vmatprep.subr.bf16.mxu0 0
        %4147 = vmatpush2.bf16.msra.mxu0 0
        %4148 = vmatprep.subr.bf16.mxu0 0
        %4149 = vmatpush2.bf16.msra.mxu0 0
        %4150 = vmatprep.mubr.bf16.mxu0 0
        %4151 = vmatmul.mubr.bf16.gmra.mxu0 %v4113
        %v4152 = vpop.f32.mrf.mxu0
        %v4153 = vadd.f32 0.0, %v4152
        %v4154 = vpop.f32.mrf.mxu0
        %v4155 = vpop.f32.mrf.mxu0
        %v4156 = vpop.f32.mrf.mxu0
        %4157 = vdwg.mxu0
        %v4158 = vsel %vm674, %v4015, 0.0
        %v4159 = vsel %vm674, %v4061, 0.0
        %v4160 = vadd.f32 %v4158, %v4159
        %v4161 = vsel %vm674, %v4107, 0.0
        %v4162 = vadd.f32 %v4160, %v4161
        %v4163 = vsel %vm674, %v4153, 0.0
        %v4164 = vadd.f32 %v4162, %v4163
        %v4165 = vadd.f32 %v2531, %v4164
        %s4166 = scalar_lea.vmem %s8, 1
        %v4167 = vld [vmem:[%s4166] sm:$0x1]
        %v4169 = vlaneseq
        %v4170 = vshrl.u32 %v4169, 7
        %v4171 = vsub.s32 0, %v4170
        %v4172 = vrot.slane %v4167, %v4171
        %v4174 = vadd.f32 %v4165, %v4172
        %s4175 = scalar_lea.vmem %s9, 1
        %v4176 = vld [vmem:[%s4175] sm:$0x1]
        %s4177 = scalar_lea.vmem %s10, 1
        %v4178 = vld [vmem:[%s4177] sm:$0x1]
        %v4179 = vsel %vm674, %v4174, 0.0
        %4180 = vadd.xlane.f32.xlu0 %v4179
        %v4181 = vpop.xlane.xlu0 %4180
        %v4182 = vmul.f32 %v4181, %v678
        %v4183 = vsub.f32 %v4174, %v4182
        %v4184 = vmul.f32 %v4183, %v4183
        %v4185 = vsel %vm674, %v4184, 0.0
        %4186 = vadd.xlane.f32.xlu0 %v4185
        %v4187 = vpop.xlane.xlu0 %4186
        %v4188 = vmul.f32 %v4187, %v678
        %v4189 = vadd.f32 %v4188, 1e-05
        %v4190 = vrsqrt.pop %v4189
        %v4191 = vmul.f32 %v4183, %v4190
        %v4193 = vlaneseq
        %v4194 = vshrl.u32 %v4193, 7
        %v4195 = vsub.s32 0, %v4194
        %v4196 = vrot.slane %v4176, %v4195
        %v4198 = vmul.f32 %v4191, %v4196
        %v4200 = vlaneseq
        %v4201 = vshrl.u32 %v4200, 7
        %v4202 = vsub.s32 0, %v4201
        %v4203 = vrot.slane %v4178, %v4202
        %v4205 = vadd.f32 %v4198, %v4203
        %v4206 = vpack.c.bf16 %v4205, %v4205
        %s4207 = scalar_lea.vmem %s11, 16
        %v4208 = vld [vmem:[%s4207] sm:$0xf]
        %v4209 = vld [vmem:[%s4207 + $0x4] sm:$0xf]
        %v4210 = vld [vmem:[%s4207 + $0x8] sm:$0xf]
        %v4211 = vld [vmem:[%s4207 + $0xc] sm:$0xf]
        %s4212 = scalar_lea.vmem %s12, 1
        %v4213 = vld [vmem:[%s4212] sm:$0x1]
        %v4215 = vlaneseq
        %v4216 = vshrl.u32 %v4215, 7
        %v4217 = vsub.s32 0, %v4216
        %v4218 = vrot.slane %v4213, %v4217
        %v4224 = vunpack.c.l.b16 %v4208
        %v4225 = vunpack.c.l.b16 %v4209
        %v4226 = vunpack.c.l.b16 %v4210
        %v4227 = vunpack.c.l.b16 %v4211
        %v4228 = vpack.c.b16 %v4225, %v4224
        %v4229 = vpack.c.b16 %v4227, %v4226
        %v4233 = vsel %vm674, %v4206, 0
        %4235 = vmatprep.subr.bf16.mxu0 0
        %4236 = vmatpush1.bf16.msra.mxu0 0
        %4237 = vmatprep.subr.bf16.mxu0 0
        %4238 = vmatpush1.bf16.msra.mxu0 0
        %4239 = vmatprep.subr.bf16.mxu0 0
        %4240 = vmatpush1.bf16.msra.mxu0 0
        %4241 = vmatprep.subr.bf16.mxu0 0
        %4242 = vmatpush1.bf16.msra.mxu0 0
        %4243 = vmatprep.subr.bf16.mxu0 0
        %4244 = vmatpush1.bf16.msra.mxu0 0
        %4245 = vmatprep.subr.bf16.mxu0 0
        %4246 = vmatpush1.bf16.msra.mxu0 0
        %4247 = vmatprep.subr.bf16.mxu0 0
        %4248 = vmatpush1.bf16.msra.mxu0 %v4229
        %4249 = vmatprep.subr.bf16.mxu0 0
        %4250 = vmatpush1.bf16.msra.mxu0 %v4228
        %4251 = vmatprep.subr.bf16.mxu0 0
        %4252 = vmatpush2.bf16.msra.mxu0 0
        %4253 = vmatprep.subr.bf16.mxu0 0
        %4254 = vmatpush2.bf16.msra.mxu0 0
        %4255 = vmatprep.subr.bf16.mxu0 0
        %4256 = vmatpush2.bf16.msra.mxu0 0
        %4257 = vmatprep.subr.bf16.mxu0 0
        %4258 = vmatpush2.bf16.msra.mxu0 0
        %4259 = vmatprep.subr.bf16.mxu0 0
        %4260 = vmatpush2.bf16.msra.mxu0 0
        %4261 = vmatprep.subr.bf16.mxu0 0
        %4262 = vmatpush2.bf16.msra.mxu0 0
        %4263 = vmatprep.subr.bf16.mxu0 0
        %4264 = vmatpush2.bf16.msra.mxu0 0
        %4265 = vmatprep.subr.bf16.mxu0 0
        %4266 = vmatpush2.bf16.msra.mxu0 0
        %4267 = vmatprep.mubr.bf16.mxu0 0
        %4268 = vmatmul.mubr.bf16.gmra.mxu0 %v4233
        %v4269 = vpop.f32.mrf.mxu0
        %v4270 = vadd.f32 %v4218, %v4269
        %v4271 = vpop.f32.mrf.mxu0
        %v4272 = vpop.f32.mrf.mxu0
        %v4273 = vpop.f32.mrf.mxu0
        %4274 = vdwg.mxu0
        %v4275 = vmul.f32 %v4270, 0.5
        %v4276 = vmul.f32 %v4270, 0.044715
        %v4277 = vmul.f32 %v4276, %v4270
        %v4278 = vmul.f32 %v4277, %v4270
        %v4279 = vadd.f32 %v4270, %v4278
        %v4280 = vmul.f32 %v4279, 0.7978846
        %v4281 = vtanh.pop %v4280
        %v4282 = vadd.f32 %v4281, 1.0
        %v4283 = vmul.f32 %v4275, %v4282
        %v4284 = vpack.c.bf16 %v4283, %v4283
        %s4285 = scalar_lea.vmem %s13, 64
        %v4286 = vld [vmem:[%s4285] sm:$0xf]
        %v4287 = vld [vmem:[%s4285 + $0x4] sm:$0xf]
        %v4288 = vld [vmem:[%s4285 + $0x8] sm:$0xf]
        %v4289 = vld [vmem:[%s4285 + $0xc] sm:$0xf]
        %v4290 = vld [vmem:[%s4285 + $0x10] sm:$0xf]
        %v4291 = vld [vmem:[%s4285 + $0x14] sm:$0xf]
        %v4292 = vld [vmem:[%s4285 + $0x18] sm:$0xf]
        %v4293 = vld [vmem:[%s4285 + $0x1c] sm:$0xf]
        %v4294 = vld [vmem:[%s4285 + $0x20] sm:$0xf]
        %v4295 = vld [vmem:[%s4285 + $0x24] sm:$0xf]
        %v4296 = vld [vmem:[%s4285 + $0x28] sm:$0xf]
        %v4297 = vld [vmem:[%s4285 + $0x2c] sm:$0xf]
        %v4298 = vld [vmem:[%s4285 + $0x30] sm:$0xf]
        %v4299 = vld [vmem:[%s4285 + $0x34] sm:$0xf]
        %v4300 = vld [vmem:[%s4285 + $0x38] sm:$0xf]
        %v4301 = vld [vmem:[%s4285 + $0x3c] sm:$0xf]
        %v4318 = vunpack.c.l.b16 %v4286
        %v4319 = vunpack.c.l.b16 %v4287
        %v4320 = vunpack.c.l.b16 %v4288
        %v4321 = vunpack.c.l.b16 %v4289
        %v4322 = vunpack.c.l.b16 %v4290
        %v4323 = vunpack.c.l.b16 %v4291
        %v4324 = vunpack.c.l.b16 %v4292
        %v4325 = vunpack.c.l.b16 %v4293
        %v4326 = vunpack.c.l.b16 %v4294
        %v4327 = vunpack.c.l.b16 %v4295
        %v4328 = vunpack.c.l.b16 %v4296
        %v4329 = vunpack.c.l.b16 %v4297
        %v4330 = vunpack.c.l.b16 %v4298
        %v4331 = vunpack.c.l.b16 %v4299
        %v4332 = vunpack.c.l.b16 %v4300
        %v4333 = vunpack.c.l.b16 %v4301
        %v4334 = vpack.c.b16 %v4319, %v4318
        %v4335 = vpack.c.b16 %v4321, %v4320
        %v4336 = vpack.c.b16 %v4323, %v4322
        %v4337 = vpack.c.b16 %v4325, %v4324
        %v4338 = vpack.c.b16 %v4327, %v4326
        %v4339 = vpack.c.b16 %v4329, %v4328
        %v4340 = vpack.c.b16 %v4331, %v4330
        %v4341 = vpack.c.b16 %v4333, %v4332
        %4350 = vmatprep.subr.bf16.mxu0 0
        %4351 = vmatpush1.bf16.msra.mxu0 %v4341
        %4352 = vmatprep.subr.bf16.mxu0 0
        %4353 = vmatpush1.bf16.msra.mxu0 %v4340
        %4354 = vmatprep.subr.bf16.mxu0 0
        %4355 = vmatpush1.bf16.msra.mxu0 %v4339
        %4356 = vmatprep.subr.bf16.mxu0 0
        %4357 = vmatpush1.bf16.msra.mxu0 %v4338
        %4358 = vmatprep.subr.bf16.mxu0 0
        %4359 = vmatpush1.bf16.msra.mxu0 %v4337
        %4360 = vmatprep.subr.bf16.mxu0 0
        %4361 = vmatpush1.bf16.msra.mxu0 %v4336
        %4362 = vmatprep.subr.bf16.mxu0 0
        %4363 = vmatpush1.bf16.msra.mxu0 %v4335
        %4364 = vmatprep.subr.bf16.mxu0 0
        %4365 = vmatpush1.bf16.msra.mxu0 %v4334
        %4366 = vmatprep.subr.bf16.mxu0 0
        %4367 = vmatpush2.bf16.msra.mxu0 0
        %4368 = vmatprep.subr.bf16.mxu0 0
        %4369 = vmatpush2.bf16.msra.mxu0 0
        %4370 = vmatprep.subr.bf16.mxu0 0
        %4371 = vmatpush2.bf16.msra.mxu0 0
        %4372 = vmatprep.subr.bf16.mxu0 0
        %4373 = vmatpush2.bf16.msra.mxu0 0
        %4374 = vmatprep.subr.bf16.mxu0 0
        %4375 = vmatpush2.bf16.msra.mxu0 0
        %4376 = vmatprep.subr.bf16.mxu0 0
        %4377 = vmatpush2.bf16.msra.mxu0 0
        %4378 = vmatprep.subr.bf16.mxu0 0
        %4379 = vmatpush2.bf16.msra.mxu0 0
        %4380 = vmatprep.subr.bf16.mxu0 0
        %4381 = vmatpush2.bf16.msra.mxu0 0
        %4382 = vmatprep.mubr.bf16.mxu0 0
        %4383 = vmatmul.mubr.bf16.gmra.mxu0 %v4284
        %v4384 = vpop.f32.mrf.mxu0
        %v4385 = vadd.f32 0.0, %v4384
        %v4386 = vpop.f32.mrf.mxu0
        %v4387 = vpop.f32.mrf.mxu0
        %v4388 = vpop.f32.mrf.mxu0
        %4389 = vdwg.mxu0
        %v4390 = vadd.f32 %v4174, %v4385
        %s4391 = scalar_lea.vmem %s14, 1
        %v4392 = vld [vmem:[%s4391] sm:$0x1]
        %v4394 = vlaneseq
        %v4395 = vshrl.u32 %v4394, 7
        %v4396 = vsub.s32 0, %v4395
        %v4397 = vrot.slane %v4392, %v4396
        %v4399 = vadd.f32 %v4390, %v4397
        %v4400 = vld [vmem:[%s15] sm:$0x1]
        %v4401 = vld [vmem:[%s16] sm:$0x1]
        %v4402 = vsel %vm674, %v4399, 0.0
        %4403 = vadd.xlane.f32.xlu0 %v4402
        %v4404 = vpop.xlane.xlu0 %4403
        %v4405 = vmul.f32 %v4404, %v678
        %v4406 = vsub.f32 %v4399, %v4405
        %v4407 = vmul.f32 %v4406, %v4406
        %v4408 = vsel %vm674, %v4407, 0.0
        %4409 = vadd.xlane.f32.xlu0 %v4408
        %v4410 = vpop.xlane.xlu0 %4409
        %v4411 = vmul.f32 %v4410, %v678
        %v4412 = vadd.f32 %v4411, 1e-05
        %v4413 = vrsqrt.pop %v4412
        %v4414 = vmul.f32 %v4406, %v4413
        %v4416 = vlaneseq
        %v4417 = vshrl.u32 %v4416, 7
        %v4418 = vsub.s32 0, %v4417
        %v4419 = vrot.slane %v4400, %v4418
        %v4421 = vmul.f32 %v4414, %v4419
        %v4423 = vlaneseq
        %v4424 = vshrl.u32 %v4423, 7
        %v4425 = vsub.s32 0, %v4424
        %v4426 = vrot.slane %v4401, %v4425
        %v4428 = vadd.f32 %v4421, %v4426
        %v4429 = vpack.c.bf16 %v4428, %v4428
        %v4430 = vld [vmem:[%s17] sm:$0xf]
        %v4431 = vld [vmem:[%s17 + $0x4] sm:$0xf]
        %v4432 = vld [vmem:[%s17 + $0x8] sm:$0xf]
        %v4433 = vld [vmem:[%s17 + $0xc] sm:$0xf]
        %v4438 = vunpack.c.l.b16 %v4430
        %v4439 = vunpack.c.l.b16 %v4431
        %v4440 = vunpack.c.l.b16 %v4432
        %v4441 = vunpack.c.l.b16 %v4433
        %v4442 = vpack.c.b16 %v4439, %v4438
        %v4443 = vpack.c.b16 %v4441, %v4440
        %v4447 = vsel %vm674, %v4429, 0
        %4449 = vmatprep.subr.bf16.mxu0 0
        %4450 = vmatpush1.bf16.msra.mxu0 0
        %4451 = vmatprep.subr.bf16.mxu0 0
        %4452 = vmatpush1.bf16.msra.mxu0 0
        %4453 = vmatprep.subr.bf16.mxu0 0
        %4454 = vmatpush1.bf16.msra.mxu0 0
        %4455 = vmatprep.subr.bf16.mxu0 0
        %4456 = vmatpush1.bf16.msra.mxu0 0
        %4457 = vmatprep.subr.bf16.mxu0 0
        %4458 = vmatpush1.bf16.msra.mxu0 0
        %4459 = vmatprep.subr.bf16.mxu0 0
        %4460 = vmatpush1.bf16.msra.mxu0 0
        %4461 = vmatprep.subr.bf16.mxu0 0
        %4462 = vmatpush1.bf16.msra.mxu0 %v4443
        %4463 = vmatprep.subr.bf16.mxu0 0
        %4464 = vmatpush1.bf16.msra.mxu0 %v4442
        %4465 = vmatprep.subr.bf16.mxu0 0
        %4466 = vmatpush2.bf16.msra.mxu0 0
        %4467 = vmatprep.subr.bf16.mxu0 0
        %4468 = vmatpush2.bf16.msra.mxu0 0
        %4469 = vmatprep.subr.bf16.mxu0 0
        %4470 = vmatpush2.bf16.msra.mxu0 0
        %4471 = vmatprep.subr.bf16.mxu0 0
        %4472 = vmatpush2.bf16.msra.mxu0 0
        %4473 = vmatprep.subr.bf16.mxu0 0
        %4474 = vmatpush2.bf16.msra.mxu0 0
        %4475 = vmatprep.subr.bf16.mxu0 0
        %4476 = vmatpush2.bf16.msra.mxu0 0
        %4477 = vmatprep.subr.bf16.mxu0 0
        %4478 = vmatpush2.bf16.msra.mxu0 0
        %4479 = vmatprep.subr.bf16.mxu0 0
        %4480 = vmatpush2.bf16.msra.mxu0 0
        %4481 = vmatprep.mubr.bf16.mxu0 0
        %4482 = vmatmul.mubr.bf16.gmra.mxu0 %v4447
        %v4483 = vpop.f32.mrf.mxu0
        %v4484 = vadd.f32 0.0, %v4483
        %v4485 = vpop.f32.mrf.mxu0
        %v4486 = vpop.f32.mrf.mxu0
        %v4487 = vpop.f32.mrf.mxu0
        %4488 = vdwg.mxu0
        %4489 = vst [vmem:[%s566] sm:$0xff] %v4484
        %s4490 = sand.u32 %s423, 1
        %s4491 = scalar_lea.sflag [#allocation3], %s4490
        %s4492 = sand.u32 %s423, 1
        %s4493 = smul.addr %s4492, 8
        %s4494 = scalar_lea.vmem [#allocation2], %s4493
        // Predicated region
        $region93: #{gpt_forward.1} parent=91 // pred_check
          %p4495 = pneg %p433
        $region94: #{gpt_forward.1} parent=91 // pred_check_branch
          %4497 = sbr.rel (%p4495) target = $region96
        $region95: #{gpt_forward.1} parent=91 // pred_region
          %s4499 = ssub.s32 128, 128
          %4500 = vsyncadd %s4491, %s4499
          %s4501 = smul.addr %s32, 128
          %s4502 = scalar_lea.hbm %s18, %s4501
          %s4504 = sshll.u32 %s4494, 4
          %s4505 = int_to_ptr.vmem [resolvable:$true] %s4504
          %4507 = dma.vmem_to_hbm [thread:$0]  %s4505, 128, %s4502, %s4491
        $region96: #{gpt_forward.1} parent=91 // pred_fallthru
          _
      $region92: #{gpt_forward.1} parent=5 // pred_fallthru
        _
      %p4508 = scmp.le.s32.totalorder 2, %s27
      // Predicated region
      $region97: #{gpt_forward.1} parent=5 // pred_check
        %p4509 = pneg %p4508
      $region98: #{gpt_forward.1} parent=5 // pred_check_branch
        %4511 = sbr.rel (%p4509) target = $region100
      $region99: #{gpt_forward.1} parent=5 // pred_region
        %s4512 = ssub.s32 %s27, 2
        // Predicated region
        $region101: #{gpt_forward.1} parent=99 // pred_check
          %p4513 = pneg %p439
        $region102: #{gpt_forward.1} parent=99 // pred_check_branch
          %4515 = sbr.rel (%p4513) target = $region104
        $region103: #{gpt_forward.1} parent=99 // pred_region
          %s4516 = sand.u32 %s424, 1
          %s4517 = scalar_lea.sflag [#allocation3], %s4516
          %s4518 = sand.u32 %s424, 1
          %s4519 = smul.addr %s4518, 8
          %s4520 = scalar_lea.vmem [#allocation2], %s4519
          %4521 = dma.done %s4517, 128
        $region104: #{gpt_forward.1} parent=99 // pred_fallthru
          _
      $region100: #{gpt_forward.1} parent=5 // pred_fallthru
        _
    $region6: #{gpt_forward.1} parent=1 // loop_footer
      %s31 = sadd.s32 1, %s27
    $region7: #{gpt_forward.1} parent=1 // loop_footer_branch
      %26 = sbr.rel target = $region3
    $region8: #{gpt_forward.1} parent=1 // loop_exit
      _
    %4522 = vsyncpa [#allocation3], 1
    %s4523 = scalar_lea.sflag [#allocation3], 1
    %4524 = vsyncpa %s4523, 1

</llo_original>
